<compile_context>
chip_gen: v6e
topology: v6e:2x2x1
jax: 0.10.0
libtpu: 0.0.40
codegen_flags: <defaults>
</compile_context>

<pallas_src>
import functools

import jax
import jax.numpy as jnp
from jax.experimental import pallas as pl
from jax.experimental.pallas import tpu as pltpu

EPS = 1e-5
_SIXTH = 1.0 / 6.0


def _hswish(x):
    return x * (jnp.clip(x + 3.0, 0.0, 6.0) * _SIXTH)


def _hsigmoid(x):
    return jnp.clip(x + 3.0, 0.0, 6.0) * _SIXTH


# --------------------------- fused Block kernel ------------------------------
def _block_kernel(*refs, k, stride, h, w, shortcut):
    if shortcut == "conv":
        (x_ref, w1_ref, b1_ref, w2_ref, b2_ref, w3_ref, b3_ref,
         wse1_ref, bse1_ref, wse2_ref, bse2_ref,
         wsc_ref, bsc_ref, o_ref, epad_ref) = refs
    else:
        (x_ref, w1_ref, b1_ref, w2_ref, b2_ref, w3_ref, b3_ref,
         wse1_ref, bse1_ref, wse2_ref, bse2_ref, o_ref, epad_ref) = refs
        wsc_ref = bsc_ref = None

    cexp = w1_ref.shape[1]
    cout = w3_ref.shape[1]
    p = k // 2
    ho = (h + 2 * p - k) // stride + 1
    wo = (w + 2 * p - k) // stride + 1

    # ---- expand: 1x1 conv (BN scale pre-folded into weights) + hswish  [MXU]
    x2 = x_ref[0]                                                   # (H*W, Cin)
    e = jnp.dot(x2, w1_ref[...], preferred_element_type=jnp.float32) + b1_ref[...]
    e = _hswish(e)                                                  # (H*W, Cexp)

    # ---- depthwise kxk conv + hswish: expanded activation stays in VMEM.
    # Zero-padded scratch border implements the conv's `padding = k // 2`.
    epad_ref[...] = jnp.zeros_like(epad_ref)
    epad_ref[pl.ds(p, h), pl.ds(p, w), :] = e.reshape(h, w, cexp)

    acc = jnp.zeros((ho, wo, cexp), jnp.float32)
    for kh in range(k):                       # static unroll (k in {3, 5})
        for kw in range(k):
            if stride == 1:
                patch = epad_ref[pl.ds(kh, ho), pl.ds(kw, wo), :]
            else:                             # hardware strided loads
                patch = epad_ref[pl.ds(kh, ho, stride), pl.ds(kw, wo, stride), :]
            acc = acc + patch * w2_ref[kh, kw, :]
    d = _hswish(acc + b2_ref[...])            # (Ho, Wo, Cexp)

    # ---- project: 1x1 conv + folded BN (no activation)  [MXU]
    pr = jnp.dot(d.reshape(ho * wo, cexp), w3_ref[...],
                 preferred_element_type=jnp.float32) + b3_ref[...]  # (Ho*Wo, Cout)

    # ---- SE: avg-pool (as an MXU matmul) -> fc+relu -> fc+hsigmoid -> scale
    pool_vec = jnp.full((1, ho * wo), 1.0 / (ho * wo), dtype=jnp.float32)
    pooled = jnp.dot(pool_vec, pr, preferred_element_type=jnp.float32)      # (1, Cout)
    hsq = jnp.dot(pooled, wse1_ref[...],
                  preferred_element_type=jnp.float32) + bse1_ref[...]
    hsq = jnp.maximum(hsq, 0.0)
    gate = _hsigmoid(jnp.dot(hsq, wse2_ref[...],
                             preferred_element_type=jnp.float32) + bse2_ref[...])
    out = pr * gate

    # ---- residual shortcut (skipped entirely when stride != 1)
    if shortcut == "identity":
        out = out + x2
    elif shortcut == "conv":
        out = out + (jnp.dot(x2, wsc_ref[...],
                             preferred_element_type=jnp.float32) + bsc_ref[...])

    o_ref[0] = out.astype(o_ref.dtype)


def _fused_block_call(x_flat, w1f, b1, w2f, b2, w3f, b3,
                      wse1f, bse1, wse2f, bse2, wsc, bsc,
                      *, kernel_size, stride, h, w, shortcut):
    n, _, cin = x_flat.shape
    cexp = w1f.shape[1]
    cout = w3f.shape[1]
    cr = wse1f.shape[1]
    k = kernel_size
    p = k // 2
    ho = (h + 2 * p - k) // stride + 1
    wo = (w + 2 * p - k) // stride + 1

    def _const(shape):
        return pl.BlockSpec(shape, lambda i: (0,) * len(shape))

    in_specs = [
        pl.BlockSpec((1, h * w, cin), lambda i: (i, 0, 0)),
        _const((cin, cexp)), _const((1, cexp)),
        _const((k, k, cexp)), _const((1, cexp)),
        _const((cexp, cout)), _const((1, cout)),
        _const((cout, cr)), _const((1, cr)),
        _const((cr, cout)), _const((1, cout)),
    ]
    args = [x_flat, w1f, b1, w2f, b2, w3f, b3, wse1f, bse1, wse2f, bse2]
    if shortcut == "conv":
        in_specs += [_const((cin, cout)), _const((1, cout))]
        args += [wsc, bsc]

    kernel = functools.partial(_block_kernel, k=k, stride=stride,
                               h=h, w=w, shortcut=shortcut)
    return pl.pallas_call(
        kernel,
        out_shape=jax.ShapeDtypeStruct((n, ho * wo, cout), jnp.float32),
        grid=(n,),
        in_specs=in_specs,
        out_specs=pl.BlockSpec((1, ho * wo, cout), lambda i: (i, 0, 0)),
        scratch_shapes=[pltpu.VMEM((h + 2 * p, w + 2 * p, cexp), jnp.float32)],
        compiler_params=pltpu.CompilerParams(
            dimension_semantics=("parallel",)),
    )(*args)


# ----------------------------- Block forward ---------------------------------
def _fold_bn(bn):
    gamma, beta, mean, var = bn
    scale = gamma / jnp.sqrt(var + EPS)
    return scale, beta - mean * scale


@functools.partial(jax.jit, static_argnames=("kernel_size", "stride"))
def block_forward(x_nchw, params, *, kernel_size, stride):
    x = jnp.transpose(x_nchw, (0, 2, 3, 1)).astype(jnp.float32)   # NCHW -> NHWC
    n, h, w, cin = x.shape
    k = kernel_size
    p = k // 2
    ho = (h + 2 * p - k) // stride + 1
    wo = (w + 2 * p - k) // stride + 1

    s1, b1 = _fold_bn(params["bn1"])
    s2, b2 = _fold_bn(params["bn2"])
    s3, b3 = _fold_bn(params["bn3"])
    sse1, bse1 = _fold_bn(params["bn_se1"])
    sse2, bse2 = _fold_bn(params["bn_se2"])

    # Fold BN scale into the (tiny) conv weights once, outside the kernel.
    w1f = params["w1"] * s1[None, :]
    w2f = params["w2"] * s2[None, None, :]
    w3f = params["w3"] * s3[None, :]
    wse1f = params["w_se1"] * sse1[None, :]
    wse2f = params["w_se2"] * sse2[None, :]
    cout = w3f.shape[1]

    if stride == 1 and cin == cout:
        shortcut, wsc, bsc = "identity", None, None
    elif stride == 1:
        shortcut = "conv"
        ssc, bsc0 = _fold_bn(params["bn_sc"])
        wsc = params["w_sc"] * ssc[None, :]
        bsc = bsc0.reshape(1, -1)
    else:
        shortcut, wsc, bsc = "none", None, None   # no residual, no zeros tensor

    out_flat = _fused_block_call(
        x.reshape(n, h * w, cin),
        w1f, b1.reshape(1, -1), w2f, b2.reshape(1, -1),
        w3f, b3.reshape(1, -1),
        wse1f, bse1.reshape(1, -1), wse2f, bse2.reshape(1, -1),
        wsc, bsc,
        kernel_size=kernel_size, stride=stride, h=h, w=w, shortcut=shortcut)

    out = out_flat.reshape(n, ho, wo, cout)
    return jnp.transpose(out, (0, 3, 1, 2))                        # NHWC -> NCHW


# ----------------------------- pure-JAX reference ----------------------------
def block_reference(x_nchw, params, *, kernel_size, stride):
    x = jnp.transpose(x_nchw, (0, 2, 3, 1)).astype(jnp.float32)
    s1, b1 = _fold_bn(params["bn1"])
    s2, b2 = _fold_bn(params["bn2"])
    s3, b3 = _fold_bn(params["bn3"])
    out = _hswish(jnp.einsum("nhwi,io->nhwo", x, params["w1"]) * s1 + b1)
    p = kernel_size // 2
    c = out.shape[-1]
    dw = params["w2"].reshape(kernel_size, kernel_size, 1, c)
    out = jax.lax.conv_general_dilated(
        out, dw, window_strides=(stride, stride), padding=[(p, p), (p, p)],
        dimension_numbers=("NHWC", "HWIO", "NHWC"), feature_group_count=c)
    out = _hswish(out * s2 + b2)
    out = jnp.einsum("nhwi,io->nhwo", out, params["w3"]) * s3 + b3
    sse1, bse1 = _fold_bn(params["bn_se1"])
    sse2, bse2 = _fold_bn(params["bn_se2"])
    pooled = jnp.mean(out, axis=(1, 2))
    hsq = jnp.maximum(pooled @ params["w_se1"] * sse1 + bse1, 0.0)
    gate = _hsigmoid(hsq @ params["w_se2"] * sse2 + bse2)
    out = out * gate[:, None, None, :]
    if stride == 1:
        if x.shape[-1] == out.shape[-1]:
            shortcut = x
        else:
            ssc, bsc = _fold_bn(params["bn_sc"])
            shortcut = jnp.einsum("nhwi,io->nhwo", x, params["w_sc"]) * ssc + bsc
        out = out + shortcut
    return jnp.transpose(out, (0, 3, 1, 2))


# ----------------------------- parameter init --------------------------------
def init_params(key, kernel_size, in_size, expand_size, out_size, reduction=4):
    ks = jax.random.split(key, 12)

    def bn(k, c):
        k1, k2, k3, k4 = jax.random.split(k, 4)
        gamma = jax.random.uniform(k1, (c,), minval=0.5, maxval=1.5)
        beta = jax.random.normal(k2, (c,)) * 0.1
        mean = jax.random.normal(k3, (c,)) * 0.1
        var = jax.random.uniform(k4, (c,), minval=0.5, maxval=1.5)
        return (gamma, beta, mean, var)

    cr = out_size // reduction
    return {
        # PyTorch conv1.weight (expand, in, 1, 1) -> stored as (in, expand)
        "w1": jax.random.normal(ks[0], (in_size, expand_size)) * 0.1,
        "bn1": bn(ks[1], expand_size),
        # PyTorch conv2.weight (expand, 1, k, k) -> stored as (k, k, expand)
        "w2": jax.random.normal(ks[2], (kernel_size, kernel_size, expand_size)) * 0.1,
        "bn2": bn(ks[3], expand_size),
        # PyTorch conv3.weight (out, expand, 1, 1) -> stored as (expand, out)
        "w3": jax.random.normal(ks[4], (expand_size, out_size)) * 0.1,
        "bn3": bn(ks[5], out_size),
        # SE module: SeModule(out_size, reduction=4)
        "w_se1": jax.random.normal(ks[6], (out_size, cr)) * 0.1,
        "bn_se1": bn(ks[7], cr),
        "w_se2": jax.random.normal(ks[8], (cr, out_size)) * 0.1,
        "bn_se2": bn(ks[9], out_size),
        # shortcut conv (used when stride == 1 and in_size != out_size)
        "w_sc": jax.random.normal(ks[10], (in_size, out_size)) * 0.1,
        "bn_sc": bn(ks[11], out_size),
    }


if __name__ == "__main__":
    # Block(kernel_size, in_size, expand_size, out_size, nolinear=hswish(),
    #       semodule=SeModule(out_size), stride)
    configs = [
        # (kernel_size, in_size, expand_size, out_size, stride)
        (3, 16, 32, 24, 1),   # stride-1, in != out  -> conv+BN shortcut
        (3, 16, 32, 16, 1),   # stride-1, in == out  -> identity shortcut
        (5, 16, 32, 24, 1),   # 5x5 depthwise
    ]
    N, H, W = 2, 16, 16

    key = jax.random.PRNGKey(0)
    for (ksz, cin, cexp, cout, stride) in configs:
        key, kx, kp = jax.random.split(key, 3)
        x = jax.random.normal(kx, (N, cin, H, W), dtype=jnp.float32)   # NCHW
        params = init_params(kp, ksz, cin, cexp, cout)

        out = block_forward(x, params, kernel_size=ksz, stride=stride)
        out = jax.block_until_ready(out)

        ref = block_reference(x, params, kernel_size=ksz, stride=stride)
        p = ksz // 2
        ho = (H + 2 * p - ksz) // stride + 1
        assert out.shape == ref.shape == (N, cout, ho, ho), (out.shape, ref.shape)
        max_err = float(jnp.max(jnp.abs(out - ref)))
        assert max_err < 1e-2, f"mismatch vs reference: max abs err {max_err}"

    print("KERNEL_OK")
</pallas_src>

<mosaic_0001>
module attributes {stable_mosaic.version = 11 : i64} {
  func.func @_block_kernel(%arg0: i32, %arg1: memref<1x256x16xf32, #tpu.memory_space<vmem>>, %arg2: memref<16x32xf32, #tpu.memory_space<vmem>>, %arg3: memref<1x32xf32, #tpu.memory_space<vmem>>, %arg4: memref<3x3x32xf32, #tpu.memory_space<vmem>>, %arg5: memref<1x32xf32, #tpu.memory_space<vmem>>, %arg6: memref<32x24xf32, #tpu.memory_space<vmem>>, %arg7: memref<1x24xf32, #tpu.memory_space<vmem>>, %arg8: memref<24x6xf32, #tpu.memory_space<vmem>>, %arg9: memref<1x6xf32, #tpu.memory_space<vmem>>, %arg10: memref<6x24xf32, #tpu.memory_space<vmem>>, %arg11: memref<1x24xf32, #tpu.memory_space<vmem>>, %arg12: memref<16x24xf32, #tpu.memory_space<vmem>>, %arg13: memref<1x24xf32, #tpu.memory_space<vmem>>, %arg14: memref<1x256x24xf32, #tpu.memory_space<vmem>>, %arg15: memref<18x18x32xf32, #tpu.memory_space<vmem>>) attributes {dimension_semantics = [#tpu.dimension_semantics<parallel>], iteration_bounds = array<i64: 2>, scalar_prefetch = 0 : i64, scratch_operands = 1 : i64, tpu.core_type = #tpu.core_type<tc>, window_params = [{transform_indices = @transform_0, window_bounds = array<i64: 1, 256, 16>}, {pipeline_mode = #tpu.pipeline_mode<synchronous>, transform_indices = @transform_1, window_bounds = array<i64: 16, 32>}, {pipeline_mode = #tpu.pipeline_mode<synchronous>, transform_indices = @transform_2, window_bounds = array<i64: 1, 32>}, {pipeline_mode = #tpu.pipeline_mode<synchronous>, transform_indices = @transform_3, window_bounds = array<i64: 3, 3, 32>}, {pipeline_mode = #tpu.pipeline_mode<synchronous>, transform_indices = @transform_4, window_bounds = array<i64: 1, 32>}, {pipeline_mode = #tpu.pipeline_mode<synchronous>, transform_indices = @transform_5, window_bounds = array<i64: 32, 24>}, {pipeline_mode = #tpu.pipeline_mode<synchronous>, transform_indices = @transform_6, window_bounds = array<i64: 1, 24>}, {pipeline_mode = #tpu.pipeline_mode<synchronous>, transform_indices = @transform_7, window_bounds = array<i64: 24, 6>}, {pipeline_mode = #tpu.pipeline_mode<synchronous>, transform_indices = @transform_8, window_bounds = array<i64: 1, 6>}, {pipeline_mode = #tpu.pipeline_mode<synchronous>, transform_indices = @transform_9, window_bounds = array<i64: 6, 24>}, {pipeline_mode = #tpu.pipeline_mode<synchronous>, transform_indices = @transform_10, window_bounds = array<i64: 1, 24>}, {pipeline_mode = #tpu.pipeline_mode<synchronous>, transform_indices = @transform_11, window_bounds = array<i64: 16, 24>}, {pipeline_mode = #tpu.pipeline_mode<synchronous>, transform_indices = @transform_12, window_bounds = array<i64: 1, 24>}, {transform_indices = @transform_13, window_bounds = array<i64: 1, 256, 24>}]} {
    %c0 = arith.constant 0 : index
    %c0_0 = arith.constant 0 : index
    %c0_1 = arith.constant 0 : index
    %0 = vector.load %arg1[%c0, %c0_0, %c0_1] : memref<1x256x16xf32, #tpu.memory_space<vmem>>, vector<1x256x16xf32>
    %1 = vector.shape_cast %0 : vector<1x256x16xf32> to vector<256x16xf32>
    %c0_2 = arith.constant 0 : index
    %c0_3 = arith.constant 0 : index
    %2 = vector.load %arg2[%c0_2, %c0_3] : memref<16x32xf32, #tpu.memory_space<vmem>>, vector<16x32xf32>
    %cst = arith.constant dense<0.000000e+00> : vector<256x32xf32>
    %3 = tpu.matmul %1, %2, %cst {dimension_numbers = #tpu.dot_dimension_numbers<[1], [0], [0], [1], [0, 0, 1, 1], [], []>} : vector<256x16xf32>, vector<16x32xf32>, vector<256x32xf32> -> vector<256x32xf32>
    %c0_4 = arith.constant 0 : index
    %c0_5 = arith.constant 0 : index
    %4 = vector.load %arg3[%c0_4, %c0_5] : memref<1x32xf32, #tpu.memory_space<vmem>>, vector<1x32xf32>
    %5 = vector.broadcast %4 : vector<1x32xf32> to vector<256x32xf32>
    %6 = arith.addf %3, %5 : vector<256x32xf32>
    %cst_6 = arith.constant 3.000000e+00 : f32
    %7 = vector.broadcast %cst_6 : f32 to vector<256x32xf32>
    %8 = arith.addf %6, %7 : vector<256x32xf32>
    %cst_7 = arith.constant 0.000000e+00 : f32
    %cst_8 = arith.constant 6.000000e+00 : f32
    %9 = vector.broadcast %cst_7 : f32 to vector<256x32xf32>
    %10 = arith.maximumf %9, %8 : vector<256x32xf32>
    %11 = vector.broadcast %cst_8 : f32 to vector<256x32xf32>
    %12 = arith.minimumf %11, %10 : vector<256x32xf32>
    %cst_9 = arith.constant 0.166666672 : f32
    %13 = vector.broadcast %cst_9 : f32 to vector<256x32xf32>
    %14 = arith.mulf %12, %13 : vector<256x32xf32>
    %15 = arith.mulf %6, %14 : vector<256x32xf32>
    %cst_10 = arith.constant 0.000000e+00 : f32
    %16 = vector.broadcast %cst_10 : f32 to vector<18x18x32xf32>
    %c0_11 = arith.constant 0 : index
    %c0_12 = arith.constant 0 : index
    %c0_13 = arith.constant 0 : index
    %17 = vector.load %arg15[%c0_11, %c0_12, %c0_13] : memref<18x18x32xf32, #tpu.memory_space<vmem>>, vector<18x18x32xf32>
    tpu.vector_store %arg15[%c0_11, %c0_12, %c0_13], %16 {strides = array<i32>} : memref<18x18x32xf32, #tpu.memory_space<vmem>>, vector<18x18x32xf32>,
    %18 = vector.shape_cast %15 : vector<256x32xf32> to vector<16x16x32xf32>
    %c1 = arith.constant 1 : index
    %c1_14 = arith.constant 1 : index
    %c0_15 = arith.constant 0 : index
    %19 = vector.load %arg15[%c1, %c1_14, %c0_15] : memref<18x18x32xf32, #tpu.memory_space<vmem>>, vector<16x16x32xf32>
    tpu.vector_store %arg15[%c1, %c1_14, %c0_15], %18 {strides = array<i32>} : memref<18x18x32xf32, #tpu.memory_space<vmem>>, vector<16x16x32xf32>,
    %cst_16 = arith.constant 0.000000e+00 : f32
    %20 = vector.broadcast %cst_16 : f32 to vector<16x16x32xf32>
    %c0_17 = arith.constant 0 : index
    %c0_18 = arith.constant 0 : index
    %c0_19 = arith.constant 0 : index
    %21 = vector.load %arg15[%c0_17, %c0_18, %c0_19] : memref<18x18x32xf32, #tpu.memory_space<vmem>>, vector<16x16x32xf32>
    %c0_20 = arith.constant 0 : index
    %c0_21 = arith.constant 0 : index
    %c0_22 = arith.constant 0 : index
    %22 = vector.load %arg4[%c0_20, %c0_21, %c0_22] : memref<3x3x32xf32, #tpu.memory_space<vmem>>, vector<1x1x32xf32>
    %23 = vector.shape_cast %22 : vector<1x1x32xf32> to vector<32xf32>
    %24 = vector.shape_cast %23 : vector<32xf32> to vector<1x1x32xf32>
    %25 = vector.broadcast %24 : vector<1x1x32xf32> to vector<16x16x32xf32>
    %26 = arith.mulf %21, %25 : vector<16x16x32xf32>
    %27 = arith.addf %20, %26 : vector<16x16x32xf32>
    %c0_23 = arith.constant 0 : index
    %c1_24 = arith.constant 1 : index
    %c0_25 = arith.constant 0 : index
    %28 = vector.load %arg15[%c0_23, %c1_24, %c0_25] : memref<18x18x32xf32, #tpu.memory_space<vmem>>, vector<16x16x32xf32>
    %c0_26 = arith.constant 0 : index
    %c1_27 = arith.constant 1 : index
    %c0_28 = arith.constant 0 : index
    %29 = vector.load %arg4[%c0_26, %c1_27, %c0_28] : memref<3x3x32xf32, #tpu.memory_space<vmem>>, vector<1x1x32xf32>
    %30 = vector.shape_cast %29 : vector<1x1x32xf32> to vector<32xf32>
    %31 = vector.shape_cast %30 : vector<32xf32> to vector<1x1x32xf32>
    %32 = vector.broadcast %31 : vector<1x1x32xf32> to vector<16x16x32xf32>
    %33 = arith.mulf %28, %32 : vector<16x16x32xf32>
    %34 = arith.addf %27, %33 : vector<16x16x32xf32>
    %c0_29 = arith.constant 0 : index
    %c2 = arith.constant 2 : index
    %c0_30 = arith.constant 0 : index
    %35 = vector.load %arg15[%c0_29, %c2, %c0_30] : memref<18x18x32xf32, #tpu.memory_space<vmem>>, vector<16x16x32xf32>
    %c0_31 = arith.constant 0 : index
    %c2_32 = arith.constant 2 : index
    %c0_33 = arith.constant 0 : index
    %36 = vector.load %arg4[%c0_31, %c2_32, %c0_33] : memref<3x3x32xf32, #tpu.memory_space<vmem>>, vector<1x1x32xf32>
    %37 = vector.shape_cast %36 : vector<1x1x32xf32> to vector<32xf32>
    %38 = vector.shape_cast %37 : vector<32xf32> to vector<1x1x32xf32>
    %39 = vector.broadcast %38 : vector<1x1x32xf32> to vector<16x16x32xf32>
    %40 = arith.mulf %35, %39 : vector<16x16x32xf32>
    %41 = arith.addf %34, %40 : vector<16x16x32xf32>
    %c1_34 = arith.constant 1 : index
    %c0_35 = arith.constant 0 : index
    %c0_36 = arith.constant 0 : index
    %42 = vector.load %arg15[%c1_34, %c0_35, %c0_36] : memref<18x18x32xf32, #tpu.memory_space<vmem>>, vector<16x16x32xf32>
    %c1_37 = arith.constant 1 : index
    %c0_38 = arith.constant 0 : index
    %c0_39 = arith.constant 0 : index
    %43 = vector.load %arg4[%c1_37, %c0_38, %c0_39] : memref<3x3x32xf32, #tpu.memory_space<vmem>>, vector<1x1x32xf32>
    %44 = vector.shape_cast %43 : vector<1x1x32xf32> to vector<32xf32>
    %45 = vector.shape_cast %44 : vector<32xf32> to vector<1x1x32xf32>
    %46 = vector.broadcast %45 : vector<1x1x32xf32> to vector<16x16x32xf32>
    %47 = arith.mulf %42, %46 : vector<16x16x32xf32>
    %48 = arith.addf %41, %47 : vector<16x16x32xf32>
    %c1_40 = arith.constant 1 : index
    %c1_41 = arith.constant 1 : index
    %c0_42 = arith.constant 0 : index
    %49 = vector.load %arg15[%c1_40, %c1_41, %c0_42] : memref<18x18x32xf32, #tpu.memory_space<vmem>>, vector<16x16x32xf32>
    %c1_43 = arith.constant 1 : index
    %c1_44 = arith.constant 1 : index
    %c0_45 = arith.constant 0 : index
    %50 = vector.load %arg4[%c1_43, %c1_44, %c0_45] : memref<3x3x32xf32, #tpu.memory_space<vmem>>, vector<1x1x32xf32>
    %51 = vector.shape_cast %50 : vector<1x1x32xf32> to vector<32xf32>
    %52 = vector.shape_cast %51 : vector<32xf32> to vector<1x1x32xf32>
    %53 = vector.broadcast %52 : vector<1x1x32xf32> to vector<16x16x32xf32>
    %54 = arith.mulf %49, %53 : vector<16x16x32xf32>
    %55 = arith.addf %48, %54 : vector<16x16x32xf32>
    %c1_46 = arith.constant 1 : index
    %c2_47 = arith.constant 2 : index
    %c0_48 = arith.constant 0 : index
    %56 = vector.load %arg15[%c1_46, %c2_47, %c0_48] : memref<18x18x32xf32, #tpu.memory_space<vmem>>, vector<16x16x32xf32>
    %c1_49 = arith.constant 1 : index
    %c2_50 = arith.constant 2 : index
    %c0_51 = arith.constant 0 : index
    %57 = vector.load %arg4[%c1_49, %c2_50, %c0_51] : memref<3x3x32xf32, #tpu.memory_space<vmem>>, vector<1x1x32xf32>
    %58 = vector.shape_cast %57 : vector<1x1x32xf32> to vector<32xf32>
    %59 = vector.shape_cast %58 : vector<32xf32> to vector<1x1x32xf32>
    %60 = vector.broadcast %59 : vector<1x1x32xf32> to vector<16x16x32xf32>
    %61 = arith.mulf %56, %60 : vector<16x16x32xf32>
    %62 = arith.addf %55, %61 : vector<16x16x32xf32>
    %c2_52 = arith.constant 2 : index
    %c0_53 = arith.constant 0 : index
    %c0_54 = arith.constant 0 : index
    %63 = vector.load %arg15[%c2_52, %c0_53, %c0_54] : memref<18x18x32xf32, #tpu.memory_space<vmem>>, vector<16x16x32xf32>
    %c2_55 = arith.constant 2 : index
    %c0_56 = arith.constant 0 : index
    %c0_57 = arith.constant 0 : index
    %64 = vector.load %arg4[%c2_55, %c0_56, %c0_57] : memref<3x3x32xf32, #tpu.memory_space<vmem>>, vector<1x1x32xf32>
    %65 = vector.shape_cast %64 : vector<1x1x32xf32> to vector<32xf32>
    %66 = vector.shape_cast %65 : vector<32xf32> to vector<1x1x32xf32>
    %67 = vector.broadcast %66 : vector<1x1x32xf32> to vector<16x16x32xf32>
    %68 = arith.mulf %63, %67 : vector<16x16x32xf32>
    %69 = arith.addf %62, %68 : vector<16x16x32xf32>
    %c2_58 = arith.constant 2 : index
    %c1_59 = arith.constant 1 : index
    %c0_60 = arith.constant 0 : index
    %70 = vector.load %arg15[%c2_58, %c1_59, %c0_60] : memref<18x18x32xf32, #tpu.memory_space<vmem>>, vector<16x16x32xf32>
    %c2_61 = arith.constant 2 : index
    %c1_62 = arith.constant 1 : index
    %c0_63 = arith.constant 0 : index
    %71 = vector.load %arg4[%c2_61, %c1_62, %c0_63] : memref<3x3x32xf32, #tpu.memory_space<vmem>>, vector<1x1x32xf32>
    %72 = vector.shape_cast %71 : vector<1x1x32xf32> to vector<32xf32>
    %73 = vector.shape_cast %72 : vector<32xf32> to vector<1x1x32xf32>
    %74 = vector.broadcast %73 : vector<1x1x32xf32> to vector<16x16x32xf32>
    %75 = arith.mulf %70, %74 : vector<16x16x32xf32>
    %76 = arith.addf %69, %75 : vector<16x16x32xf32>
    %c2_64 = arith.constant 2 : index
    %c2_65 = arith.constant 2 : index
    %c0_66 = arith.constant 0 : index
    %77 = vector.load %arg15[%c2_64, %c2_65, %c0_66] : memref<18x18x32xf32, #tpu.memory_space<vmem>>, vector<16x16x32xf32>
    %c2_67 = arith.constant 2 : index
    %c2_68 = arith.constant 2 : index
    %c0_69 = arith.constant 0 : index
    %78 = vector.load %arg4[%c2_67, %c2_68, %c0_69] : memref<3x3x32xf32, #tpu.memory_space<vmem>>, vector<1x1x32xf32>
    %79 = vector.shape_cast %78 : vector<1x1x32xf32> to vector<32xf32>
    %80 = vector.shape_cast %79 : vector<32xf32> to vector<1x1x32xf32>
    %81 = vector.broadcast %80 : vector<1x1x32xf32> to vector<16x16x32xf32>
    %82 = arith.mulf %77, %81 : vector<16x16x32xf32>
    %83 = arith.addf %76, %82 : vector<16x16x32xf32>
    %c0_70 = arith.constant 0 : index
    %c0_71 = arith.constant 0 : index
    %84 = vector.load %arg5[%c0_70, %c0_71] : memref<1x32xf32, #tpu.memory_space<vmem>>, vector<1x32xf32>
    %85 = vector.shape_cast %84 : vector<1x32xf32> to vector<1x1x32xf32>
    %86 = vector.broadcast %85 : vector<1x1x32xf32> to vector<16x16x32xf32>
    %87 = arith.addf %83, %86 : vector<16x16x32xf32>
    %cst_72 = arith.constant 3.000000e+00 : f32
    %88 = vector.broadcast %cst_72 : f32 to vector<16x16x32xf32>
    %89 = arith.addf %87, %88 : vector<16x16x32xf32>
    %cst_73 = arith.constant 0.000000e+00 : f32
    %cst_74 = arith.constant 6.000000e+00 : f32
    %90 = vector.broadcast %cst_73 : f32 to vector<16x16x32xf32>
    %91 = arith.maximumf %90, %89 : vector<16x16x32xf32>
    %92 = vector.broadcast %cst_74 : f32 to vector<16x16x32xf32>
    %93 = arith.minimumf %92, %91 : vector<16x16x32xf32>
    %cst_75 = arith.constant 0.166666672 : f32
    %94 = vector.broadcast %cst_75 : f32 to vector<16x16x32xf32>
    %95 = arith.mulf %93, %94 : vector<16x16x32xf32>
    %96 = arith.mulf %87, %95 : vector<16x16x32xf32>
    %97 = vector.shape_cast %96 : vector<16x16x32xf32> to vector<256x32xf32>
    %c0_76 = arith.constant 0 : index
    %c0_77 = arith.constant 0 : index
    %98 = vector.load %arg6[%c0_76, %c0_77] : memref<32x24xf32, #tpu.memory_space<vmem>>, vector<32x24xf32>
    %cst_78 = arith.constant dense<0.000000e+00> : vector<256x24xf32>
    %99 = tpu.matmul %97, %98, %cst_78 {dimension_numbers = #tpu.dot_dimension_numbers<[1], [0], [0], [1], [0, 0, 1, 1], [], []>} : vector<256x32xf32>, vector<32x24xf32>, vector<256x24xf32> -> vector<256x24xf32>
    %c0_79 = arith.constant 0 : index
    %c0_80 = arith.constant 0 : index
    %100 = vector.load %arg7[%c0_79, %c0_80] : memref<1x24xf32, #tpu.memory_space<vmem>>, vector<1x24xf32>
    %101 = vector.broadcast %100 : vector<1x24xf32> to vector<256x24xf32>
    %102 = arith.addf %99, %101 : vector<256x24xf32>
    %cst_81 = arith.constant 3.906250e-03 : f32
    %103 = vector.broadcast %cst_81 : f32 to vector<1x256xf32>
    %cst_82 = arith.constant dense<0.000000e+00> : vector<1x24xf32>
    %104 = tpu.matmul %103, %102, %cst_82 {dimension_numbers = #tpu.dot_dimension_numbers<[1], [0], [0], [1], [0, 0, 1, 1], [], []>} : vector<1x256xf32>, vector<256x24xf32>, vector<1x24xf32> -> vector<1x24xf32>
    %c0_83 = arith.constant 0 : index
    %c0_84 = arith.constant 0 : index
    %105 = vector.load %arg8[%c0_83, %c0_84] : memref<24x6xf32, #tpu.memory_space<vmem>>, vector<24x6xf32>
    %cst_85 = arith.constant dense<0.000000e+00> : vector<1x6xf32>
    %106 = tpu.matmul %104, %105, %cst_85 {dimension_numbers = #tpu.dot_dimension_numbers<[1], [0], [0], [1], [0, 0, 1, 1], [], []>} : vector<1x24xf32>, vector<24x6xf32>, vector<1x6xf32> -> vector<1x6xf32>
    %c0_86 = arith.constant 0 : index
    %c0_87 = arith.constant 0 : index
    %107 = vector.load %arg9[%c0_86, %c0_87] : memref<1x6xf32, #tpu.memory_space<vmem>>, vector<1x6xf32>
    %108 = arith.addf %106, %107 : vector<1x6xf32>
    %cst_88 = arith.constant 0.000000e+00 : f32
    %109 = vector.broadcast %cst_88 : f32 to vector<1x6xf32>
    %110 = arith.maximumf %108, %109 : vector<1x6xf32>
    %c0_89 = arith.constant 0 : index
    %c0_90 = arith.constant 0 : index
    %111 = vector.load %arg10[%c0_89, %c0_90] : memref<6x24xf32, #tpu.memory_space<vmem>>, vector<6x24xf32>
    %cst_91 = arith.constant dense<0.000000e+00> : vector<1x24xf32>
    %112 = tpu.matmul %110, %111, %cst_91 {dimension_numbers = #tpu.dot_dimension_numbers<[1], [0], [0], [1], [0, 0, 1, 1], [], []>} : vector<1x6xf32>, vector<6x24xf32>, vector<1x24xf32> -> vector<1x24xf32>
    %c0_92 = arith.constant 0 : index
    %c0_93 = arith.constant 0 : index
    %113 = vector.load %arg11[%c0_92, %c0_93] : memref<1x24xf32, #tpu.memory_space<vmem>>, vector<1x24xf32>
    %114 = arith.addf %112, %113 : vector<1x24xf32>
    %cst_94 = arith.constant 3.000000e+00 : f32
    %115 = vector.broadcast %cst_94 : f32 to vector<1x24xf32>
    %116 = arith.addf %114, %115 : vector<1x24xf32>
    %cst_95 = arith.constant 0.000000e+00 : f32
    %cst_96 = arith.constant 6.000000e+00 : f32
    %117 = vector.broadcast %cst_95 : f32 to vector<1x24xf32>
    %118 = arith.maximumf %117, %116 : vector<1x24xf32>
    %119 = vector.broadcast %cst_96 : f32 to vector<1x24xf32>
    %120 = arith.minimumf %119, %118 : vector<1x24xf32>
    %cst_97 = arith.constant 0.166666672 : f32
    %121 = vector.broadcast %cst_97 : f32 to vector<1x24xf32>
    %122 = arith.mulf %120, %121 : vector<1x24xf32>
    %123 = vector.broadcast %122 : vector<1x24xf32> to vector<256x24xf32>
    %124 = arith.mulf %102, %123 : vector<256x24xf32>
    %c0_98 = arith.constant 0 : index
    %c0_99 = arith.constant 0 : index
    %125 = vector.load %arg12[%c0_98, %c0_99] : memref<16x24xf32, #tpu.memory_space<vmem>>, vector<16x24xf32>
    %cst_100 = arith.constant dense<0.000000e+00> : vector<256x24xf32>
    %126 = tpu.matmul %1, %125, %cst_100 {dimension_numbers = #tpu.dot_dimension_numbers<[1], [0], [0], [1], [0, 0, 1, 1], [], []>} : vector<256x16xf32>, vector<16x24xf32>, vector<256x24xf32> -> vector<256x24xf32>
    %c0_101 = arith.constant 0 : index
    %c0_102 = arith.constant 0 : index
    %127 = vector.load %arg13[%c0_101, %c0_102] : memref<1x24xf32, #tpu.memory_space<vmem>>, vector<1x24xf32>
    %128 = vector.broadcast %127 : vector<1x24xf32> to vector<256x24xf32>
    %129 = arith.addf %126, %128 : vector<256x24xf32>
    %130 = arith.addf %124, %129 : vector<256x24xf32>
    %c0_103 = arith.constant 0 : index
    %c0_104 = arith.constant 0 : index
    %c0_105 = arith.constant 0 : index
    %131 = vector.load %arg14[%c0_103, %c0_104, %c0_105] : memref<1x256x24xf32, #tpu.memory_space<vmem>>, vector<1x256x24xf32>
    %132 = vector.shape_cast %131 : vector<1x256x24xf32> to vector<256x24xf32>
    %133 = vector.shape_cast %130 : vector<256x24xf32> to vector<1x256x24xf32>
    tpu.vector_store %arg14[%c0_103, %c0_104, %c0_105], %133 {strides = array<i32>} : memref<1x256x24xf32, #tpu.memory_space<vmem>>, vector<1x256x24xf32>,
    return
  }
  func.func @transform_0(%arg0: i32) -> (i32, i32, i32) {
    %c0_i32 = arith.constant 0 : i32
    %c0_i32_0 = arith.constant 0 : i32
    %c0_i32_1 = arith.constant 0 : i32
    return %arg0, %c0_i32, %c0_i32_0 : i32, i32, i32
  }
  func.func @transform_1(%arg0: i32) -> (i32, i32) {
    %c0_i32 = arith.constant 0 : i32
    %c0_i32_0 = arith.constant 0 : i32
    %c0_i32_1 = arith.constant 0 : i32
    return %c0_i32, %c0_i32_0 : i32, i32
  }
  func.func @transform_2(%arg0: i32) -> (i32, i32) {
    %c0_i32 = arith.constant 0 : i32
    %c0_i32_0 = arith.constant 0 : i32
    %c0_i32_1 = arith.constant 0 : i32
    return %c0_i32, %c0_i32_0 : i32, i32
  }
  func.func @transform_3(%arg0: i32) -> (i32, i32, i32) {
    %c0_i32 = arith.constant 0 : i32
    %c0_i32_0 = arith.constant 0 : i32
    %c0_i32_1 = arith.constant 0 : i32
    %c0_i32_2 = arith.constant 0 : i32
    return %c0_i32, %c0_i32_0, %c0_i32_1 : i32, i32, i32
  }
  func.func @transform_4(%arg0: i32) -> (i32, i32) {
    %c0_i32 = arith.constant 0 : i32
    %c0_i32_0 = arith.constant 0 : i32
    %c0_i32_1 = arith.constant 0 : i32
    return %c0_i32, %c0_i32_0 : i32, i32
  }
  func.func @transform_5(%arg0: i32) -> (i32, i32) {
    %c0_i32 = arith.constant 0 : i32
    %c0_i32_0 = arith.constant 0 : i32
    %c0_i32_1 = arith.constant 0 : i32
    return %c0_i32, %c0_i32_0 : i32, i32
  }
  func.func @transform_6(%arg0: i32) -> (i32, i32) {
    %c0_i32 = arith.constant 0 : i32
    %c0_i32_0 = arith.constant 0 : i32
    %c0_i32_1 = arith.constant 0 : i32
    return %c0_i32, %c0_i32_0 : i32, i32
  }
  func.func @transform_7(%arg0: i32) -> (i32, i32) {
    %c0_i32 = arith.constant 0 : i32
    %c0_i32_0 = arith.constant 0 : i32
    %c0_i32_1 = arith.constant 0 : i32
    return %c0_i32, %c0_i32_0 : i32, i32
  }
  func.func @transform_8(%arg0: i32) -> (i32, i32) {
    %c0_i32 = arith.constant 0 : i32
    %c0_i32_0 = arith.constant 0 : i32
    %c0_i32_1 = arith.constant 0 : i32
    return %c0_i32, %c0_i32_0 : i32, i32
  }
  func.func @transform_9(%arg0: i32) -> (i32, i32) {
    %c0_i32 = arith.constant 0 : i32
    %c0_i32_0 = arith.constant 0 : i32
    %c0_i32_1 = arith.constant 0 : i32
    return %c0_i32, %c0_i32_0 : i32, i32
  }
  func.func @transform_10(%arg0: i32) -> (i32, i32) {
    %c0_i32 = arith.constant 0 : i32
    %c0_i32_0 = arith.constant 0 : i32
    %c0_i32_1 = arith.constant 0 : i32
    return %c0_i32, %c0_i32_0 : i32, i32
  }
  func.func @transform_11(%arg0: i32) -> (i32, i32) {
    %c0_i32 = arith.constant 0 : i32
    %c0_i32_0 = arith.constant 0 : i32
    %c0_i32_1 = arith.constant 0 : i32
    return %c0_i32, %c0_i32_0 : i32, i32
  }
  func.func @transform_12(%arg0: i32) -> (i32, i32) {
    %c0_i32 = arith.constant 0 : i32
    %c0_i32_0 = arith.constant 0 : i32
    %c0_i32_1 = arith.constant 0 : i32
    return %c0_i32, %c0_i32_0 : i32, i32
  }
  func.func @transform_13(%arg0: i32) -> (i32, i32, i32) {
    %c0_i32 = arith.constant 0 : i32
    %c0_i32_0 = arith.constant 0 : i32
    %c0_i32_1 = arith.constant 0 : i32
    return %arg0, %c0_i32, %c0_i32_0 : i32, i32, i32
  }
}

</mosaic_0001>

<llo_original>
// kernel: block_forward.1
$region0: #{block_forward.1}
  #allocation0 [shape = 'u32[]', space=smem, size = 0x4, offset = 0x4, fixed_abs, tag = 'smem constant byte address 0x4 - core index']
  #allocation1 [shape = 'u32[144,128]{1,0:T(1,128)}', space=vmem, size = 0x12000, scoped, tag = 'internal scratch']
  #allocation2 [shape = 'f32[18,18,32]{2,1,0:T(8,128)}', space=vmem, size = 0x36000, scoped, tag = 'scratch operand']
  %s0 = inlined_call_operand.vmem [shape: f32[2,256,16], index: 0, kind: input, shape index: {}]
  %s1 = inlined_call_operand.vmem [shape: f32[16,32], index: 1, kind: input, shape index: {}]
  %s2 = inlined_call_operand.vmem [shape: f32[1,32], index: 2, kind: input, shape index: {}]
  %s3 = inlined_call_operand.vmem [shape: f32[3,3,32], index: 3, kind: input, shape index: {}]
  %s4 = inlined_call_operand.vmem [shape: f32[1,32], index: 4, kind: input, shape index: {}]
  %s5 = inlined_call_operand.vmem [shape: f32[32,24], index: 5, kind: input, shape index: {}]
  %s6 = inlined_call_operand.vmem [shape: f32[1,24], index: 6, kind: input, shape index: {}]
  %s7 = inlined_call_operand.vmem [shape: f32[24,6], index: 7, kind: input, shape index: {}]
  %s8 = inlined_call_operand.vmem [shape: f32[1,6], index: 8, kind: input, shape index: {}]
  %s9 = inlined_call_operand.vmem [shape: f32[6,24], index: 9, kind: input, shape index: {}]
  %s10 = inlined_call_operand.vmem [shape: f32[1,24], index: 10, kind: input, shape index: {}]
  %s11 = inlined_call_operand.vmem [shape: f32[16,24], index: 11, kind: input, shape index: {}]
  %s12 = inlined_call_operand.vmem [shape: f32[1,24], index: 12, kind: input, shape index: {}]
  %s13 = inlined_call_operand.hbm [shape: f32[2,256,24], index: 13, kind: output, shape index: {}]
  %s14 = sld [smem:[#allocation0]]
  $region85: #{block_forward.1} parent=0
    _
  %s16 = ssub.s32 1, %s14
  %s17 = scalar_select 0, %s16, %s14
  $region1: #{block_forward.1} parent=0
    #allocation3 [shape = 'u8[262144]{0}', space=vmem, size = 0x40000, scoped, tag = 'output window, operand 0']
    #allocation4 [shape = 's32[2]{0}', space=sflag, size = 0x8, scoped, tag = 'scoped memory for block_forward.1']
    %18 = vsyncpa [#allocation4], 0
    %s19 = scalar_lea.sflag [#allocation4], 1
    %20 = vsyncpa %s19, 0
    loop: start=0, step=1, limit=4
    $region2: #{block_forward.1} parent=1 // loop_pre_header
      _
    $region3: #{block_forward.1} parent=1 // loop_header
      %s22 = sphi 0, %s26
      %p23 = scmp.ge.s32.totalorder %s22, 4
      %s32 = sphi 0, %s34
      %s35 = sphi 0, %s32
      %s36 = sphi 0, %s35
      %s52 = sphi 0, %s36
      %s56 = sphi 0, %s56
      %s58 = sphi 0, %s56
      %s59 = sphi 0, %s58
      %s73 = sphi 0, %s59
      %s77 = sphi 0, %s77
      %s79 = sphi 0, %s77
      %s80 = sphi 0, %s79
      %s94 = sphi 0, %s80
      %s98 = sphi 0, %s98
      %s100 = sphi 0, %s98
      %s101 = sphi 0, %s100
      %s115 = sphi 0, %s101
      %s119 = sphi 0, %s119
      %s121 = sphi 0, %s119
      %s122 = sphi 0, %s121
      %s136 = sphi 0, %s122
      %s140 = sphi 0, %s140
      %s142 = sphi 0, %s140
      %s143 = sphi 0, %s142
      %s157 = sphi 0, %s143
      %s161 = sphi 0, %s161
      %s163 = sphi 0, %s161
      %s164 = sphi 0, %s163
      %s178 = sphi 0, %s164
      %s182 = sphi 0, %s182
      %s184 = sphi 0, %s182
      %s185 = sphi 0, %s184
      %s199 = sphi 0, %s185
      %s203 = sphi 0, %s203
      %s205 = sphi 0, %s203
      %s206 = sphi 0, %s205
      %s220 = sphi 0, %s206
      %s224 = sphi 0, %s224
      %s226 = sphi 0, %s224
      %s227 = sphi 0, %s226
      %s241 = sphi 0, %s227
      %s245 = sphi 0, %s245
      %s247 = sphi 0, %s245
      %s248 = sphi 0, %s247
      %s262 = sphi 0, %s248
      %s266 = sphi 0, %s266
      %s268 = sphi 0, %s266
      %s269 = sphi 0, %s268
      %s283 = sphi 0, %s269
      %s287 = sphi 0, %s287
      %s289 = sphi 0, %s287
      %s290 = sphi 0, %s289
      %s304 = sphi 0, %s290
      %s310 = sphi 0, %s312
      %s313 = sphi 0, %s310
      %s314 = sphi 0, %s313
      %s330 = sphi 0, %s314
    $region4: #{block_forward.1} parent=1 // loop_header_branch
      %25 = sbr.rel (%p23) target = $region8
    $region5: #{block_forward.1} parent=1 // loop_body
      %s27 = ssub.s32 %s22, 1
      %s28 = ssub.s32 %s22, 2
      %s29 = sadd.s32 %s22, 1
      %s30 = ssub.s32 %s22, %s29
      %p31 = scmp.eq.s32.totalorder %s30, 0
      %s33 = sadd.s32 %s32, 1
      %s34 = scalar_select %p31, %s32, %s33
      %p37 = pneg %p31
      %p38 = scmp.eq.s32.totalorder %s22, 1
      %p39 = por %p37, %p38
      %p40 = scmp.ne.s32.totalorder %s32, %s35
      %p41 = scmp.eq.s32.totalorder %s22, 0
      %p42 = por %p40, %p41
      %p43 = scmp.ne.s32.totalorder %s32, %s35
      %p44 = scmp.eq.s32.totalorder %s27, 1
      %p45 = por %p43, %p44
      %p46 = scmp.ne.s32.totalorder %s35, %s36
      %p47 = scmp.eq.s32.totalorder %s27, 0
      %p48 = por %p46, %p47
      %p49 = scmp.ne.s32.totalorder %s35, %s36
      %p50 = scmp.eq.s32.totalorder %s28, 1
      %p51 = por %p49, %p50
      %p53 = scmp.ne.s32.totalorder %s36, %s52
      %p54 = scmp.eq.s32.totalorder %s28, 0
      %p55 = por %p53, %p54
      %s57 = sadd.s32 %s56, 1
      %p60 = scmp.eq.s32.totalorder %s22, 1
      %p61 = scmp.ne.s32.totalorder %s56, %s58
      %p62 = scmp.eq.s32.totalorder %s22, 0
      %p63 = por %p61, %p62
      %p64 = scmp.ne.s32.totalorder %s56, %s58
      %p65 = scmp.eq.s32.totalorder %s27, 1
      %p66 = por %p64, %p65
      %p67 = scmp.ne.s32.totalorder %s58, %s59
      %p68 = scmp.eq.s32.totalorder %s27, 0
      %p69 = por %p67, %p68
      %p70 = scmp.ne.s32.totalorder %s58, %s59
      %p71 = scmp.eq.s32.totalorder %s28, 1
      %p72 = por %p70, %p71
      %p74 = scmp.ne.s32.totalorder %s59, %s73
      %p75 = scmp.eq.s32.totalorder %s28, 0
      %p76 = por %p74, %p75
      %s78 = sadd.s32 %s77, 1
      %p81 = scmp.eq.s32.totalorder %s22, 1
      %p82 = scmp.ne.s32.totalorder %s77, %s79
      %p83 = scmp.eq.s32.totalorder %s22, 0
      %p84 = por %p82, %p83
      %p85 = scmp.ne.s32.totalorder %s77, %s79
      %p86 = scmp.eq.s32.totalorder %s27, 1
      %p87 = por %p85, %p86
      %p88 = scmp.ne.s32.totalorder %s79, %s80
      %p89 = scmp.eq.s32.totalorder %s27, 0
      %p90 = por %p88, %p89
      %p91 = scmp.ne.s32.totalorder %s79, %s80
      %p92 = scmp.eq.s32.totalorder %s28, 1
      %p93 = por %p91, %p92
      %p95 = scmp.ne.s32.totalorder %s80, %s94
      %p96 = scmp.eq.s32.totalorder %s28, 0
      %p97 = por %p95, %p96
      %s99 = sadd.s32 %s98, 1
      %p102 = scmp.eq.s32.totalorder %s22, 1
      %p103 = scmp.ne.s32.totalorder %s98, %s100
      %p104 = scmp.eq.s32.totalorder %s22, 0
      %p105 = por %p103, %p104
      %p106 = scmp.ne.s32.totalorder %s98, %s100
      %p107 = scmp.eq.s32.totalorder %s27, 1
      %p108 = por %p106, %p107
      %p109 = scmp.ne.s32.totalorder %s100, %s101
      %p110 = scmp.eq.s32.totalorder %s27, 0
      %p111 = por %p109, %p110
      %p112 = scmp.ne.s32.totalorder %s100, %s101
      %p113 = scmp.eq.s32.totalorder %s28, 1
      %p114 = por %p112, %p113
      %p116 = scmp.ne.s32.totalorder %s101, %s115
      %p117 = scmp.eq.s32.totalorder %s28, 0
      %p118 = por %p116, %p117
      %s120 = sadd.s32 %s119, 1
      %p123 = scmp.eq.s32.totalorder %s22, 1
      %p124 = scmp.ne.s32.totalorder %s119, %s121
      %p125 = scmp.eq.s32.totalorder %s22, 0
      %p126 = por %p124, %p125
      %p127 = scmp.ne.s32.totalorder %s119, %s121
      %p128 = scmp.eq.s32.totalorder %s27, 1
      %p129 = por %p127, %p128
      %p130 = scmp.ne.s32.totalorder %s121, %s122
      %p131 = scmp.eq.s32.totalorder %s27, 0
      %p132 = por %p130, %p131
      %p133 = scmp.ne.s32.totalorder %s121, %s122
      %p134 = scmp.eq.s32.totalorder %s28, 1
      %p135 = por %p133, %p134
      %p137 = scmp.ne.s32.totalorder %s122, %s136
      %p138 = scmp.eq.s32.totalorder %s28, 0
      %p139 = por %p137, %p138
      %s141 = sadd.s32 %s140, 1
      %p144 = scmp.eq.s32.totalorder %s22, 1
      %p145 = scmp.ne.s32.totalorder %s140, %s142
      %p146 = scmp.eq.s32.totalorder %s22, 0
      %p147 = por %p145, %p146
      %p148 = scmp.ne.s32.totalorder %s140, %s142
      %p149 = scmp.eq.s32.totalorder %s27, 1
      %p150 = por %p148, %p149
      %p151 = scmp.ne.s32.totalorder %s142, %s143
      %p152 = scmp.eq.s32.totalorder %s27, 0
      %p153 = por %p151, %p152
      %p154 = scmp.ne.s32.totalorder %s142, %s143
      %p155 = scmp.eq.s32.totalorder %s28, 1
      %p156 = por %p154, %p155
      %p158 = scmp.ne.s32.totalorder %s143, %s157
      %p159 = scmp.eq.s32.totalorder %s28, 0
      %p160 = por %p158, %p159
      %s162 = sadd.s32 %s161, 1
      %p165 = scmp.eq.s32.totalorder %s22, 1
      %p166 = scmp.ne.s32.totalorder %s161, %s163
      %p167 = scmp.eq.s32.totalorder %s22, 0
      %p168 = por %p166, %p167
      %p169 = scmp.ne.s32.totalorder %s161, %s163
      %p170 = scmp.eq.s32.totalorder %s27, 1
      %p171 = por %p169, %p170
      %p172 = scmp.ne.s32.totalorder %s163, %s164
      %p173 = scmp.eq.s32.totalorder %s27, 0
      %p174 = por %p172, %p173
      %p175 = scmp.ne.s32.totalorder %s163, %s164
      %p176 = scmp.eq.s32.totalorder %s28, 1
      %p177 = por %p175, %p176
      %p179 = scmp.ne.s32.totalorder %s164, %s178
      %p180 = scmp.eq.s32.totalorder %s28, 0
      %p181 = por %p179, %p180
      %s183 = sadd.s32 %s182, 1
      %p186 = scmp.eq.s32.totalorder %s22, 1
      %p187 = scmp.ne.s32.totalorder %s182, %s184
      %p188 = scmp.eq.s32.totalorder %s22, 0
      %p189 = por %p187, %p188
      %p190 = scmp.ne.s32.totalorder %s182, %s184
      %p191 = scmp.eq.s32.totalorder %s27, 1
      %p192 = por %p190, %p191
      %p193 = scmp.ne.s32.totalorder %s184, %s185
      %p194 = scmp.eq.s32.totalorder %s27, 0
      %p195 = por %p193, %p194
      %p196 = scmp.ne.s32.totalorder %s184, %s185
      %p197 = scmp.eq.s32.totalorder %s28, 1
      %p198 = por %p196, %p197
      %p200 = scmp.ne.s32.totalorder %s185, %s199
      %p201 = scmp.eq.s32.totalorder %s28, 0
      %p202 = por %p200, %p201
      %s204 = sadd.s32 %s203, 1
      %p207 = scmp.eq.s32.totalorder %s22, 1
      %p208 = scmp.ne.s32.totalorder %s203, %s205
      %p209 = scmp.eq.s32.totalorder %s22, 0
      %p210 = por %p208, %p209
      %p211 = scmp.ne.s32.totalorder %s203, %s205
      %p212 = scmp.eq.s32.totalorder %s27, 1
      %p213 = por %p211, %p212
      %p214 = scmp.ne.s32.totalorder %s205, %s206
      %p215 = scmp.eq.s32.totalorder %s27, 0
      %p216 = por %p214, %p215
      %p217 = scmp.ne.s32.totalorder %s205, %s206
      %p218 = scmp.eq.s32.totalorder %s28, 1
      %p219 = por %p217, %p218
      %p221 = scmp.ne.s32.totalorder %s206, %s220
      %p222 = scmp.eq.s32.totalorder %s28, 0
      %p223 = por %p221, %p222
      %s225 = sadd.s32 %s224, 1
      %p228 = scmp.eq.s32.totalorder %s22, 1
      %p229 = scmp.ne.s32.totalorder %s224, %s226
      %p230 = scmp.eq.s32.totalorder %s22, 0
      %p231 = por %p229, %p230
      %p232 = scmp.ne.s32.totalorder %s224, %s226
      %p233 = scmp.eq.s32.totalorder %s27, 1
      %p234 = por %p232, %p233
      %p235 = scmp.ne.s32.totalorder %s226, %s227
      %p236 = scmp.eq.s32.totalorder %s27, 0
      %p237 = por %p235, %p236
      %p238 = scmp.ne.s32.totalorder %s226, %s227
      %p239 = scmp.eq.s32.totalorder %s28, 1
      %p240 = por %p238, %p239
      %p242 = scmp.ne.s32.totalorder %s227, %s241
      %p243 = scmp.eq.s32.totalorder %s28, 0
      %p244 = por %p242, %p243
      %s246 = sadd.s32 %s245, 1
      %p249 = scmp.eq.s32.totalorder %s22, 1
      %p250 = scmp.ne.s32.totalorder %s245, %s247
      %p251 = scmp.eq.s32.totalorder %s22, 0
      %p252 = por %p250, %p251
      %p253 = scmp.ne.s32.totalorder %s245, %s247
      %p254 = scmp.eq.s32.totalorder %s27, 1
      %p255 = por %p253, %p254
      %p256 = scmp.ne.s32.totalorder %s247, %s248
      %p257 = scmp.eq.s32.totalorder %s27, 0
      %p258 = por %p256, %p257
      %p259 = scmp.ne.s32.totalorder %s247, %s248
      %p260 = scmp.eq.s32.totalorder %s28, 1
      %p261 = por %p259, %p260
      %p263 = scmp.ne.s32.totalorder %s248, %s262
      %p264 = scmp.eq.s32.totalorder %s28, 0
      %p265 = por %p263, %p264
      %s267 = sadd.s32 %s266, 1
      %p270 = scmp.eq.s32.totalorder %s22, 1
      %p271 = scmp.ne.s32.totalorder %s266, %s268
      %p272 = scmp.eq.s32.totalorder %s22, 0
      %p273 = por %p271, %p272
      %p274 = scmp.ne.s32.totalorder %s266, %s268
      %p275 = scmp.eq.s32.totalorder %s27, 1
      %p276 = por %p274, %p275
      %p277 = scmp.ne.s32.totalorder %s268, %s269
      %p278 = scmp.eq.s32.totalorder %s27, 0
      %p279 = por %p277, %p278
      %p280 = scmp.ne.s32.totalorder %s268, %s269
      %p281 = scmp.eq.s32.totalorder %s28, 1
      %p282 = por %p280, %p281
      %p284 = scmp.ne.s32.totalorder %s269, %s283
      %p285 = scmp.eq.s32.totalorder %s28, 0
      %p286 = por %p284, %p285
      %s288 = sadd.s32 %s287, 1
      %p291 = scmp.eq.s32.totalorder %s22, 1
      %p292 = scmp.ne.s32.totalorder %s287, %s289
      %p293 = scmp.eq.s32.totalorder %s22, 0
      %p294 = por %p292, %p293
      %p295 = scmp.ne.s32.totalorder %s287, %s289
      %p296 = scmp.eq.s32.totalorder %s27, 1
      %p297 = por %p295, %p296
      %p298 = scmp.ne.s32.totalorder %s289, %s290
      %p299 = scmp.eq.s32.totalorder %s27, 0
      %p300 = por %p298, %p299
      %p301 = scmp.ne.s32.totalorder %s289, %s290
      %p302 = scmp.eq.s32.totalorder %s28, 1
      %p303 = por %p301, %p302
      %p305 = scmp.ne.s32.totalorder %s290, %s304
      %p306 = scmp.eq.s32.totalorder %s28, 0
      %p307 = por %p305, %p306
      %s308 = ssub.s32 %s22, %s29
      %p309 = scmp.eq.s32.totalorder %s308, 0
      %s311 = sadd.s32 %s310, 1
      %s312 = scalar_select %p309, %s310, %s311
      %p315 = pneg %p309
      %p316 = scmp.eq.s32.totalorder %s22, 1
      %p317 = por %p315, %p316
      %p318 = scmp.ne.s32.totalorder %s310, %s313
      %p319 = scmp.eq.s32.totalorder %s22, 0
      %p320 = por %p318, %p319
      %p321 = scmp.ne.s32.totalorder %s310, %s313
      %p322 = scmp.eq.s32.totalorder %s27, 1
      %p323 = por %p321, %p322
      %p324 = scmp.ne.s32.totalorder %s313, %s314
      %p325 = scmp.eq.s32.totalorder %s27, 0
      %p326 = por %p324, %p325
      %p327 = scmp.ne.s32.totalorder %s313, %s314
      %p328 = scmp.eq.s32.totalorder %s28, 1
      %p329 = por %p327, %p328
      %p331 = scmp.ne.s32.totalorder %s314, %s330
      %p332 = scmp.eq.s32.totalorder %s28, 0
      %p333 = por %p331, %p332
      %p334 = scmp.le.s32.totalorder 1, %s22
      %p335 = scmp.lt.s32.totalorder %s22, 3
      %p336 = pnand %p334, %p335
      %p337 = pneg %p336
      // Predicated region
      $region9: #{block_forward.1} parent=5 // pred_check
        _
      $region10: #{block_forward.1} parent=5 // pred_check_branch
        %339 = sbr.rel (%p336) target = $region12
      $region11: #{block_forward.1} parent=5 // pred_region
        %s340 = ssub.s32 %s22, 1
        // Predicated region
        $region13: #{block_forward.1} parent=11 // pred_check
          %p341 = pneg %p69
        $region14: #{block_forward.1} parent=11 // pred_check_branch
          %343 = sbr.rel (%p341) target = $region16
        $region15: #{block_forward.1} parent=11 // pred_region
          _
        $region16: #{block_forward.1} parent=11 // pred_fallthru
          _
        // Predicated region
        $region17: #{block_forward.1} parent=11 // pred_check
          %p344 = pneg %p90
        $region18: #{block_forward.1} parent=11 // pred_check_branch
          %346 = sbr.rel (%p344) target = $region20
        $region19: #{block_forward.1} parent=11 // pred_region
          _
        $region20: #{block_forward.1} parent=11 // pred_fallthru
          _
        // Predicated region
        $region21: #{block_forward.1} parent=11 // pred_check
          %p347 = pneg %p111
        $region22: #{block_forward.1} parent=11 // pred_check_branch
          %349 = sbr.rel (%p347) target = $region24
        $region23: #{block_forward.1} parent=11 // pred_region
          _
        $region24: #{block_forward.1} parent=11 // pred_fallthru
          _
        // Predicated region
        $region25: #{block_forward.1} parent=11 // pred_check
          %p350 = pneg %p132
        $region26: #{block_forward.1} parent=11 // pred_check_branch
          %352 = sbr.rel (%p350) target = $region28
        $region27: #{block_forward.1} parent=11 // pred_region
          _
        $region28: #{block_forward.1} parent=11 // pred_fallthru
          _
        // Predicated region
        $region29: #{block_forward.1} parent=11 // pred_check
          %p353 = pneg %p153
        $region30: #{block_forward.1} parent=11 // pred_check_branch
          %355 = sbr.rel (%p353) target = $region32
        $region31: #{block_forward.1} parent=11 // pred_region
          _
        $region32: #{block_forward.1} parent=11 // pred_fallthru
          _
        // Predicated region
        $region33: #{block_forward.1} parent=11 // pred_check
          %p356 = pneg %p174
        $region34: #{block_forward.1} parent=11 // pred_check_branch
          %358 = sbr.rel (%p356) target = $region36
        $region35: #{block_forward.1} parent=11 // pred_region
          _
        $region36: #{block_forward.1} parent=11 // pred_fallthru
          _
        // Predicated region
        $region37: #{block_forward.1} parent=11 // pred_check
          %p359 = pneg %p195
        $region38: #{block_forward.1} parent=11 // pred_check_branch
          %361 = sbr.rel (%p359) target = $region40
        $region39: #{block_forward.1} parent=11 // pred_region
          _
        $region40: #{block_forward.1} parent=11 // pred_fallthru
          _
        // Predicated region
        $region41: #{block_forward.1} parent=11 // pred_check
          %p362 = pneg %p216
        $region42: #{block_forward.1} parent=11 // pred_check_branch
          %364 = sbr.rel (%p362) target = $region44
        $region43: #{block_forward.1} parent=11 // pred_region
          _
        $region44: #{block_forward.1} parent=11 // pred_fallthru
          _
        // Predicated region
        $region45: #{block_forward.1} parent=11 // pred_check
          %p365 = pneg %p237
        $region46: #{block_forward.1} parent=11 // pred_check_branch
          %367 = sbr.rel (%p365) target = $region48
        $region47: #{block_forward.1} parent=11 // pred_region
          _
        $region48: #{block_forward.1} parent=11 // pred_fallthru
          _
        // Predicated region
        $region49: #{block_forward.1} parent=11 // pred_check
          %p368 = pneg %p258
        $region50: #{block_forward.1} parent=11 // pred_check_branch
          %370 = sbr.rel (%p368) target = $region52
        $region51: #{block_forward.1} parent=11 // pred_region
          _
        $region52: #{block_forward.1} parent=11 // pred_fallthru
          _
        // Predicated region
        $region53: #{block_forward.1} parent=11 // pred_check
          %p371 = pneg %p279
        $region54: #{block_forward.1} parent=11 // pred_check_branch
          %373 = sbr.rel (%p371) target = $region56
        $region55: #{block_forward.1} parent=11 // pred_region
          _
        $region56: #{block_forward.1} parent=11 // pred_fallthru
          _
        // Predicated region
        $region57: #{block_forward.1} parent=11 // pred_check
          %p374 = pneg %p300
        $region58: #{block_forward.1} parent=11 // pred_check_branch
          %376 = sbr.rel (%p374) target = $region60
        $region59: #{block_forward.1} parent=11 // pred_region
          _
        $region60: #{block_forward.1} parent=11 // pred_fallthru
          _
      $region12: #{block_forward.1} parent=5 // pred_fallthru
        _
      %p377 = scmp.lt.s32.totalorder %s22, 2
      // Predicated region
      $region61: #{block_forward.1} parent=5 // pred_check
        %p378 = pneg %p377
      $region62: #{block_forward.1} parent=5 // pred_check_branch
        %380 = sbr.rel (%p378) target = $region64
      $region63: #{block_forward.1} parent=5 // pred_region
        // Predicated region
        $region65: #{block_forward.1} parent=63 // pred_check
          %p381 = pneg %p42
        $region66: #{block_forward.1} parent=63 // pred_check_branch
          %383 = sbr.rel (%p381) target = $region68
        $region67: #{block_forward.1} parent=63 // pred_region
          %p384 = scmp.lt.s32.totalorder %s22, 1
          %s385 = scalar_select %p384, %s22, 1
          %s386 = smul.addr %s385, 32
          %s387 = smul.addr %s386, 8
          %s388 = scalar_lea.vmem %s0, %s387
        $region68: #{block_forward.1} parent=63 // pred_fallthru
          _
      $region64: #{block_forward.1} parent=5 // pred_fallthru
        _
      %p389 = scmp.le.s32.totalorder 1, %s22
      %p390 = scmp.lt.s32.totalorder %s22, 3
      %p391 = pnand %p389, %p390
      %p392 = pneg %p391
      // Predicated region
      $region69: #{block_forward.1} parent=5 // pred_check
        _
      $region70: #{block_forward.1} parent=5 // pred_check_branch
        %394 = sbr.rel (%p391) target = $region72
      $region71: #{block_forward.1} parent=5 // pred_region
        %s395 = ssub.s32 %s22, 1
        %p396 = scmp.lt.s32.totalorder %s27, 1
        %s397 = scalar_select %p396, %s27, 1
        %s398 = smul.addr %s397, 32
        %s399 = smul.addr %s398, 8
        %s400 = scalar_lea.vmem %s0, %s399
        %p401 = pneg %p48
        %p402 = pneg %p45
        %p403 = pneg %p69
        %p404 = pneg %p66
        %p405 = pneg %p90
        %p406 = pneg %p87
        %p407 = pneg %p111
        %p408 = pneg %p108
        %p409 = pneg %p132
        %p410 = pneg %p129
        %p411 = pneg %p153
        %p412 = pneg %p150
        %p413 = pneg %p174
        %p414 = pneg %p171
        %p415 = pneg %p195
        %p416 = pneg %p192
        %p417 = pneg %p216
        %p418 = pneg %p213
        %p419 = pneg %p237
        %p420 = pneg %p234
        %p421 = pneg %p258
        %p422 = pneg %p255
        %p423 = pneg %p279
        %p424 = pneg %p276
        %p425 = pneg %p300
        %p426 = pneg %p297
        %p427 = pneg %p326
        %p428 = pneg %p323
        %s429 = sand.u32 %s313, 1
        %s430 = scalar_lea.sflag [#allocation4], %s429
        %s431 = sand.u32 %s313, 1
        %s432 = smul.addr %s431, 256
        %s433 = scalar_lea.vmem [#allocation3], %s432
        %p434 = scmp.lt.s32.totalorder %s27, 1
        %s435 = scalar_select %p434, %s27, 1
        %s436 = smul.addr %s435, 32
        %s437 = smul.addr %s436, 8
        %s438 = scalar_lea.vmem %s0, %s437
        %v439 = vld [vmem:[%s438] sm:$0xff]
        %v440 = vld [vmem:[%s438 + $0x8] sm:$0xff]
        %v441 = vld [vmem:[%s438 + $0x10] sm:$0xff]
        %v442 = vld [vmem:[%s438 + $0x18] sm:$0xff]
        %v443 = vld [vmem:[%s438 + $0x20] sm:$0xff]
        %v444 = vld [vmem:[%s438 + $0x28] sm:$0xff]
        %v445 = vld [vmem:[%s438 + $0x30] sm:$0xff]
        %v446 = vld [vmem:[%s438 + $0x38] sm:$0xff]
        %v447 = vld [vmem:[%s438 + $0x40] sm:$0xff]
        %v448 = vld [vmem:[%s438 + $0x48] sm:$0xff]
        %v449 = vld [vmem:[%s438 + $0x50] sm:$0xff]
        %v450 = vld [vmem:[%s438 + $0x58] sm:$0xff]
        %v451 = vld [vmem:[%s438 + $0x60] sm:$0xff]
        %v452 = vld [vmem:[%s438 + $0x68] sm:$0xff]
        %v453 = vld [vmem:[%s438 + $0x70] sm:$0xff]
        %v454 = vld [vmem:[%s438 + $0x78] sm:$0xff]
        %v455 = vld [vmem:[%s438 + $0x80] sm:$0xff]
        %v456 = vld [vmem:[%s438 + $0x88] sm:$0xff]
        %v457 = vld [vmem:[%s438 + $0x90] sm:$0xff]
        %v458 = vld [vmem:[%s438 + $0x98] sm:$0xff]
        %v459 = vld [vmem:[%s438 + $0xa0] sm:$0xff]
        %v460 = vld [vmem:[%s438 + $0xa8] sm:$0xff]
        %v461 = vld [vmem:[%s438 + $0xb0] sm:$0xff]
        %v462 = vld [vmem:[%s438 + $0xb8] sm:$0xff]
        %v463 = vld [vmem:[%s438 + $0xc0] sm:$0xff]
        %v464 = vld [vmem:[%s438 + $0xc8] sm:$0xff]
        %v465 = vld [vmem:[%s438 + $0xd0] sm:$0xff]
        %v466 = vld [vmem:[%s438 + $0xd8] sm:$0xff]
        %v467 = vld [vmem:[%s438 + $0xe0] sm:$0xff]
        %v468 = vld [vmem:[%s438 + $0xe8] sm:$0xff]
        %v469 = vld [vmem:[%s438 + $0xf0] sm:$0xff]
        %v470 = vld [vmem:[%s438 + $0xf8] sm:$0xff]
        %v471 = vld [vmem:[%s1] sm:$0xff]
        %v472 = vld [vmem:[%s1 + $0x8] sm:$0xff]
        %v473 = vld [vmem:[%s2] sm:$0x1]
        %v475 = vlaneseq
        %v476 = vshrl.u32 %v475, 7
        %v477 = vsub.s32 0, %v476
        %v478 = vrot.slane %v473, %v477
        %vm480 = vcmask 130048
        %v482 = vsel %vm480, %v439, 0
        %v485 = vsel %vm480, %v440, 0
        %v488 = vsel %vm480, %v441, 0
        %v491 = vsel %vm480, %v442, 0
        %v494 = vsel %vm480, %v443, 0
        %v497 = vsel %vm480, %v444, 0
        %v500 = vsel %vm480, %v445, 0
        %v503 = vsel %vm480, %v446, 0
        %v506 = vsel %vm480, %v447, 0
        %v509 = vsel %vm480, %v448, 0
        %v512 = vsel %vm480, %v449, 0
        %v515 = vsel %vm480, %v450, 0
        %v518 = vsel %vm480, %v451, 0
        %v521 = vsel %vm480, %v452, 0
        %v524 = vsel %vm480, %v453, 0
        %v527 = vsel %vm480, %v454, 0
        %v530 = vsel %vm480, %v455, 0
        %v533 = vsel %vm480, %v456, 0
        %v536 = vsel %vm480, %v457, 0
        %v539 = vsel %vm480, %v458, 0
        %v542 = vsel %vm480, %v459, 0
        %v545 = vsel %vm480, %v460, 0
        %v548 = vsel %vm480, %v461, 0
        %v551 = vsel %vm480, %v462, 0
        %v554 = vsel %vm480, %v463, 0
        %v557 = vsel %vm480, %v464, 0
        %v560 = vsel %vm480, %v465, 0
        %v563 = vsel %vm480, %v466, 0
        %v566 = vsel %vm480, %v467, 0
        %v569 = vsel %vm480, %v468, 0
        %v572 = vsel %vm480, %v469, 0
        %v575 = vsel %vm480, %v470, 0
        %577 = vmatprep.subr.mxu0 0.0
        %578 = vmatpush1.msra.mxu0 0.0
        %579 = vmatprep.subr.mxu0 0.0
        %580 = vmatpush1.msra.mxu0 0.0
        %581 = vmatprep.subr.mxu0 0.0
        %582 = vmatpush1.msra.mxu0 0.0
        %583 = vmatprep.subr.mxu0 0.0
        %584 = vmatpush1.msra.mxu0 0.0
        %585 = vmatprep.subr.mxu0 0.0
        %586 = vmatpush1.msra.mxu0 0.0
        %587 = vmatprep.subr.mxu0 0.0
        %588 = vmatpush1.msra.mxu0 0.0
        %589 = vmatprep.subr.mxu0 0.0
        %590 = vmatpush1.msra.mxu0 0.0
        %591 = vmatprep.subr.mxu0 0.0
        %592 = vmatpush1.msra.mxu0 0.0
        %593 = vmatprep.subr.mxu0 0.0
        %594 = vmatpush1.msra.mxu0 0.0
        %595 = vmatprep.subr.mxu0 0.0
        %596 = vmatpush1.msra.mxu0 0.0
        %597 = vmatprep.subr.mxu0 0.0
        %598 = vmatpush1.msra.mxu0 0.0
        %599 = vmatprep.subr.mxu0 0.0
        %600 = vmatpush1.msra.mxu0 0.0
        %601 = vmatprep.subr.mxu0 0.0
        %602 = vmatpush1.msra.mxu0 0.0
        %603 = vmatprep.subr.mxu0 0.0
        %604 = vmatpush1.msra.mxu0 0.0
        %605 = vmatprep.subr.mxu0 0.0
        %606 = vmatpush1.msra.mxu0 %v472
        %607 = vmatprep.subr.mxu0 0.0
        %608 = vmatpush1.msra.mxu0 %v471
        %609 = vmatprep.subr.mxu0 0.0
        %610 = vmatpush2.msra.mxu0 0.0
        %611 = vmatprep.subr.mxu0 0.0
        %612 = vmatpush2.msra.mxu0 0.0
        %613 = vmatprep.subr.mxu0 0.0
        %614 = vmatpush2.msra.mxu0 0.0
        %615 = vmatprep.subr.mxu0 0.0
        %616 = vmatpush2.msra.mxu0 0.0
        %617 = vmatprep.subr.mxu0 0.0
        %618 = vmatpush2.msra.mxu0 0.0
        %619 = vmatprep.subr.mxu0 0.0
        %620 = vmatpush2.msra.mxu0 0.0
        %621 = vmatprep.subr.mxu0 0.0
        %622 = vmatpush2.msra.mxu0 0.0
        %623 = vmatprep.subr.mxu0 0.0
        %624 = vmatpush2.msra.mxu0 0.0
        %625 = vmatprep.subr.mxu0 0.0
        %626 = vmatpush2.msra.mxu0 0.0
        %627 = vmatprep.subr.mxu0 0.0
        %628 = vmatpush2.msra.mxu0 0.0
        %629 = vmatprep.subr.mxu0 0.0
        %630 = vmatpush2.msra.mxu0 0.0
        %631 = vmatprep.subr.mxu0 0.0
        %632 = vmatpush2.msra.mxu0 0.0
        %633 = vmatprep.subr.mxu0 0.0
        %634 = vmatpush2.msra.mxu0 0.0
        %635 = vmatprep.subr.mxu0 0.0
        %636 = vmatpush2.msra.mxu0 0.0
        %637 = vmatprep.subr.mxu0 0.0
        %638 = vmatpush2.msra.mxu0 0.0
        %639 = vmatprep.subr.mxu0 0.0
        %640 = vmatpush2.msra.mxu0 0.0
        %641 = vmatprep.mubr.f32.mxu0 0.0
        %642 = vmatmul.mubr.f32.gmra.mxu0 %v482
        %v643 = vpop.f32.mrf.mxu0
        %v644 = vadd.f32 %v478, %v643
        %v645 = vpop.f32.mrf.mxu0
        %646 = vmatprep.mubr.f32.mxu0 0.0
        %647 = vmatmul.mubr.f32.gmra.mxu0 %v485
        %v648 = vpop.f32.mrf.mxu0
        %v649 = vadd.f32 %v478, %v648
        %v650 = vpop.f32.mrf.mxu0
        %651 = vmatprep.mubr.f32.mxu0 0.0
        %652 = vmatmul.mubr.f32.gmra.mxu0 %v488
        %v653 = vpop.f32.mrf.mxu0
        %v654 = vadd.f32 %v478, %v653
        %v655 = vpop.f32.mrf.mxu0
        %656 = vmatprep.mubr.f32.mxu0 0.0
        %657 = vmatmul.mubr.f32.gmra.mxu0 %v491
        %v658 = vpop.f32.mrf.mxu0
        %v659 = vadd.f32 %v478, %v658
        %v660 = vpop.f32.mrf.mxu0
        %661 = vmatprep.mubr.f32.mxu0 0.0
        %662 = vmatmul.mubr.f32.gmra.mxu0 %v494
        %v663 = vpop.f32.mrf.mxu0
        %v664 = vadd.f32 %v478, %v663
        %v665 = vpop.f32.mrf.mxu0
        %666 = vmatprep.mubr.f32.mxu0 0.0
        %667 = vmatmul.mubr.f32.gmra.mxu0 %v497
        %v668 = vpop.f32.mrf.mxu0
        %v669 = vadd.f32 %v478, %v668
        %v670 = vpop.f32.mrf.mxu0
        %671 = vmatprep.mubr.f32.mxu0 0.0
        %672 = vmatmul.mubr.f32.gmra.mxu0 %v500
        %v673 = vpop.f32.mrf.mxu0
        %v674 = vadd.f32 %v478, %v673
        %v675 = vpop.f32.mrf.mxu0
        %676 = vmatprep.mubr.f32.mxu0 0.0
        %677 = vmatmul.mubr.f32.gmra.mxu0 %v503
        %v678 = vpop.f32.mrf.mxu0
        %v679 = vadd.f32 %v478, %v678
        %v680 = vpop.f32.mrf.mxu0
        %681 = vmatprep.mubr.f32.mxu0 0.0
        %682 = vmatmul.mubr.f32.gmra.mxu0 %v506
        %v683 = vpop.f32.mrf.mxu0
        %v684 = vadd.f32 %v478, %v683
        %v685 = vpop.f32.mrf.mxu0
        %686 = vmatprep.mubr.f32.mxu0 0.0
        %687 = vmatmul.mubr.f32.gmra.mxu0 %v509
        %v688 = vpop.f32.mrf.mxu0
        %v689 = vadd.f32 %v478, %v688
        %v690 = vpop.f32.mrf.mxu0
        %691 = vmatprep.mubr.f32.mxu0 0.0
        %692 = vmatmul.mubr.f32.gmra.mxu0 %v512
        %v693 = vpop.f32.mrf.mxu0
        %v694 = vadd.f32 %v478, %v693
        %v695 = vpop.f32.mrf.mxu0
        %696 = vmatprep.mubr.f32.mxu0 0.0
        %697 = vmatmul.mubr.f32.gmra.mxu0 %v515
        %v698 = vpop.f32.mrf.mxu0
        %v699 = vadd.f32 %v478, %v698
        %v700 = vpop.f32.mrf.mxu0
        %701 = vmatprep.mubr.f32.mxu0 0.0
        %702 = vmatmul.mubr.f32.gmra.mxu0 %v518
        %v703 = vpop.f32.mrf.mxu0
        %v704 = vadd.f32 %v478, %v703
        %v705 = vpop.f32.mrf.mxu0
        %706 = vmatprep.mubr.f32.mxu0 0.0
        %707 = vmatmul.mubr.f32.gmra.mxu0 %v521
        %v708 = vpop.f32.mrf.mxu0
        %v709 = vadd.f32 %v478, %v708
        %v710 = vpop.f32.mrf.mxu0
        %711 = vmatprep.mubr.f32.mxu0 0.0
        %712 = vmatmul.mubr.f32.gmra.mxu0 %v524
        %v713 = vpop.f32.mrf.mxu0
        %v714 = vadd.f32 %v478, %v713
        %v715 = vpop.f32.mrf.mxu0
        %716 = vmatprep.mubr.f32.mxu0 0.0
        %717 = vmatmul.mubr.f32.gmra.mxu0 %v527
        %v718 = vpop.f32.mrf.mxu0
        %v719 = vadd.f32 %v478, %v718
        %v720 = vpop.f32.mrf.mxu0
        %721 = vmatprep.mubr.f32.mxu0 0.0
        %722 = vmatmul.mubr.f32.gmra.mxu0 %v530
        %v723 = vpop.f32.mrf.mxu0
        %v724 = vadd.f32 %v478, %v723
        %v725 = vpop.f32.mrf.mxu0
        %726 = vmatprep.mubr.f32.mxu0 0.0
        %727 = vmatmul.mubr.f32.gmra.mxu0 %v533
        %v728 = vpop.f32.mrf.mxu0
        %v729 = vadd.f32 %v478, %v728
        %v730 = vpop.f32.mrf.mxu0
        %731 = vmatprep.mubr.f32.mxu0 0.0
        %732 = vmatmul.mubr.f32.gmra.mxu0 %v536
        %v733 = vpop.f32.mrf.mxu0
        %v734 = vadd.f32 %v478, %v733
        %v735 = vpop.f32.mrf.mxu0
        %736 = vmatprep.mubr.f32.mxu0 0.0
        %737 = vmatmul.mubr.f32.gmra.mxu0 %v539
        %v738 = vpop.f32.mrf.mxu0
        %v739 = vadd.f32 %v478, %v738
        %v740 = vpop.f32.mrf.mxu0
        %741 = vmatprep.mubr.f32.mxu0 0.0
        %742 = vmatmul.mubr.f32.gmra.mxu0 %v542
        %v743 = vpop.f32.mrf.mxu0
        %v744 = vadd.f32 %v478, %v743
        %v745 = vpop.f32.mrf.mxu0
        %746 = vmatprep.mubr.f32.mxu0 0.0
        %747 = vmatmul.mubr.f32.gmra.mxu0 %v545
        %v748 = vpop.f32.mrf.mxu0
        %v749 = vadd.f32 %v478, %v748
        %v750 = vpop.f32.mrf.mxu0
        %751 = vmatprep.mubr.f32.mxu0 0.0
        %752 = vmatmul.mubr.f32.gmra.mxu0 %v548
        %v753 = vpop.f32.mrf.mxu0
        %v754 = vadd.f32 %v478, %v753
        %v755 = vpop.f32.mrf.mxu0
        %756 = vmatprep.mubr.f32.mxu0 0.0
        %757 = vmatmul.mubr.f32.gmra.mxu0 %v551
        %v758 = vpop.f32.mrf.mxu0
        %v759 = vadd.f32 %v478, %v758
        %v760 = vpop.f32.mrf.mxu0
        %761 = vmatprep.mubr.f32.mxu0 0.0
        %762 = vmatmul.mubr.f32.gmra.mxu0 %v554
        %v763 = vpop.f32.mrf.mxu0
        %v764 = vadd.f32 %v478, %v763
        %v765 = vpop.f32.mrf.mxu0
        %766 = vmatprep.mubr.f32.mxu0 0.0
        %767 = vmatmul.mubr.f32.gmra.mxu0 %v557
        %v768 = vpop.f32.mrf.mxu0
        %v769 = vadd.f32 %v478, %v768
        %v770 = vpop.f32.mrf.mxu0
        %771 = vmatprep.mubr.f32.mxu0 0.0
        %772 = vmatmul.mubr.f32.gmra.mxu0 %v560
        %v773 = vpop.f32.mrf.mxu0
        %v774 = vadd.f32 %v478, %v773
        %v775 = vpop.f32.mrf.mxu0
        %776 = vmatprep.mubr.f32.mxu0 0.0
        %777 = vmatmul.mubr.f32.gmra.mxu0 %v563
        %v778 = vpop.f32.mrf.mxu0
        %v779 = vadd.f32 %v478, %v778
        %v780 = vpop.f32.mrf.mxu0
        %781 = vmatprep.mubr.f32.mxu0 0.0
        %782 = vmatmul.mubr.f32.gmra.mxu0 %v566
        %v783 = vpop.f32.mrf.mxu0
        %v784 = vadd.f32 %v478, %v783
        %v785 = vpop.f32.mrf.mxu0
        %786 = vmatprep.mubr.f32.mxu0 0.0
        %787 = vmatmul.mubr.f32.gmra.mxu0 %v569
        %v788 = vpop.f32.mrf.mxu0
        %v789 = vadd.f32 %v478, %v788
        %v790 = vpop.f32.mrf.mxu0
        %791 = vmatprep.mubr.f32.mxu0 0.0
        %792 = vmatmul.mubr.f32.gmra.mxu0 %v572
        %v793 = vpop.f32.mrf.mxu0
        %v794 = vadd.f32 %v478, %v793
        %v795 = vpop.f32.mrf.mxu0
        %796 = vmatprep.mubr.f32.mxu0 0.0
        %797 = vmatmul.mubr.f32.gmra.mxu0 %v575
        %v798 = vpop.f32.mrf.mxu0
        %v799 = vadd.f32 %v478, %v798
        %v800 = vpop.f32.mrf.mxu0
        %801 = vdwg.mxu0
        %v802 = vadd.f32 %v644, 3.0
        %v803 = vadd.f32 %v649, 3.0
        %v804 = vadd.f32 %v654, 3.0
        %v805 = vadd.f32 %v659, 3.0
        %v806 = vadd.f32 %v664, 3.0
        %v807 = vadd.f32 %v669, 3.0
        %v808 = vadd.f32 %v674, 3.0
        %v809 = vadd.f32 %v679, 3.0
        %v810 = vadd.f32 %v684, 3.0
        %v811 = vadd.f32 %v689, 3.0
        %v812 = vadd.f32 %v694, 3.0
        %v813 = vadd.f32 %v699, 3.0
        %v814 = vadd.f32 %v704, 3.0
        %v815 = vadd.f32 %v709, 3.0
        %v816 = vadd.f32 %v714, 3.0
        %v817 = vadd.f32 %v719, 3.0
        %v818 = vadd.f32 %v724, 3.0
        %v819 = vadd.f32 %v729, 3.0
        %v820 = vadd.f32 %v734, 3.0
        %v821 = vadd.f32 %v739, 3.0
        %v822 = vadd.f32 %v744, 3.0
        %v823 = vadd.f32 %v749, 3.0
        %v824 = vadd.f32 %v754, 3.0
        %v825 = vadd.f32 %v759, 3.0
        %v826 = vadd.f32 %v764, 3.0
        %v827 = vadd.f32 %v769, 3.0
        %v828 = vadd.f32 %v774, 3.0
        %v829 = vadd.f32 %v779, 3.0
        %v830 = vadd.f32 %v784, 3.0
        %v831 = vadd.f32 %v789, 3.0
        %v832 = vadd.f32 %v794, 3.0
        %v833 = vadd.f32 %v799, 3.0
        %v834 = vmax.f32 %v802, 0.0
        %v835 = vmax.f32 %v803, 0.0
        %v836 = vmax.f32 %v804, 0.0
        %v837 = vmax.f32 %v805, 0.0
        %v838 = vmax.f32 %v806, 0.0
        %v839 = vmax.f32 %v807, 0.0
        %v840 = vmax.f32 %v808, 0.0
        %v841 = vmax.f32 %v809, 0.0
        %v842 = vmax.f32 %v810, 0.0
        %v843 = vmax.f32 %v811, 0.0
        %v844 = vmax.f32 %v812, 0.0
        %v845 = vmax.f32 %v813, 0.0
        %v846 = vmax.f32 %v814, 0.0
        %v847 = vmax.f32 %v815, 0.0
        %v848 = vmax.f32 %v816, 0.0
        %v849 = vmax.f32 %v817, 0.0
        %v850 = vmax.f32 %v818, 0.0
        %v851 = vmax.f32 %v819, 0.0
        %v852 = vmax.f32 %v820, 0.0
        %v853 = vmax.f32 %v821, 0.0
        %v854 = vmax.f32 %v822, 0.0
        %v855 = vmax.f32 %v823, 0.0
        %v856 = vmax.f32 %v824, 0.0
        %v857 = vmax.f32 %v825, 0.0
        %v858 = vmax.f32 %v826, 0.0
        %v859 = vmax.f32 %v827, 0.0
        %v860 = vmax.f32 %v828, 0.0
        %v861 = vmax.f32 %v829, 0.0
        %v862 = vmax.f32 %v830, 0.0
        %v863 = vmax.f32 %v831, 0.0
        %v864 = vmax.f32 %v832, 0.0
        %v865 = vmax.f32 %v833, 0.0
        %v866 = vmin.f32 %v834, 6.0
        %v867 = vmin.f32 %v835, 6.0
        %v868 = vmin.f32 %v836, 6.0
        %v869 = vmin.f32 %v837, 6.0
        %v870 = vmin.f32 %v838, 6.0
        %v871 = vmin.f32 %v839, 6.0
        %v872 = vmin.f32 %v840, 6.0
        %v873 = vmin.f32 %v841, 6.0
        %v874 = vmin.f32 %v842, 6.0
        %v875 = vmin.f32 %v843, 6.0
        %v876 = vmin.f32 %v844, 6.0
        %v877 = vmin.f32 %v845, 6.0
        %v878 = vmin.f32 %v846, 6.0
        %v879 = vmin.f32 %v847, 6.0
        %v880 = vmin.f32 %v848, 6.0
        %v881 = vmin.f32 %v849, 6.0
        %v882 = vmin.f32 %v850, 6.0
        %v883 = vmin.f32 %v851, 6.0
        %v884 = vmin.f32 %v852, 6.0
        %v885 = vmin.f32 %v853, 6.0
        %v886 = vmin.f32 %v854, 6.0
        %v887 = vmin.f32 %v855, 6.0
        %v888 = vmin.f32 %v856, 6.0
        %v889 = vmin.f32 %v857, 6.0
        %v890 = vmin.f32 %v858, 6.0
        %v891 = vmin.f32 %v859, 6.0
        %v892 = vmin.f32 %v860, 6.0
        %v893 = vmin.f32 %v861, 6.0
        %v894 = vmin.f32 %v862, 6.0
        %v895 = vmin.f32 %v863, 6.0
        %v896 = vmin.f32 %v864, 6.0
        %v897 = vmin.f32 %v865, 6.0
        %v898 = vmul.f32 %v866, 0.16666667
        %v899 = vmul.f32 %v867, 0.16666667
        %v900 = vmul.f32 %v868, 0.16666667
        %v901 = vmul.f32 %v869, 0.16666667
        %v902 = vmul.f32 %v870, 0.16666667
        %v903 = vmul.f32 %v871, 0.16666667
        %v904 = vmul.f32 %v872, 0.16666667
        %v905 = vmul.f32 %v873, 0.16666667
        %v906 = vmul.f32 %v874, 0.16666667
        %v907 = vmul.f32 %v875, 0.16666667
        %v908 = vmul.f32 %v876, 0.16666667
        %v909 = vmul.f32 %v877, 0.16666667
        %v910 = vmul.f32 %v878, 0.16666667
        %v911 = vmul.f32 %v879, 0.16666667
        %v912 = vmul.f32 %v880, 0.16666667
        %v913 = vmul.f32 %v881, 0.16666667
        %v914 = vmul.f32 %v882, 0.16666667
        %v915 = vmul.f32 %v883, 0.16666667
        %v916 = vmul.f32 %v884, 0.16666667
        %v917 = vmul.f32 %v885, 0.16666667
        %v918 = vmul.f32 %v886, 0.16666667
        %v919 = vmul.f32 %v887, 0.16666667
        %v920 = vmul.f32 %v888, 0.16666667
        %v921 = vmul.f32 %v889, 0.16666667
        %v922 = vmul.f32 %v890, 0.16666667
        %v923 = vmul.f32 %v891, 0.16666667
        %v924 = vmul.f32 %v892, 0.16666667
        %v925 = vmul.f32 %v893, 0.16666667
        %v926 = vmul.f32 %v894, 0.16666667
        %v927 = vmul.f32 %v895, 0.16666667
        %v928 = vmul.f32 %v896, 0.16666667
        %v929 = vmul.f32 %v897, 0.16666667
        %v930 = vmul.f32 %v644, %v898
        %v931 = vmul.f32 %v649, %v899
        %v932 = vmul.f32 %v654, %v900
        %v933 = vmul.f32 %v659, %v901
        %v934 = vmul.f32 %v664, %v902
        %v935 = vmul.f32 %v669, %v903
        %v936 = vmul.f32 %v674, %v904
        %v937 = vmul.f32 %v679, %v905
        %v938 = vmul.f32 %v684, %v906
        %v939 = vmul.f32 %v689, %v907
        %v940 = vmul.f32 %v694, %v908
        %v941 = vmul.f32 %v699, %v909
        %v942 = vmul.f32 %v704, %v910
        %v943 = vmul.f32 %v709, %v911
        %v944 = vmul.f32 %v714, %v912
        %v945 = vmul.f32 %v719, %v913
        %v946 = vmul.f32 %v724, %v914
        %v947 = vmul.f32 %v729, %v915
        %v948 = vmul.f32 %v734, %v916
        %v949 = vmul.f32 %v739, %v917
        %v950 = vmul.f32 %v744, %v918
        %v951 = vmul.f32 %v749, %v919
        %v952 = vmul.f32 %v754, %v920
        %v953 = vmul.f32 %v759, %v921
        %v954 = vmul.f32 %v764, %v922
        %v955 = vmul.f32 %v769, %v923
        %v956 = vmul.f32 %v774, %v924
        %v957 = vmul.f32 %v779, %v925
        %v958 = vmul.f32 %v784, %v926
        %v959 = vmul.f32 %v789, %v927
        %v960 = vmul.f32 %v794, %v928
        %v961 = vmul.f32 %v799, %v929
        %vm962 = vcmask 261120
        %963 = vst.msk [vmem:[#allocation2] sm:$0xff] %vm962, 0.0
        %964 = vst.msk [vmem:[#allocation2 + $0x8] sm:$0xff] %vm962, 0.0
        %vm965 = vcmask 254976
        %966 = vst.msk [vmem:[#allocation2 + $0x10] sm:$0x3] %vm965, 0.0
        %967 = vst.msk [vmem:[#allocation2 + $0x18] sm:$0xff] %vm962, 0.0
        %968 = vst.msk [vmem:[#allocation2 + $0x20] sm:$0xff] %vm962, 0.0
        %969 = vst.msk [vmem:[#allocation2 + $0x28] sm:$0x3] %vm965, 0.0
        %970 = vst.msk [vmem:[#allocation2 + $0x30] sm:$0xff] %vm962, 0.0
        %971 = vst.msk [vmem:[#allocation2 + $0x38] sm:$0xff] %vm962, 0.0
        %972 = vst.msk [vmem:[#allocation2 + $0x40] sm:$0x3] %vm965, 0.0
        %973 = vst.msk [vmem:[#allocation2 + $0x48] sm:$0xff] %vm962, 0.0
        %974 = vst.msk [vmem:[#allocation2 + $0x50] sm:$0xff] %vm962, 0.0
        %975 = vst.msk [vmem:[#allocation2 + $0x58] sm:$0x3] %vm965, 0.0
        %976 = vst.msk [vmem:[#allocation2 + $0x60] sm:$0xff] %vm962, 0.0
        %977 = vst.msk [vmem:[#allocation2 + $0x68] sm:$0xff] %vm962, 0.0
        %978 = vst.msk [vmem:[#allocation2 + $0x70] sm:$0x3] %vm965, 0.0
        %979 = vst.msk [vmem:[#allocation2 + $0x78] sm:$0xff] %vm962, 0.0
        %980 = vst.msk [vmem:[#allocation2 + $0x80] sm:$0xff] %vm962, 0.0
        %981 = vst.msk [vmem:[#allocation2 + $0x88] sm:$0x3] %vm965, 0.0
        %982 = vst.msk [vmem:[#allocation2 + $0x90] sm:$0xff] %vm962, 0.0
        %983 = vst.msk [vmem:[#allocation2 + $0x98] sm:$0xff] %vm962, 0.0
        %984 = vst.msk [vmem:[#allocation2 + $0xa0] sm:$0x3] %vm965, 0.0
        %985 = vst.msk [vmem:[#allocation2 + $0xa8] sm:$0xff] %vm962, 0.0
        %986 = vst.msk [vmem:[#allocation2 + $0xb0] sm:$0xff] %vm962, 0.0
        %987 = vst.msk [vmem:[#allocation2 + $0xb8] sm:$0x3] %vm965, 0.0
        %988 = vst.msk [vmem:[#allocation2 + $0xc0] sm:$0xff] %vm962, 0.0
        %989 = vst.msk [vmem:[#allocation2 + $0xc8] sm:$0xff] %vm962, 0.0
        %990 = vst.msk [vmem:[#allocation2 + $0xd0] sm:$0x3] %vm965, 0.0
        %991 = vst.msk [vmem:[#allocation2 + $0xd8] sm:$0xff] %vm962, 0.0
        %992 = vst.msk [vmem:[#allocation2 + $0xe0] sm:$0xff] %vm962, 0.0
        %993 = vst.msk [vmem:[#allocation2 + $0xe8] sm:$0x3] %vm965, 0.0
        %994 = vst.msk [vmem:[#allocation2 + $0xf0] sm:$0xff] %vm962, 0.0
        %995 = vst.msk [vmem:[#allocation2 + $0xf8] sm:$0xff] %vm962, 0.0
        %996 = vst.msk [vmem:[#allocation2 + $0x100] sm:$0x3] %vm965, 0.0
        %997 = vst.msk [vmem:[#allocation2 + $0x108] sm:$0xff] %vm962, 0.0
        %998 = vst.msk [vmem:[#allocation2 + $0x110] sm:$0xff] %vm962, 0.0
        %999 = vst.msk [vmem:[#allocation2 + $0x118] sm:$0x3] %vm965, 0.0
        %1000 = vst.msk [vmem:[#allocation2 + $0x120] sm:$0xff] %vm962, 0.0
        %1001 = vst.msk [vmem:[#allocation2 + $0x128] sm:$0xff] %vm962, 0.0
        %1002 = vst.msk [vmem:[#allocation2 + $0x130] sm:$0x3] %vm965, 0.0
        %1003 = vst.msk [vmem:[#allocation2 + $0x138] sm:$0xff] %vm962, 0.0
        %1004 = vst.msk [vmem:[#allocation2 + $0x140] sm:$0xff] %vm962, 0.0
        %1005 = vst.msk [vmem:[#allocation2 + $0x148] sm:$0x3] %vm965, 0.0
        %1006 = vst.msk [vmem:[#allocation2 + $0x150] sm:$0xff] %vm962, 0.0
        %1007 = vst.msk [vmem:[#allocation2 + $0x158] sm:$0xff] %vm962, 0.0
        %1008 = vst.msk [vmem:[#allocation2 + $0x160] sm:$0x3] %vm965, 0.0
        %1009 = vst.msk [vmem:[#allocation2 + $0x168] sm:$0xff] %vm962, 0.0
        %1010 = vst.msk [vmem:[#allocation2 + $0x170] sm:$0xff] %vm962, 0.0
        %1011 = vst.msk [vmem:[#allocation2 + $0x178] sm:$0x3] %vm965, 0.0
        %1012 = vst.msk [vmem:[#allocation2 + $0x180] sm:$0xff] %vm962, 0.0
        %1013 = vst.msk [vmem:[#allocation2 + $0x188] sm:$0xff] %vm962, 0.0
        %1014 = vst.msk [vmem:[#allocation2 + $0x190] sm:$0x3] %vm965, 0.0
        %1015 = vst.msk [vmem:[#allocation2 + $0x198] sm:$0xff] %vm962, 0.0
        %1016 = vst.msk [vmem:[#allocation2 + $0x1a0] sm:$0xff] %vm962, 0.0
        %1017 = vst.msk [vmem:[#allocation2 + $0x1a8] sm:$0x3] %vm965, 0.0
        %s1018 = scalar_lea.vmem [#allocation2], 24
        %1019 = vst.msk [vmem:[%s1018 + $0x1] sm:$0xff] %vm962, %v930
        %1020 = vst.msk [vmem:[%s1018 + $0x9] sm:$0xff] %vm962, %v931
        %1021 = vst.msk [vmem:[%s1018 + $0x19] sm:$0xff] %vm962, %v932
        %1022 = vst.msk [vmem:[%s1018 + $0x21] sm:$0xff] %vm962, %v933
        %1023 = vst.msk [vmem:[%s1018 + $0x31] sm:$0xff] %vm962, %v934
        %1024 = vst.msk [vmem:[%s1018 + $0x39] sm:$0xff] %vm962, %v935
        %1025 = vst.msk [vmem:[%s1018 + $0x49] sm:$0xff] %vm962, %v936
        %1026 = vst.msk [vmem:[%s1018 + $0x51] sm:$0xff] %vm962, %v937
        %1027 = vst.msk [vmem:[%s1018 + $0x61] sm:$0xff] %vm962, %v938
        %1028 = vst.msk [vmem:[%s1018 + $0x69] sm:$0xff] %vm962, %v939
        %1029 = vst.msk [vmem:[%s1018 + $0x79] sm:$0xff] %vm962, %v940
        %1030 = vst.msk [vmem:[%s1018 + $0x81] sm:$0xff] %vm962, %v941
        %1031 = vst.msk [vmem:[%s1018 + $0x91] sm:$0xff] %vm962, %v942
        %1032 = vst.msk [vmem:[%s1018 + $0x99] sm:$0xff] %vm962, %v943
        %1033 = vst.msk [vmem:[%s1018 + $0xa9] sm:$0xff] %vm962, %v944
        %1034 = vst.msk [vmem:[%s1018 + $0xb1] sm:$0xff] %vm962, %v945
        %1035 = vst.msk [vmem:[%s1018 + $0xc1] sm:$0xff] %vm962, %v946
        %1036 = vst.msk [vmem:[%s1018 + $0xc9] sm:$0xff] %vm962, %v947
        %1037 = vst.msk [vmem:[%s1018 + $0xd9] sm:$0xff] %vm962, %v948
        %1038 = vst.msk [vmem:[%s1018 + $0xe1] sm:$0xff] %vm962, %v949
        %1039 = vst.msk [vmem:[%s1018 + $0xf1] sm:$0xff] %vm962, %v950
        %1040 = vst.msk [vmem:[%s1018 + $0xf9] sm:$0xff] %vm962, %v951
        %1041 = vst.msk [vmem:[%s1018 + $0x109] sm:$0xff] %vm962, %v952
        %1042 = vst.msk [vmem:[%s1018 + $0x111] sm:$0xff] %vm962, %v953
        %1043 = vst.msk [vmem:[%s1018 + $0x121] sm:$0xff] %vm962, %v954
        %1044 = vst.msk [vmem:[%s1018 + $0x129] sm:$0xff] %vm962, %v955
        %1045 = vst.msk [vmem:[%s1018 + $0x139] sm:$0xff] %vm962, %v956
        %1046 = vst.msk [vmem:[%s1018 + $0x141] sm:$0xff] %vm962, %v957
        %1047 = vst.msk [vmem:[%s1018 + $0x151] sm:$0xff] %vm962, %v958
        %1048 = vst.msk [vmem:[%s1018 + $0x159] sm:$0xff] %vm962, %v959
        %1049 = vst.msk [vmem:[%s1018 + $0x169] sm:$0xff] %vm962, %v960
        %1050 = vst.msk [vmem:[%s1018 + $0x171] sm:$0xff] %vm962, %v961
        %v1051 = vld [vmem:[#allocation2] sm:$0xff]
        %v1052 = vld [vmem:[#allocation2 + $0x8] sm:$0xff]
        %v1053 = vld [vmem:[#allocation2 + $0x18] sm:$0xff]
        %v1054 = vld [vmem:[#allocation2 + $0x20] sm:$0xff]
        %v1055 = vld [vmem:[#allocation2 + $0x30] sm:$0xff]
        %v1056 = vld [vmem:[#allocation2 + $0x38] sm:$0xff]
        %v1057 = vld [vmem:[#allocation2 + $0x48] sm:$0xff]
        %v1058 = vld [vmem:[#allocation2 + $0x50] sm:$0xff]
        %v1059 = vld [vmem:[#allocation2 + $0x60] sm:$0xff]
        %v1060 = vld [vmem:[#allocation2 + $0x68] sm:$0xff]
        %v1061 = vld [vmem:[#allocation2 + $0x78] sm:$0xff]
        %v1062 = vld [vmem:[#allocation2 + $0x80] sm:$0xff]
        %v1063 = vld [vmem:[#allocation2 + $0x90] sm:$0xff]
        %v1064 = vld [vmem:[#allocation2 + $0x98] sm:$0xff]
        %v1065 = vld [vmem:[#allocation2 + $0xa8] sm:$0xff]
        %v1066 = vld [vmem:[#allocation2 + $0xb0] sm:$0xff]
        %v1067 = vld [vmem:[#allocation2 + $0xc0] sm:$0xff]
        %v1068 = vld [vmem:[#allocation2 + $0xc8] sm:$0xff]
        %v1069 = vld [vmem:[#allocation2 + $0xd8] sm:$0xff]
        %v1070 = vld [vmem:[#allocation2 + $0xe0] sm:$0xff]
        %v1071 = vld [vmem:[#allocation2 + $0xf0] sm:$0xff]
        %v1072 = vld [vmem:[#allocation2 + $0xf8] sm:$0xff]
        %v1073 = vld [vmem:[#allocation2 + $0x108] sm:$0xff]
        %v1074 = vld [vmem:[#allocation2 + $0x110] sm:$0xff]
        %v1075 = vld [vmem:[#allocation2 + $0x120] sm:$0xff]
        %v1076 = vld [vmem:[#allocation2 + $0x128] sm:$0xff]
        %v1077 = vld [vmem:[#allocation2 + $0x138] sm:$0xff]
        %v1078 = vld [vmem:[#allocation2 + $0x140] sm:$0xff]
        %v1079 = vld [vmem:[#allocation2 + $0x150] sm:$0xff]
        %v1080 = vld [vmem:[#allocation2 + $0x158] sm:$0xff]
        %v1081 = vld [vmem:[#allocation2 + $0x168] sm:$0xff]
        %v1082 = vld [vmem:[#allocation2 + $0x170] sm:$0xff]
        %v1083 = vld [vmem:[%s3] sm:$0x1]
        %v1084 = vlaneseq
        %v1085 = vshrl.u32 %v1084, 7
        %v1086 = vsub.s32 0, %v1085
        %v1087 = vrot.slane %v1083, %v1086
        %v1088 = vmul.f32 %v1051, %v1087
        %v1089 = vmul.f32 %v1052, %v1087
        %v1090 = vmul.f32 %v1053, %v1087
        %v1091 = vmul.f32 %v1054, %v1087
        %v1092 = vmul.f32 %v1055, %v1087
        %v1093 = vmul.f32 %v1056, %v1087
        %v1094 = vmul.f32 %v1057, %v1087
        %v1095 = vmul.f32 %v1058, %v1087
        %v1096 = vmul.f32 %v1059, %v1087
        %v1097 = vmul.f32 %v1060, %v1087
        %v1098 = vmul.f32 %v1061, %v1087
        %v1099 = vmul.f32 %v1062, %v1087
        %v1100 = vmul.f32 %v1063, %v1087
        %v1101 = vmul.f32 %v1064, %v1087
        %v1102 = vmul.f32 %v1065, %v1087
        %v1103 = vmul.f32 %v1066, %v1087
        %v1104 = vmul.f32 %v1067, %v1087
        %v1105 = vmul.f32 %v1068, %v1087
        %v1106 = vmul.f32 %v1069, %v1087
        %v1107 = vmul.f32 %v1070, %v1087
        %v1108 = vmul.f32 %v1071, %v1087
        %v1109 = vmul.f32 %v1072, %v1087
        %v1110 = vmul.f32 %v1073, %v1087
        %v1111 = vmul.f32 %v1074, %v1087
        %v1112 = vmul.f32 %v1075, %v1087
        %v1113 = vmul.f32 %v1076, %v1087
        %v1114 = vmul.f32 %v1077, %v1087
        %v1115 = vmul.f32 %v1078, %v1087
        %v1116 = vmul.f32 %v1079, %v1087
        %v1117 = vmul.f32 %v1080, %v1087
        %v1118 = vmul.f32 %v1081, %v1087
        %v1119 = vmul.f32 %v1082, %v1087
        %v1120 = vadd.f32 %v1088, 0.0
        %v1121 = vadd.f32 %v1089, 0.0
        %v1122 = vadd.f32 %v1090, 0.0
        %v1123 = vadd.f32 %v1091, 0.0
        %v1124 = vadd.f32 %v1092, 0.0
        %v1125 = vadd.f32 %v1093, 0.0
        %v1126 = vadd.f32 %v1094, 0.0
        %v1127 = vadd.f32 %v1095, 0.0
        %v1128 = vadd.f32 %v1096, 0.0
        %v1129 = vadd.f32 %v1097, 0.0
        %v1130 = vadd.f32 %v1098, 0.0
        %v1131 = vadd.f32 %v1099, 0.0
        %v1132 = vadd.f32 %v1100, 0.0
        %v1133 = vadd.f32 %v1101, 0.0
        %v1134 = vadd.f32 %v1102, 0.0
        %v1135 = vadd.f32 %v1103, 0.0
        %v1136 = vadd.f32 %v1104, 0.0
        %v1137 = vadd.f32 %v1105, 0.0
        %v1138 = vadd.f32 %v1106, 0.0
        %v1139 = vadd.f32 %v1107, 0.0
        %v1140 = vadd.f32 %v1108, 0.0
        %v1141 = vadd.f32 %v1109, 0.0
        %v1142 = vadd.f32 %v1110, 0.0
        %v1143 = vadd.f32 %v1111, 0.0
        %v1144 = vadd.f32 %v1112, 0.0
        %v1145 = vadd.f32 %v1113, 0.0
        %v1146 = vadd.f32 %v1114, 0.0
        %v1147 = vadd.f32 %v1115, 0.0
        %v1148 = vadd.f32 %v1116, 0.0
        %v1149 = vadd.f32 %v1117, 0.0
        %v1150 = vadd.f32 %v1118, 0.0
        %v1151 = vadd.f32 %v1119, 0.0
        %v1152 = vld [vmem:[#allocation2 + $0x1] sm:$0xff]
        %v1153 = vld [vmem:[#allocation2 + $0x9] sm:$0xff]
        %v1154 = vld [vmem:[#allocation2 + $0x19] sm:$0xff]
        %v1155 = vld [vmem:[#allocation2 + $0x21] sm:$0xff]
        %v1156 = vld [vmem:[#allocation2 + $0x31] sm:$0xff]
        %v1157 = vld [vmem:[#allocation2 + $0x39] sm:$0xff]
        %v1158 = vld [vmem:[#allocation2 + $0x49] sm:$0xff]
        %v1159 = vld [vmem:[#allocation2 + $0x51] sm:$0xff]
        %v1160 = vld [vmem:[#allocation2 + $0x61] sm:$0xff]
        %v1161 = vld [vmem:[#allocation2 + $0x69] sm:$0xff]
        %v1162 = vld [vmem:[#allocation2 + $0x79] sm:$0xff]
        %v1163 = vld [vmem:[#allocation2 + $0x81] sm:$0xff]
        %v1164 = vld [vmem:[#allocation2 + $0x91] sm:$0xff]
        %v1165 = vld [vmem:[#allocation2 + $0x99] sm:$0xff]
        %v1166 = vld [vmem:[#allocation2 + $0xa9] sm:$0xff]
        %v1167 = vld [vmem:[#allocation2 + $0xb1] sm:$0xff]
        %v1168 = vld [vmem:[#allocation2 + $0xc1] sm:$0xff]
        %v1169 = vld [vmem:[#allocation2 + $0xc9] sm:$0xff]
        %v1170 = vld [vmem:[#allocation2 + $0xd9] sm:$0xff]
        %v1171 = vld [vmem:[#allocation2 + $0xe1] sm:$0xff]
        %v1172 = vld [vmem:[#allocation2 + $0xf1] sm:$0xff]
        %v1173 = vld [vmem:[#allocation2 + $0xf9] sm:$0xff]
        %v1174 = vld [vmem:[#allocation2 + $0x109] sm:$0xff]
        %v1175 = vld [vmem:[#allocation2 + $0x111] sm:$0xff]
        %v1176 = vld [vmem:[#allocation2 + $0x121] sm:$0xff]
        %v1177 = vld [vmem:[#allocation2 + $0x129] sm:$0xff]
        %v1178 = vld [vmem:[#allocation2 + $0x139] sm:$0xff]
        %v1179 = vld [vmem:[#allocation2 + $0x141] sm:$0xff]
        %v1180 = vld [vmem:[#allocation2 + $0x151] sm:$0xff]
        %v1181 = vld [vmem:[#allocation2 + $0x159] sm:$0xff]
        %v1182 = vld [vmem:[#allocation2 + $0x169] sm:$0xff]
        %v1183 = vld [vmem:[#allocation2 + $0x171] sm:$0xff]
        %v1184 = vld [vmem:[%s3 + $0x1] sm:$0x1]
        %v1185 = vlaneseq
        %v1186 = vshrl.u32 %v1185, 7
        %v1187 = vsub.s32 0, %v1186
        %v1188 = vrot.slane %v1184, %v1187
        %v1189 = vmul.f32 %v1152, %v1188
        %v1190 = vmul.f32 %v1153, %v1188
        %v1191 = vmul.f32 %v1154, %v1188
        %v1192 = vmul.f32 %v1155, %v1188
        %v1193 = vmul.f32 %v1156, %v1188
        %v1194 = vmul.f32 %v1157, %v1188
        %v1195 = vmul.f32 %v1158, %v1188
        %v1196 = vmul.f32 %v1159, %v1188
        %v1197 = vmul.f32 %v1160, %v1188
        %v1198 = vmul.f32 %v1161, %v1188
        %v1199 = vmul.f32 %v1162, %v1188
        %v1200 = vmul.f32 %v1163, %v1188
        %v1201 = vmul.f32 %v1164, %v1188
        %v1202 = vmul.f32 %v1165, %v1188
        %v1203 = vmul.f32 %v1166, %v1188
        %v1204 = vmul.f32 %v1167, %v1188
        %v1205 = vmul.f32 %v1168, %v1188
        %v1206 = vmul.f32 %v1169, %v1188
        %v1207 = vmul.f32 %v1170, %v1188
        %v1208 = vmul.f32 %v1171, %v1188
        %v1209 = vmul.f32 %v1172, %v1188
        %v1210 = vmul.f32 %v1173, %v1188
        %v1211 = vmul.f32 %v1174, %v1188
        %v1212 = vmul.f32 %v1175, %v1188
        %v1213 = vmul.f32 %v1176, %v1188
        %v1214 = vmul.f32 %v1177, %v1188
        %v1215 = vmul.f32 %v1178, %v1188
        %v1216 = vmul.f32 %v1179, %v1188
        %v1217 = vmul.f32 %v1180, %v1188
        %v1218 = vmul.f32 %v1181, %v1188
        %v1219 = vmul.f32 %v1182, %v1188
        %v1220 = vmul.f32 %v1183, %v1188
        %v1221 = vadd.f32 %v1120, %v1189
        %v1222 = vadd.f32 %v1121, %v1190
        %v1223 = vadd.f32 %v1122, %v1191
        %v1224 = vadd.f32 %v1123, %v1192
        %v1225 = vadd.f32 %v1124, %v1193
        %v1226 = vadd.f32 %v1125, %v1194
        %v1227 = vadd.f32 %v1126, %v1195
        %v1228 = vadd.f32 %v1127, %v1196
        %v1229 = vadd.f32 %v1128, %v1197
        %v1230 = vadd.f32 %v1129, %v1198
        %v1231 = vadd.f32 %v1130, %v1199
        %v1232 = vadd.f32 %v1131, %v1200
        %v1233 = vadd.f32 %v1132, %v1201
        %v1234 = vadd.f32 %v1133, %v1202
        %v1235 = vadd.f32 %v1134, %v1203
        %v1236 = vadd.f32 %v1135, %v1204
        %v1237 = vadd.f32 %v1136, %v1205
        %v1238 = vadd.f32 %v1137, %v1206
        %v1239 = vadd.f32 %v1138, %v1207
        %v1240 = vadd.f32 %v1139, %v1208
        %v1241 = vadd.f32 %v1140, %v1209
        %v1242 = vadd.f32 %v1141, %v1210
        %v1243 = vadd.f32 %v1142, %v1211
        %v1244 = vadd.f32 %v1143, %v1212
        %v1245 = vadd.f32 %v1144, %v1213
        %v1246 = vadd.f32 %v1145, %v1214
        %v1247 = vadd.f32 %v1146, %v1215
        %v1248 = vadd.f32 %v1147, %v1216
        %v1249 = vadd.f32 %v1148, %v1217
        %v1250 = vadd.f32 %v1149, %v1218
        %v1251 = vadd.f32 %v1150, %v1219
        %v1252 = vadd.f32 %v1151, %v1220
        %v1253 = vld [vmem:[#allocation2 + $0x2] sm:$0xff]
        %v1254 = vld [vmem:[#allocation2 + $0xa] sm:$0xff]
        %v1255 = vld [vmem:[#allocation2 + $0x1a] sm:$0xff]
        %v1256 = vld [vmem:[#allocation2 + $0x22] sm:$0xff]
        %v1257 = vld [vmem:[#allocation2 + $0x32] sm:$0xff]
        %v1258 = vld [vmem:[#allocation2 + $0x3a] sm:$0xff]
        %v1259 = vld [vmem:[#allocation2 + $0x4a] sm:$0xff]
        %v1260 = vld [vmem:[#allocation2 + $0x52] sm:$0xff]
        %v1261 = vld [vmem:[#allocation2 + $0x62] sm:$0xff]
        %v1262 = vld [vmem:[#allocation2 + $0x6a] sm:$0xff]
        %v1263 = vld [vmem:[#allocation2 + $0x7a] sm:$0xff]
        %v1264 = vld [vmem:[#allocation2 + $0x82] sm:$0xff]
        %v1265 = vld [vmem:[#allocation2 + $0x92] sm:$0xff]
        %v1266 = vld [vmem:[#allocation2 + $0x9a] sm:$0xff]
        %v1267 = vld [vmem:[#allocation2 + $0xaa] sm:$0xff]
        %v1268 = vld [vmem:[#allocation2 + $0xb2] sm:$0xff]
        %v1269 = vld [vmem:[#allocation2 + $0xc2] sm:$0xff]
        %v1270 = vld [vmem:[#allocation2 + $0xca] sm:$0xff]
        %v1271 = vld [vmem:[#allocation2 + $0xda] sm:$0xff]
        %v1272 = vld [vmem:[#allocation2 + $0xe2] sm:$0xff]
        %v1273 = vld [vmem:[#allocation2 + $0xf2] sm:$0xff]
        %v1274 = vld [vmem:[#allocation2 + $0xfa] sm:$0xff]
        %v1275 = vld [vmem:[#allocation2 + $0x10a] sm:$0xff]
        %v1276 = vld [vmem:[#allocation2 + $0x112] sm:$0xff]
        %v1277 = vld [vmem:[#allocation2 + $0x122] sm:$0xff]
        %v1278 = vld [vmem:[#allocation2 + $0x12a] sm:$0xff]
        %v1279 = vld [vmem:[#allocation2 + $0x13a] sm:$0xff]
        %v1280 = vld [vmem:[#allocation2 + $0x142] sm:$0xff]
        %v1281 = vld [vmem:[#allocation2 + $0x152] sm:$0xff]
        %v1282 = vld [vmem:[#allocation2 + $0x15a] sm:$0xff]
        %v1283 = vld [vmem:[#allocation2 + $0x16a] sm:$0xff]
        %v1284 = vld [vmem:[#allocation2 + $0x172] sm:$0xff]
        %v1285 = vld [vmem:[%s3 + $0x2] sm:$0x1]
        %v1286 = vlaneseq
        %v1287 = vshrl.u32 %v1286, 7
        %v1288 = vsub.s32 0, %v1287
        %v1289 = vrot.slane %v1285, %v1288
        %v1290 = vmul.f32 %v1253, %v1289
        %v1291 = vmul.f32 %v1254, %v1289
        %v1292 = vmul.f32 %v1255, %v1289
        %v1293 = vmul.f32 %v1256, %v1289
        %v1294 = vmul.f32 %v1257, %v1289
        %v1295 = vmul.f32 %v1258, %v1289
        %v1296 = vmul.f32 %v1259, %v1289
        %v1297 = vmul.f32 %v1260, %v1289
        %v1298 = vmul.f32 %v1261, %v1289
        %v1299 = vmul.f32 %v1262, %v1289
        %v1300 = vmul.f32 %v1263, %v1289
        %v1301 = vmul.f32 %v1264, %v1289
        %v1302 = vmul.f32 %v1265, %v1289
        %v1303 = vmul.f32 %v1266, %v1289
        %v1304 = vmul.f32 %v1267, %v1289
        %v1305 = vmul.f32 %v1268, %v1289
        %v1306 = vmul.f32 %v1269, %v1289
        %v1307 = vmul.f32 %v1270, %v1289
        %v1308 = vmul.f32 %v1271, %v1289
        %v1309 = vmul.f32 %v1272, %v1289
        %v1310 = vmul.f32 %v1273, %v1289
        %v1311 = vmul.f32 %v1274, %v1289
        %v1312 = vmul.f32 %v1275, %v1289
        %v1313 = vmul.f32 %v1276, %v1289
        %v1314 = vmul.f32 %v1277, %v1289
        %v1315 = vmul.f32 %v1278, %v1289
        %v1316 = vmul.f32 %v1279, %v1289
        %v1317 = vmul.f32 %v1280, %v1289
        %v1318 = vmul.f32 %v1281, %v1289
        %v1319 = vmul.f32 %v1282, %v1289
        %v1320 = vmul.f32 %v1283, %v1289
        %v1321 = vmul.f32 %v1284, %v1289
        %v1322 = vadd.f32 %v1221, %v1290
        %v1323 = vadd.f32 %v1222, %v1291
        %v1324 = vadd.f32 %v1223, %v1292
        %v1325 = vadd.f32 %v1224, %v1293
        %v1326 = vadd.f32 %v1225, %v1294
        %v1327 = vadd.f32 %v1226, %v1295
        %v1328 = vadd.f32 %v1227, %v1296
        %v1329 = vadd.f32 %v1228, %v1297
        %v1330 = vadd.f32 %v1229, %v1298
        %v1331 = vadd.f32 %v1230, %v1299
        %v1332 = vadd.f32 %v1231, %v1300
        %v1333 = vadd.f32 %v1232, %v1301
        %v1334 = vadd.f32 %v1233, %v1302
        %v1335 = vadd.f32 %v1234, %v1303
        %v1336 = vadd.f32 %v1235, %v1304
        %v1337 = vadd.f32 %v1236, %v1305
        %v1338 = vadd.f32 %v1237, %v1306
        %v1339 = vadd.f32 %v1238, %v1307
        %v1340 = vadd.f32 %v1239, %v1308
        %v1341 = vadd.f32 %v1240, %v1309
        %v1342 = vadd.f32 %v1241, %v1310
        %v1343 = vadd.f32 %v1242, %v1311
        %v1344 = vadd.f32 %v1243, %v1312
        %v1345 = vadd.f32 %v1244, %v1313
        %v1346 = vadd.f32 %v1245, %v1314
        %v1347 = vadd.f32 %v1246, %v1315
        %v1348 = vadd.f32 %v1247, %v1316
        %v1349 = vadd.f32 %v1248, %v1317
        %v1350 = vadd.f32 %v1249, %v1318
        %v1351 = vadd.f32 %v1250, %v1319
        %v1352 = vadd.f32 %v1251, %v1320
        %v1353 = vadd.f32 %v1252, %v1321
        %v1354 = vld [vmem:[%s1018] sm:$0xff]
        %v1355 = vld [vmem:[%s1018 + $0x8] sm:$0xff]
        %v1356 = vld [vmem:[%s1018 + $0x18] sm:$0xff]
        %v1357 = vld [vmem:[%s1018 + $0x20] sm:$0xff]
        %v1358 = vld [vmem:[%s1018 + $0x30] sm:$0xff]
        %v1359 = vld [vmem:[%s1018 + $0x38] sm:$0xff]
        %v1360 = vld [vmem:[%s1018 + $0x48] sm:$0xff]
        %v1361 = vld [vmem:[%s1018 + $0x50] sm:$0xff]
        %v1362 = vld [vmem:[%s1018 + $0x60] sm:$0xff]
        %v1363 = vld [vmem:[%s1018 + $0x68] sm:$0xff]
        %v1364 = vld [vmem:[%s1018 + $0x78] sm:$0xff]
        %v1365 = vld [vmem:[%s1018 + $0x80] sm:$0xff]
        %v1366 = vld [vmem:[%s1018 + $0x90] sm:$0xff]
        %v1367 = vld [vmem:[%s1018 + $0x98] sm:$0xff]
        %v1368 = vld [vmem:[%s1018 + $0xa8] sm:$0xff]
        %v1369 = vld [vmem:[%s1018 + $0xb0] sm:$0xff]
        %v1370 = vld [vmem:[%s1018 + $0xc0] sm:$0xff]
        %v1371 = vld [vmem:[%s1018 + $0xc8] sm:$0xff]
        %v1372 = vld [vmem:[%s1018 + $0xd8] sm:$0xff]
        %v1373 = vld [vmem:[%s1018 + $0xe0] sm:$0xff]
        %v1374 = vld [vmem:[%s1018 + $0xf0] sm:$0xff]
        %v1375 = vld [vmem:[%s1018 + $0xf8] sm:$0xff]
        %v1376 = vld [vmem:[%s1018 + $0x108] sm:$0xff]
        %v1377 = vld [vmem:[%s1018 + $0x110] sm:$0xff]
        %v1378 = vld [vmem:[%s1018 + $0x120] sm:$0xff]
        %v1379 = vld [vmem:[%s1018 + $0x128] sm:$0xff]
        %v1380 = vld [vmem:[%s1018 + $0x138] sm:$0xff]
        %v1381 = vld [vmem:[%s1018 + $0x140] sm:$0xff]
        %v1382 = vld [vmem:[%s1018 + $0x150] sm:$0xff]
        %v1383 = vld [vmem:[%s1018 + $0x158] sm:$0xff]
        %v1384 = vld [vmem:[%s1018 + $0x168] sm:$0xff]
        %v1385 = vld [vmem:[%s1018 + $0x170] sm:$0xff]
        %s1386 = scalar_lea.vmem %s3, 4
        %v1387 = vld [vmem:[%s1386] sm:$0x1]
        %v1388 = vlaneseq
        %v1389 = vshrl.u32 %v1388, 7
        %v1390 = vsub.s32 0, %v1389
        %v1391 = vrot.slane %v1387, %v1390
        %v1392 = vmul.f32 %v1354, %v1391
        %v1393 = vmul.f32 %v1355, %v1391
        %v1394 = vmul.f32 %v1356, %v1391
        %v1395 = vmul.f32 %v1357, %v1391
        %v1396 = vmul.f32 %v1358, %v1391
        %v1397 = vmul.f32 %v1359, %v1391
        %v1398 = vmul.f32 %v1360, %v1391
        %v1399 = vmul.f32 %v1361, %v1391
        %v1400 = vmul.f32 %v1362, %v1391
        %v1401 = vmul.f32 %v1363, %v1391
        %v1402 = vmul.f32 %v1364, %v1391
        %v1403 = vmul.f32 %v1365, %v1391
        %v1404 = vmul.f32 %v1366, %v1391
        %v1405 = vmul.f32 %v1367, %v1391
        %v1406 = vmul.f32 %v1368, %v1391
        %v1407 = vmul.f32 %v1369, %v1391
        %v1408 = vmul.f32 %v1370, %v1391
        %v1409 = vmul.f32 %v1371, %v1391
        %v1410 = vmul.f32 %v1372, %v1391
        %v1411 = vmul.f32 %v1373, %v1391
        %v1412 = vmul.f32 %v1374, %v1391
        %v1413 = vmul.f32 %v1375, %v1391
        %v1414 = vmul.f32 %v1376, %v1391
        %v1415 = vmul.f32 %v1377, %v1391
        %v1416 = vmul.f32 %v1378, %v1391
        %v1417 = vmul.f32 %v1379, %v1391
        %v1418 = vmul.f32 %v1380, %v1391
        %v1419 = vmul.f32 %v1381, %v1391
        %v1420 = vmul.f32 %v1382, %v1391
        %v1421 = vmul.f32 %v1383, %v1391
        %v1422 = vmul.f32 %v1384, %v1391
        %v1423 = vmul.f32 %v1385, %v1391
        %v1424 = vadd.f32 %v1322, %v1392
        %v1425 = vadd.f32 %v1323, %v1393
        %v1426 = vadd.f32 %v1324, %v1394
        %v1427 = vadd.f32 %v1325, %v1395
        %v1428 = vadd.f32 %v1326, %v1396
        %v1429 = vadd.f32 %v1327, %v1397
        %v1430 = vadd.f32 %v1328, %v1398
        %v1431 = vadd.f32 %v1329, %v1399
        %v1432 = vadd.f32 %v1330, %v1400
        %v1433 = vadd.f32 %v1331, %v1401
        %v1434 = vadd.f32 %v1332, %v1402
        %v1435 = vadd.f32 %v1333, %v1403
        %v1436 = vadd.f32 %v1334, %v1404
        %v1437 = vadd.f32 %v1335, %v1405
        %v1438 = vadd.f32 %v1336, %v1406
        %v1439 = vadd.f32 %v1337, %v1407
        %v1440 = vadd.f32 %v1338, %v1408
        %v1441 = vadd.f32 %v1339, %v1409
        %v1442 = vadd.f32 %v1340, %v1410
        %v1443 = vadd.f32 %v1341, %v1411
        %v1444 = vadd.f32 %v1342, %v1412
        %v1445 = vadd.f32 %v1343, %v1413
        %v1446 = vadd.f32 %v1344, %v1414
        %v1447 = vadd.f32 %v1345, %v1415
        %v1448 = vadd.f32 %v1346, %v1416
        %v1449 = vadd.f32 %v1347, %v1417
        %v1450 = vadd.f32 %v1348, %v1418
        %v1451 = vadd.f32 %v1349, %v1419
        %v1452 = vadd.f32 %v1350, %v1420
        %v1453 = vadd.f32 %v1351, %v1421
        %v1454 = vadd.f32 %v1352, %v1422
        %v1455 = vadd.f32 %v1353, %v1423
        %v1456 = vld [vmem:[%s1018 + $0x1] sm:$0xff]
        %v1457 = vld [vmem:[%s1018 + $0x9] sm:$0xff]
        %v1458 = vld [vmem:[%s1018 + $0x19] sm:$0xff]
        %v1459 = vld [vmem:[%s1018 + $0x21] sm:$0xff]
        %v1460 = vld [vmem:[%s1018 + $0x31] sm:$0xff]
        %v1461 = vld [vmem:[%s1018 + $0x39] sm:$0xff]
        %v1462 = vld [vmem:[%s1018 + $0x49] sm:$0xff]
        %v1463 = vld [vmem:[%s1018 + $0x51] sm:$0xff]
        %v1464 = vld [vmem:[%s1018 + $0x61] sm:$0xff]
        %v1465 = vld [vmem:[%s1018 + $0x69] sm:$0xff]
        %v1466 = vld [vmem:[%s1018 + $0x79] sm:$0xff]
        %v1467 = vld [vmem:[%s1018 + $0x81] sm:$0xff]
        %v1468 = vld [vmem:[%s1018 + $0x91] sm:$0xff]
        %v1469 = vld [vmem:[%s1018 + $0x99] sm:$0xff]
        %v1470 = vld [vmem:[%s1018 + $0xa9] sm:$0xff]
        %v1471 = vld [vmem:[%s1018 + $0xb1] sm:$0xff]
        %v1472 = vld [vmem:[%s1018 + $0xc1] sm:$0xff]
        %v1473 = vld [vmem:[%s1018 + $0xc9] sm:$0xff]
        %v1474 = vld [vmem:[%s1018 + $0xd9] sm:$0xff]
        %v1475 = vld [vmem:[%s1018 + $0xe1] sm:$0xff]
        %v1476 = vld [vmem:[%s1018 + $0xf1] sm:$0xff]
        %v1477 = vld [vmem:[%s1018 + $0xf9] sm:$0xff]
        %v1478 = vld [vmem:[%s1018 + $0x109] sm:$0xff]
        %v1479 = vld [vmem:[%s1018 + $0x111] sm:$0xff]
        %v1480 = vld [vmem:[%s1018 + $0x121] sm:$0xff]
        %v1481 = vld [vmem:[%s1018 + $0x129] sm:$0xff]
        %v1482 = vld [vmem:[%s1018 + $0x139] sm:$0xff]
        %v1483 = vld [vmem:[%s1018 + $0x141] sm:$0xff]
        %v1484 = vld [vmem:[%s1018 + $0x151] sm:$0xff]
        %v1485 = vld [vmem:[%s1018 + $0x159] sm:$0xff]
        %v1486 = vld [vmem:[%s1018 + $0x169] sm:$0xff]
        %v1487 = vld [vmem:[%s1018 + $0x171] sm:$0xff]
        %v1488 = vld [vmem:[%s1386 + $0x1] sm:$0x1]
        %v1489 = vlaneseq
        %v1490 = vshrl.u32 %v1489, 7
        %v1491 = vsub.s32 0, %v1490
        %v1492 = vrot.slane %v1488, %v1491
        %v1493 = vmul.f32 %v1456, %v1492
        %v1494 = vmul.f32 %v1457, %v1492
        %v1495 = vmul.f32 %v1458, %v1492
        %v1496 = vmul.f32 %v1459, %v1492
        %v1497 = vmul.f32 %v1460, %v1492
        %v1498 = vmul.f32 %v1461, %v1492
        %v1499 = vmul.f32 %v1462, %v1492
        %v1500 = vmul.f32 %v1463, %v1492
        %v1501 = vmul.f32 %v1464, %v1492
        %v1502 = vmul.f32 %v1465, %v1492
        %v1503 = vmul.f32 %v1466, %v1492
        %v1504 = vmul.f32 %v1467, %v1492
        %v1505 = vmul.f32 %v1468, %v1492
        %v1506 = vmul.f32 %v1469, %v1492
        %v1507 = vmul.f32 %v1470, %v1492
        %v1508 = vmul.f32 %v1471, %v1492
        %v1509 = vmul.f32 %v1472, %v1492
        %v1510 = vmul.f32 %v1473, %v1492
        %v1511 = vmul.f32 %v1474, %v1492
        %v1512 = vmul.f32 %v1475, %v1492
        %v1513 = vmul.f32 %v1476, %v1492
        %v1514 = vmul.f32 %v1477, %v1492
        %v1515 = vmul.f32 %v1478, %v1492
        %v1516 = vmul.f32 %v1479, %v1492
        %v1517 = vmul.f32 %v1480, %v1492
        %v1518 = vmul.f32 %v1481, %v1492
        %v1519 = vmul.f32 %v1482, %v1492
        %v1520 = vmul.f32 %v1483, %v1492
        %v1521 = vmul.f32 %v1484, %v1492
        %v1522 = vmul.f32 %v1485, %v1492
        %v1523 = vmul.f32 %v1486, %v1492
        %v1524 = vmul.f32 %v1487, %v1492
        %v1525 = vadd.f32 %v1424, %v1493
        %v1526 = vadd.f32 %v1425, %v1494
        %v1527 = vadd.f32 %v1426, %v1495
        %v1528 = vadd.f32 %v1427, %v1496
        %v1529 = vadd.f32 %v1428, %v1497
        %v1530 = vadd.f32 %v1429, %v1498
        %v1531 = vadd.f32 %v1430, %v1499
        %v1532 = vadd.f32 %v1431, %v1500
        %v1533 = vadd.f32 %v1432, %v1501
        %v1534 = vadd.f32 %v1433, %v1502
        %v1535 = vadd.f32 %v1434, %v1503
        %v1536 = vadd.f32 %v1435, %v1504
        %v1537 = vadd.f32 %v1436, %v1505
        %v1538 = vadd.f32 %v1437, %v1506
        %v1539 = vadd.f32 %v1438, %v1507
        %v1540 = vadd.f32 %v1439, %v1508
        %v1541 = vadd.f32 %v1440, %v1509
        %v1542 = vadd.f32 %v1441, %v1510
        %v1543 = vadd.f32 %v1442, %v1511
        %v1544 = vadd.f32 %v1443, %v1512
        %v1545 = vadd.f32 %v1444, %v1513
        %v1546 = vadd.f32 %v1445, %v1514
        %v1547 = vadd.f32 %v1446, %v1515
        %v1548 = vadd.f32 %v1447, %v1516
        %v1549 = vadd.f32 %v1448, %v1517
        %v1550 = vadd.f32 %v1449, %v1518
        %v1551 = vadd.f32 %v1450, %v1519
        %v1552 = vadd.f32 %v1451, %v1520
        %v1553 = vadd.f32 %v1452, %v1521
        %v1554 = vadd.f32 %v1453, %v1522
        %v1555 = vadd.f32 %v1454, %v1523
        %v1556 = vadd.f32 %v1455, %v1524
        %v1557 = vld [vmem:[%s1018 + $0x2] sm:$0xff]
        %v1558 = vld [vmem:[%s1018 + $0xa] sm:$0xff]
        %v1559 = vld [vmem:[%s1018 + $0x1a] sm:$0xff]
        %v1560 = vld [vmem:[%s1018 + $0x22] sm:$0xff]
        %v1561 = vld [vmem:[%s1018 + $0x32] sm:$0xff]
        %v1562 = vld [vmem:[%s1018 + $0x3a] sm:$0xff]
        %v1563 = vld [vmem:[%s1018 + $0x4a] sm:$0xff]
        %v1564 = vld [vmem:[%s1018 + $0x52] sm:$0xff]
        %v1565 = vld [vmem:[%s1018 + $0x62] sm:$0xff]
        %v1566 = vld [vmem:[%s1018 + $0x6a] sm:$0xff]
        %v1567 = vld [vmem:[%s1018 + $0x7a] sm:$0xff]
        %v1568 = vld [vmem:[%s1018 + $0x82] sm:$0xff]
        %v1569 = vld [vmem:[%s1018 + $0x92] sm:$0xff]
        %v1570 = vld [vmem:[%s1018 + $0x9a] sm:$0xff]
        %v1571 = vld [vmem:[%s1018 + $0xaa] sm:$0xff]
        %v1572 = vld [vmem:[%s1018 + $0xb2] sm:$0xff]
        %v1573 = vld [vmem:[%s1018 + $0xc2] sm:$0xff]
        %v1574 = vld [vmem:[%s1018 + $0xca] sm:$0xff]
        %v1575 = vld [vmem:[%s1018 + $0xda] sm:$0xff]
        %v1576 = vld [vmem:[%s1018 + $0xe2] sm:$0xff]
        %v1577 = vld [vmem:[%s1018 + $0xf2] sm:$0xff]
        %v1578 = vld [vmem:[%s1018 + $0xfa] sm:$0xff]
        %v1579 = vld [vmem:[%s1018 + $0x10a] sm:$0xff]
        %v1580 = vld [vmem:[%s1018 + $0x112] sm:$0xff]
        %v1581 = vld [vmem:[%s1018 + $0x122] sm:$0xff]
        %v1582 = vld [vmem:[%s1018 + $0x12a] sm:$0xff]
        %v1583 = vld [vmem:[%s1018 + $0x13a] sm:$0xff]
        %v1584 = vld [vmem:[%s1018 + $0x142] sm:$0xff]
        %v1585 = vld [vmem:[%s1018 + $0x152] sm:$0xff]
        %v1586 = vld [vmem:[%s1018 + $0x15a] sm:$0xff]
        %v1587 = vld [vmem:[%s1018 + $0x16a] sm:$0xff]
        %v1588 = vld [vmem:[%s1018 + $0x172] sm:$0xff]
        %v1589 = vld [vmem:[%s1386 + $0x2] sm:$0x1]
        %v1590 = vlaneseq
        %v1591 = vshrl.u32 %v1590, 7
        %v1592 = vsub.s32 0, %v1591
        %v1593 = vrot.slane %v1589, %v1592
        %v1594 = vmul.f32 %v1557, %v1593
        %v1595 = vmul.f32 %v1558, %v1593
        %v1596 = vmul.f32 %v1559, %v1593
        %v1597 = vmul.f32 %v1560, %v1593
        %v1598 = vmul.f32 %v1561, %v1593
        %v1599 = vmul.f32 %v1562, %v1593
        %v1600 = vmul.f32 %v1563, %v1593
        %v1601 = vmul.f32 %v1564, %v1593
        %v1602 = vmul.f32 %v1565, %v1593
        %v1603 = vmul.f32 %v1566, %v1593
        %v1604 = vmul.f32 %v1567, %v1593
        %v1605 = vmul.f32 %v1568, %v1593
        %v1606 = vmul.f32 %v1569, %v1593
        %v1607 = vmul.f32 %v1570, %v1593
        %v1608 = vmul.f32 %v1571, %v1593
        %v1609 = vmul.f32 %v1572, %v1593
        %v1610 = vmul.f32 %v1573, %v1593
        %v1611 = vmul.f32 %v1574, %v1593
        %v1612 = vmul.f32 %v1575, %v1593
        %v1613 = vmul.f32 %v1576, %v1593
        %v1614 = vmul.f32 %v1577, %v1593
        %v1615 = vmul.f32 %v1578, %v1593
        %v1616 = vmul.f32 %v1579, %v1593
        %v1617 = vmul.f32 %v1580, %v1593
        %v1618 = vmul.f32 %v1581, %v1593
        %v1619 = vmul.f32 %v1582, %v1593
        %v1620 = vmul.f32 %v1583, %v1593
        %v1621 = vmul.f32 %v1584, %v1593
        %v1622 = vmul.f32 %v1585, %v1593
        %v1623 = vmul.f32 %v1586, %v1593
        %v1624 = vmul.f32 %v1587, %v1593
        %v1625 = vmul.f32 %v1588, %v1593
        %v1626 = vadd.f32 %v1525, %v1594
        %v1627 = vadd.f32 %v1526, %v1595
        %v1628 = vadd.f32 %v1527, %v1596
        %v1629 = vadd.f32 %v1528, %v1597
        %v1630 = vadd.f32 %v1529, %v1598
        %v1631 = vadd.f32 %v1530, %v1599
        %v1632 = vadd.f32 %v1531, %v1600
        %v1633 = vadd.f32 %v1532, %v1601
        %v1634 = vadd.f32 %v1533, %v1602
        %v1635 = vadd.f32 %v1534, %v1603
        %v1636 = vadd.f32 %v1535, %v1604
        %v1637 = vadd.f32 %v1536, %v1605
        %v1638 = vadd.f32 %v1537, %v1606
        %v1639 = vadd.f32 %v1538, %v1607
        %v1640 = vadd.f32 %v1539, %v1608
        %v1641 = vadd.f32 %v1540, %v1609
        %v1642 = vadd.f32 %v1541, %v1610
        %v1643 = vadd.f32 %v1542, %v1611
        %v1644 = vadd.f32 %v1543, %v1612
        %v1645 = vadd.f32 %v1544, %v1613
        %v1646 = vadd.f32 %v1545, %v1614
        %v1647 = vadd.f32 %v1546, %v1615
        %v1648 = vadd.f32 %v1547, %v1616
        %v1649 = vadd.f32 %v1548, %v1617
        %v1650 = vadd.f32 %v1549, %v1618
        %v1651 = vadd.f32 %v1550, %v1619
        %v1652 = vadd.f32 %v1551, %v1620
        %v1653 = vadd.f32 %v1552, %v1621
        %v1654 = vadd.f32 %v1553, %v1622
        %v1655 = vadd.f32 %v1554, %v1623
        %v1656 = vadd.f32 %v1555, %v1624
        %v1657 = vadd.f32 %v1556, %v1625
        %s1658 = scalar_lea.vmem [#allocation2], 48
        %v1659 = vld [vmem:[%s1658] sm:$0xff]
        %v1660 = vld [vmem:[%s1658 + $0x8] sm:$0xff]
        %v1661 = vld [vmem:[%s1658 + $0x18] sm:$0xff]
        %v1662 = vld [vmem:[%s1658 + $0x20] sm:$0xff]
        %v1663 = vld [vmem:[%s1658 + $0x30] sm:$0xff]
        %v1664 = vld [vmem:[%s1658 + $0x38] sm:$0xff]
        %v1665 = vld [vmem:[%s1658 + $0x48] sm:$0xff]
        %v1666 = vld [vmem:[%s1658 + $0x50] sm:$0xff]
        %v1667 = vld [vmem:[%s1658 + $0x60] sm:$0xff]
        %v1668 = vld [vmem:[%s1658 + $0x68] sm:$0xff]
        %v1669 = vld [vmem:[%s1658 + $0x78] sm:$0xff]
        %v1670 = vld [vmem:[%s1658 + $0x80] sm:$0xff]
        %v1671 = vld [vmem:[%s1658 + $0x90] sm:$0xff]
        %v1672 = vld [vmem:[%s1658 + $0x98] sm:$0xff]
        %v1673 = vld [vmem:[%s1658 + $0xa8] sm:$0xff]
        %v1674 = vld [vmem:[%s1658 + $0xb0] sm:$0xff]
        %v1675 = vld [vmem:[%s1658 + $0xc0] sm:$0xff]
        %v1676 = vld [vmem:[%s1658 + $0xc8] sm:$0xff]
        %v1677 = vld [vmem:[%s1658 + $0xd8] sm:$0xff]
        %v1678 = vld [vmem:[%s1658 + $0xe0] sm:$0xff]
        %v1679 = vld [vmem:[%s1658 + $0xf0] sm:$0xff]
        %v1680 = vld [vmem:[%s1658 + $0xf8] sm:$0xff]
        %v1681 = vld [vmem:[%s1658 + $0x108] sm:$0xff]
        %v1682 = vld [vmem:[%s1658 + $0x110] sm:$0xff]
        %v1683 = vld [vmem:[%s1658 + $0x120] sm:$0xff]
        %v1684 = vld [vmem:[%s1658 + $0x128] sm:$0xff]
        %v1685 = vld [vmem:[%s1658 + $0x138] sm:$0xff]
        %v1686 = vld [vmem:[%s1658 + $0x140] sm:$0xff]
        %v1687 = vld [vmem:[%s1658 + $0x150] sm:$0xff]
        %v1688 = vld [vmem:[%s1658 + $0x158] sm:$0xff]
        %v1689 = vld [vmem:[%s1658 + $0x168] sm:$0xff]
        %v1690 = vld [vmem:[%s1658 + $0x170] sm:$0xff]
        %s1691 = scalar_lea.vmem %s3, 8
        %v1692 = vld [vmem:[%s1691] sm:$0x1]
        %v1693 = vlaneseq
        %v1694 = vshrl.u32 %v1693, 7
        %v1695 = vsub.s32 0, %v1694
        %v1696 = vrot.slane %v1692, %v1695
        %v1697 = vmul.f32 %v1659, %v1696
        %v1698 = vmul.f32 %v1660, %v1696
        %v1699 = vmul.f32 %v1661, %v1696
        %v1700 = vmul.f32 %v1662, %v1696
        %v1701 = vmul.f32 %v1663, %v1696
        %v1702 = vmul.f32 %v1664, %v1696
        %v1703 = vmul.f32 %v1665, %v1696
        %v1704 = vmul.f32 %v1666, %v1696
        %v1705 = vmul.f32 %v1667, %v1696
        %v1706 = vmul.f32 %v1668, %v1696
        %v1707 = vmul.f32 %v1669, %v1696
        %v1708 = vmul.f32 %v1670, %v1696
        %v1709 = vmul.f32 %v1671, %v1696
        %v1710 = vmul.f32 %v1672, %v1696
        %v1711 = vmul.f32 %v1673, %v1696
        %v1712 = vmul.f32 %v1674, %v1696
        %v1713 = vmul.f32 %v1675, %v1696
        %v1714 = vmul.f32 %v1676, %v1696
        %v1715 = vmul.f32 %v1677, %v1696
        %v1716 = vmul.f32 %v1678, %v1696
        %v1717 = vmul.f32 %v1679, %v1696
        %v1718 = vmul.f32 %v1680, %v1696
        %v1719 = vmul.f32 %v1681, %v1696
        %v1720 = vmul.f32 %v1682, %v1696
        %v1721 = vmul.f32 %v1683, %v1696
        %v1722 = vmul.f32 %v1684, %v1696
        %v1723 = vmul.f32 %v1685, %v1696
        %v1724 = vmul.f32 %v1686, %v1696
        %v1725 = vmul.f32 %v1687, %v1696
        %v1726 = vmul.f32 %v1688, %v1696
        %v1727 = vmul.f32 %v1689, %v1696
        %v1728 = vmul.f32 %v1690, %v1696
        %v1729 = vadd.f32 %v1626, %v1697
        %v1730 = vadd.f32 %v1627, %v1698
        %v1731 = vadd.f32 %v1628, %v1699
        %v1732 = vadd.f32 %v1629, %v1700
        %v1733 = vadd.f32 %v1630, %v1701
        %v1734 = vadd.f32 %v1631, %v1702
        %v1735 = vadd.f32 %v1632, %v1703
        %v1736 = vadd.f32 %v1633, %v1704
        %v1737 = vadd.f32 %v1634, %v1705
        %v1738 = vadd.f32 %v1635, %v1706
        %v1739 = vadd.f32 %v1636, %v1707
        %v1740 = vadd.f32 %v1637, %v1708
        %v1741 = vadd.f32 %v1638, %v1709
        %v1742 = vadd.f32 %v1639, %v1710
        %v1743 = vadd.f32 %v1640, %v1711
        %v1744 = vadd.f32 %v1641, %v1712
        %v1745 = vadd.f32 %v1642, %v1713
        %v1746 = vadd.f32 %v1643, %v1714
        %v1747 = vadd.f32 %v1644, %v1715
        %v1748 = vadd.f32 %v1645, %v1716
        %v1749 = vadd.f32 %v1646, %v1717
        %v1750 = vadd.f32 %v1647, %v1718
        %v1751 = vadd.f32 %v1648, %v1719
        %v1752 = vadd.f32 %v1649, %v1720
        %v1753 = vadd.f32 %v1650, %v1721
        %v1754 = vadd.f32 %v1651, %v1722
        %v1755 = vadd.f32 %v1652, %v1723
        %v1756 = vadd.f32 %v1653, %v1724
        %v1757 = vadd.f32 %v1654, %v1725
        %v1758 = vadd.f32 %v1655, %v1726
        %v1759 = vadd.f32 %v1656, %v1727
        %v1760 = vadd.f32 %v1657, %v1728
        %v1761 = vld [vmem:[%s1658 + $0x1] sm:$0xff]
        %v1762 = vld [vmem:[%s1658 + $0x9] sm:$0xff]
        %v1763 = vld [vmem:[%s1658 + $0x19] sm:$0xff]
        %v1764 = vld [vmem:[%s1658 + $0x21] sm:$0xff]
        %v1765 = vld [vmem:[%s1658 + $0x31] sm:$0xff]
        %v1766 = vld [vmem:[%s1658 + $0x39] sm:$0xff]
        %v1767 = vld [vmem:[%s1658 + $0x49] sm:$0xff]
        %v1768 = vld [vmem:[%s1658 + $0x51] sm:$0xff]
        %v1769 = vld [vmem:[%s1658 + $0x61] sm:$0xff]
        %v1770 = vld [vmem:[%s1658 + $0x69] sm:$0xff]
        %v1771 = vld [vmem:[%s1658 + $0x79] sm:$0xff]
        %v1772 = vld [vmem:[%s1658 + $0x81] sm:$0xff]
        %v1773 = vld [vmem:[%s1658 + $0x91] sm:$0xff]
        %v1774 = vld [vmem:[%s1658 + $0x99] sm:$0xff]
        %v1775 = vld [vmem:[%s1658 + $0xa9] sm:$0xff]
        %v1776 = vld [vmem:[%s1658 + $0xb1] sm:$0xff]
        %v1777 = vld [vmem:[%s1658 + $0xc1] sm:$0xff]
        %v1778 = vld [vmem:[%s1658 + $0xc9] sm:$0xff]
        %v1779 = vld [vmem:[%s1658 + $0xd9] sm:$0xff]
        %v1780 = vld [vmem:[%s1658 + $0xe1] sm:$0xff]
        %v1781 = vld [vmem:[%s1658 + $0xf1] sm:$0xff]
        %v1782 = vld [vmem:[%s1658 + $0xf9] sm:$0xff]
        %v1783 = vld [vmem:[%s1658 + $0x109] sm:$0xff]
        %v1784 = vld [vmem:[%s1658 + $0x111] sm:$0xff]
        %v1785 = vld [vmem:[%s1658 + $0x121] sm:$0xff]
        %v1786 = vld [vmem:[%s1658 + $0x129] sm:$0xff]
        %v1787 = vld [vmem:[%s1658 + $0x139] sm:$0xff]
        %v1788 = vld [vmem:[%s1658 + $0x141] sm:$0xff]
        %v1789 = vld [vmem:[%s1658 + $0x151] sm:$0xff]
        %v1790 = vld [vmem:[%s1658 + $0x159] sm:$0xff]
        %v1791 = vld [vmem:[%s1658 + $0x169] sm:$0xff]
        %v1792 = vld [vmem:[%s1658 + $0x171] sm:$0xff]
        %v1793 = vld [vmem:[%s1691 + $0x1] sm:$0x1]
        %v1794 = vlaneseq
        %v1795 = vshrl.u32 %v1794, 7
        %v1796 = vsub.s32 0, %v1795
        %v1797 = vrot.slane %v1793, %v1796
        %v1798 = vmul.f32 %v1761, %v1797
        %v1799 = vmul.f32 %v1762, %v1797
        %v1800 = vmul.f32 %v1763, %v1797
        %v1801 = vmul.f32 %v1764, %v1797
        %v1802 = vmul.f32 %v1765, %v1797
        %v1803 = vmul.f32 %v1766, %v1797
        %v1804 = vmul.f32 %v1767, %v1797
        %v1805 = vmul.f32 %v1768, %v1797
        %v1806 = vmul.f32 %v1769, %v1797
        %v1807 = vmul.f32 %v1770, %v1797
        %v1808 = vmul.f32 %v1771, %v1797
        %v1809 = vmul.f32 %v1772, %v1797
        %v1810 = vmul.f32 %v1773, %v1797
        %v1811 = vmul.f32 %v1774, %v1797
        %v1812 = vmul.f32 %v1775, %v1797
        %v1813 = vmul.f32 %v1776, %v1797
        %v1814 = vmul.f32 %v1777, %v1797
        %v1815 = vmul.f32 %v1778, %v1797
        %v1816 = vmul.f32 %v1779, %v1797
        %v1817 = vmul.f32 %v1780, %v1797
        %v1818 = vmul.f32 %v1781, %v1797
        %v1819 = vmul.f32 %v1782, %v1797
        %v1820 = vmul.f32 %v1783, %v1797
        %v1821 = vmul.f32 %v1784, %v1797
        %v1822 = vmul.f32 %v1785, %v1797
        %v1823 = vmul.f32 %v1786, %v1797
        %v1824 = vmul.f32 %v1787, %v1797
        %v1825 = vmul.f32 %v1788, %v1797
        %v1826 = vmul.f32 %v1789, %v1797
        %v1827 = vmul.f32 %v1790, %v1797
        %v1828 = vmul.f32 %v1791, %v1797
        %v1829 = vmul.f32 %v1792, %v1797
        %v1830 = vadd.f32 %v1729, %v1798
        %v1831 = vadd.f32 %v1730, %v1799
        %v1832 = vadd.f32 %v1731, %v1800
        %v1833 = vadd.f32 %v1732, %v1801
        %v1834 = vadd.f32 %v1733, %v1802
        %v1835 = vadd.f32 %v1734, %v1803
        %v1836 = vadd.f32 %v1735, %v1804
        %v1837 = vadd.f32 %v1736, %v1805
        %v1838 = vadd.f32 %v1737, %v1806
        %v1839 = vadd.f32 %v1738, %v1807
        %v1840 = vadd.f32 %v1739, %v1808
        %v1841 = vadd.f32 %v1740, %v1809
        %v1842 = vadd.f32 %v1741, %v1810
        %v1843 = vadd.f32 %v1742, %v1811
        %v1844 = vadd.f32 %v1743, %v1812
        %v1845 = vadd.f32 %v1744, %v1813
        %v1846 = vadd.f32 %v1745, %v1814
        %v1847 = vadd.f32 %v1746, %v1815
        %v1848 = vadd.f32 %v1747, %v1816
        %v1849 = vadd.f32 %v1748, %v1817
        %v1850 = vadd.f32 %v1749, %v1818
        %v1851 = vadd.f32 %v1750, %v1819
        %v1852 = vadd.f32 %v1751, %v1820
        %v1853 = vadd.f32 %v1752, %v1821
        %v1854 = vadd.f32 %v1753, %v1822
        %v1855 = vadd.f32 %v1754, %v1823
        %v1856 = vadd.f32 %v1755, %v1824
        %v1857 = vadd.f32 %v1756, %v1825
        %v1858 = vadd.f32 %v1757, %v1826
        %v1859 = vadd.f32 %v1758, %v1827
        %v1860 = vadd.f32 %v1759, %v1828
        %v1861 = vadd.f32 %v1760, %v1829
        %v1862 = vld [vmem:[%s1658 + $0x2] sm:$0xff]
        %v1863 = vld [vmem:[%s1658 + $0xa] sm:$0xff]
        %v1864 = vld [vmem:[%s1658 + $0x1a] sm:$0xff]
        %v1865 = vld [vmem:[%s1658 + $0x22] sm:$0xff]
        %v1866 = vld [vmem:[%s1658 + $0x32] sm:$0xff]
        %v1867 = vld [vmem:[%s1658 + $0x3a] sm:$0xff]
        %v1868 = vld [vmem:[%s1658 + $0x4a] sm:$0xff]
        %v1869 = vld [vmem:[%s1658 + $0x52] sm:$0xff]
        %v1870 = vld [vmem:[%s1658 + $0x62] sm:$0xff]
        %v1871 = vld [vmem:[%s1658 + $0x6a] sm:$0xff]
        %v1872 = vld [vmem:[%s1658 + $0x7a] sm:$0xff]
        %v1873 = vld [vmem:[%s1658 + $0x82] sm:$0xff]
        %v1874 = vld [vmem:[%s1658 + $0x92] sm:$0xff]
        %v1875 = vld [vmem:[%s1658 + $0x9a] sm:$0xff]
        %v1876 = vld [vmem:[%s1658 + $0xaa] sm:$0xff]
        %v1877 = vld [vmem:[%s1658 + $0xb2] sm:$0xff]
        %v1878 = vld [vmem:[%s1658 + $0xc2] sm:$0xff]
        %v1879 = vld [vmem:[%s1658 + $0xca] sm:$0xff]
        %v1880 = vld [vmem:[%s1658 + $0xda] sm:$0xff]
        %v1881 = vld [vmem:[%s1658 + $0xe2] sm:$0xff]
        %v1882 = vld [vmem:[%s1658 + $0xf2] sm:$0xff]
        %v1883 = vld [vmem:[%s1658 + $0xfa] sm:$0xff]
        %v1884 = vld [vmem:[%s1658 + $0x10a] sm:$0xff]
        %v1885 = vld [vmem:[%s1658 + $0x112] sm:$0xff]
        %v1886 = vld [vmem:[%s1658 + $0x122] sm:$0xff]
        %v1887 = vld [vmem:[%s1658 + $0x12a] sm:$0xff]
        %v1888 = vld [vmem:[%s1658 + $0x13a] sm:$0xff]
        %v1889 = vld [vmem:[%s1658 + $0x142] sm:$0xff]
        %v1890 = vld [vmem:[%s1658 + $0x152] sm:$0xff]
        %v1891 = vld [vmem:[%s1658 + $0x15a] sm:$0xff]
        %v1892 = vld [vmem:[%s1658 + $0x16a] sm:$0xff]
        %v1893 = vld [vmem:[%s1658 + $0x172] sm:$0xff]
        %v1894 = vld [vmem:[%s1691 + $0x2] sm:$0x1]
        %v1895 = vlaneseq
        %v1896 = vshrl.u32 %v1895, 7
        %v1897 = vsub.s32 0, %v1896
        %v1898 = vrot.slane %v1894, %v1897
        %v1899 = vmul.f32 %v1862, %v1898
        %v1900 = vmul.f32 %v1863, %v1898
        %v1901 = vmul.f32 %v1864, %v1898
        %v1902 = vmul.f32 %v1865, %v1898
        %v1903 = vmul.f32 %v1866, %v1898
        %v1904 = vmul.f32 %v1867, %v1898
        %v1905 = vmul.f32 %v1868, %v1898
        %v1906 = vmul.f32 %v1869, %v1898
        %v1907 = vmul.f32 %v1870, %v1898
        %v1908 = vmul.f32 %v1871, %v1898
        %v1909 = vmul.f32 %v1872, %v1898
        %v1910 = vmul.f32 %v1873, %v1898
        %v1911 = vmul.f32 %v1874, %v1898
        %v1912 = vmul.f32 %v1875, %v1898
        %v1913 = vmul.f32 %v1876, %v1898
        %v1914 = vmul.f32 %v1877, %v1898
        %v1915 = vmul.f32 %v1878, %v1898
        %v1916 = vmul.f32 %v1879, %v1898
        %v1917 = vmul.f32 %v1880, %v1898
        %v1918 = vmul.f32 %v1881, %v1898
        %v1919 = vmul.f32 %v1882, %v1898
        %v1920 = vmul.f32 %v1883, %v1898
        %v1921 = vmul.f32 %v1884, %v1898
        %v1922 = vmul.f32 %v1885, %v1898
        %v1923 = vmul.f32 %v1886, %v1898
        %v1924 = vmul.f32 %v1887, %v1898
        %v1925 = vmul.f32 %v1888, %v1898
        %v1926 = vmul.f32 %v1889, %v1898
        %v1927 = vmul.f32 %v1890, %v1898
        %v1928 = vmul.f32 %v1891, %v1898
        %v1929 = vmul.f32 %v1892, %v1898
        %v1930 = vmul.f32 %v1893, %v1898
        %v1931 = vadd.f32 %v1830, %v1899
        %v1932 = vadd.f32 %v1831, %v1900
        %v1933 = vadd.f32 %v1832, %v1901
        %v1934 = vadd.f32 %v1833, %v1902
        %v1935 = vadd.f32 %v1834, %v1903
        %v1936 = vadd.f32 %v1835, %v1904
        %v1937 = vadd.f32 %v1836, %v1905
        %v1938 = vadd.f32 %v1837, %v1906
        %v1939 = vadd.f32 %v1838, %v1907
        %v1940 = vadd.f32 %v1839, %v1908
        %v1941 = vadd.f32 %v1840, %v1909
        %v1942 = vadd.f32 %v1841, %v1910
        %v1943 = vadd.f32 %v1842, %v1911
        %v1944 = vadd.f32 %v1843, %v1912
        %v1945 = vadd.f32 %v1844, %v1913
        %v1946 = vadd.f32 %v1845, %v1914
        %v1947 = vadd.f32 %v1846, %v1915
        %v1948 = vadd.f32 %v1847, %v1916
        %v1949 = vadd.f32 %v1848, %v1917
        %v1950 = vadd.f32 %v1849, %v1918
        %v1951 = vadd.f32 %v1850, %v1919
        %v1952 = vadd.f32 %v1851, %v1920
        %v1953 = vadd.f32 %v1852, %v1921
        %v1954 = vadd.f32 %v1853, %v1922
        %v1955 = vadd.f32 %v1854, %v1923
        %v1956 = vadd.f32 %v1855, %v1924
        %v1957 = vadd.f32 %v1856, %v1925
        %v1958 = vadd.f32 %v1857, %v1926
        %v1959 = vadd.f32 %v1858, %v1927
        %v1960 = vadd.f32 %v1859, %v1928
        %v1961 = vadd.f32 %v1860, %v1929
        %v1962 = vadd.f32 %v1861, %v1930
        %v1963 = vld [vmem:[%s4] sm:$0x1]
        %v1965 = vlaneseq
        %v1966 = vshrl.u32 %v1965, 7
        %v1967 = vsub.s32 0, %v1966
        %v1968 = vrot.slane %v1963, %v1967
        %v1970 = vadd.f32 %v1931, %v1968
        %v1971 = vadd.f32 %v1932, %v1968
        %v1972 = vadd.f32 %v1933, %v1968
        %v1973 = vadd.f32 %v1934, %v1968
        %v1974 = vadd.f32 %v1935, %v1968
        %v1975 = vadd.f32 %v1936, %v1968
        %v1976 = vadd.f32 %v1937, %v1968
        %v1977 = vadd.f32 %v1938, %v1968
        %v1978 = vadd.f32 %v1939, %v1968
        %v1979 = vadd.f32 %v1940, %v1968
        %v1980 = vadd.f32 %v1941, %v1968
        %v1981 = vadd.f32 %v1942, %v1968
        %v1982 = vadd.f32 %v1943, %v1968
        %v1983 = vadd.f32 %v1944, %v1968
        %v1984 = vadd.f32 %v1945, %v1968
        %v1985 = vadd.f32 %v1946, %v1968
        %v1986 = vadd.f32 %v1947, %v1968
        %v1987 = vadd.f32 %v1948, %v1968
        %v1988 = vadd.f32 %v1949, %v1968
        %v1989 = vadd.f32 %v1950, %v1968
        %v1990 = vadd.f32 %v1951, %v1968
        %v1991 = vadd.f32 %v1952, %v1968
        %v1992 = vadd.f32 %v1953, %v1968
        %v1993 = vadd.f32 %v1954, %v1968
        %v1994 = vadd.f32 %v1955, %v1968
        %v1995 = vadd.f32 %v1956, %v1968
        %v1996 = vadd.f32 %v1957, %v1968
        %v1997 = vadd.f32 %v1958, %v1968
        %v1998 = vadd.f32 %v1959, %v1968
        %v1999 = vadd.f32 %v1960, %v1968
        %v2000 = vadd.f32 %v1961, %v1968
        %v2001 = vadd.f32 %v1962, %v1968
        %v2002 = vadd.f32 %v1970, 3.0
        %v2003 = vadd.f32 %v1971, 3.0
        %v2004 = vadd.f32 %v1972, 3.0
        %v2005 = vadd.f32 %v1973, 3.0
        %v2006 = vadd.f32 %v1974, 3.0
        %v2007 = vadd.f32 %v1975, 3.0
        %v2008 = vadd.f32 %v1976, 3.0
        %v2009 = vadd.f32 %v1977, 3.0
        %v2010 = vadd.f32 %v1978, 3.0
        %v2011 = vadd.f32 %v1979, 3.0
        %v2012 = vadd.f32 %v1980, 3.0
        %v2013 = vadd.f32 %v1981, 3.0
        %v2014 = vadd.f32 %v1982, 3.0
        %v2015 = vadd.f32 %v1983, 3.0
        %v2016 = vadd.f32 %v1984, 3.0
        %v2017 = vadd.f32 %v1985, 3.0
        %v2018 = vadd.f32 %v1986, 3.0
        %v2019 = vadd.f32 %v1987, 3.0
        %v2020 = vadd.f32 %v1988, 3.0
        %v2021 = vadd.f32 %v1989, 3.0
        %v2022 = vadd.f32 %v1990, 3.0
        %v2023 = vadd.f32 %v1991, 3.0
        %v2024 = vadd.f32 %v1992, 3.0
        %v2025 = vadd.f32 %v1993, 3.0
        %v2026 = vadd.f32 %v1994, 3.0
        %v2027 = vadd.f32 %v1995, 3.0
        %v2028 = vadd.f32 %v1996, 3.0
        %v2029 = vadd.f32 %v1997, 3.0
        %v2030 = vadd.f32 %v1998, 3.0
        %v2031 = vadd.f32 %v1999, 3.0
        %v2032 = vadd.f32 %v2000, 3.0
        %v2033 = vadd.f32 %v2001, 3.0
        %v2034 = vmax.f32 %v2002, 0.0
        %v2035 = vmax.f32 %v2003, 0.0
        %v2036 = vmax.f32 %v2004, 0.0
        %v2037 = vmax.f32 %v2005, 0.0
        %v2038 = vmax.f32 %v2006, 0.0
        %v2039 = vmax.f32 %v2007, 0.0
        %v2040 = vmax.f32 %v2008, 0.0
        %v2041 = vmax.f32 %v2009, 0.0
        %v2042 = vmax.f32 %v2010, 0.0
        %v2043 = vmax.f32 %v2011, 0.0
        %v2044 = vmax.f32 %v2012, 0.0
        %v2045 = vmax.f32 %v2013, 0.0
        %v2046 = vmax.f32 %v2014, 0.0
        %v2047 = vmax.f32 %v2015, 0.0
        %v2048 = vmax.f32 %v2016, 0.0
        %v2049 = vmax.f32 %v2017, 0.0
        %v2050 = vmax.f32 %v2018, 0.0
        %v2051 = vmax.f32 %v2019, 0.0
        %v2052 = vmax.f32 %v2020, 0.0
        %v2053 = vmax.f32 %v2021, 0.0
        %v2054 = vmax.f32 %v2022, 0.0
        %v2055 = vmax.f32 %v2023, 0.0
        %v2056 = vmax.f32 %v2024, 0.0
        %v2057 = vmax.f32 %v2025, 0.0
        %v2058 = vmax.f32 %v2026, 0.0
        %v2059 = vmax.f32 %v2027, 0.0
        %v2060 = vmax.f32 %v2028, 0.0
        %v2061 = vmax.f32 %v2029, 0.0
        %v2062 = vmax.f32 %v2030, 0.0
        %v2063 = vmax.f32 %v2031, 0.0
        %v2064 = vmax.f32 %v2032, 0.0
        %v2065 = vmax.f32 %v2033, 0.0
        %v2066 = vmin.f32 %v2034, 6.0
        %v2067 = vmin.f32 %v2035, 6.0
        %v2068 = vmin.f32 %v2036, 6.0
        %v2069 = vmin.f32 %v2037, 6.0
        %v2070 = vmin.f32 %v2038, 6.0
        %v2071 = vmin.f32 %v2039, 6.0
        %v2072 = vmin.f32 %v2040, 6.0
        %v2073 = vmin.f32 %v2041, 6.0
        %v2074 = vmin.f32 %v2042, 6.0
        %v2075 = vmin.f32 %v2043, 6.0
        %v2076 = vmin.f32 %v2044, 6.0
        %v2077 = vmin.f32 %v2045, 6.0
        %v2078 = vmin.f32 %v2046, 6.0
        %v2079 = vmin.f32 %v2047, 6.0
        %v2080 = vmin.f32 %v2048, 6.0
        %v2081 = vmin.f32 %v2049, 6.0
        %v2082 = vmin.f32 %v2050, 6.0
        %v2083 = vmin.f32 %v2051, 6.0
        %v2084 = vmin.f32 %v2052, 6.0
        %v2085 = vmin.f32 %v2053, 6.0
        %v2086 = vmin.f32 %v2054, 6.0
        %v2087 = vmin.f32 %v2055, 6.0
        %v2088 = vmin.f32 %v2056, 6.0
        %v2089 = vmin.f32 %v2057, 6.0
        %v2090 = vmin.f32 %v2058, 6.0
        %v2091 = vmin.f32 %v2059, 6.0
        %v2092 = vmin.f32 %v2060, 6.0
        %v2093 = vmin.f32 %v2061, 6.0
        %v2094 = vmin.f32 %v2062, 6.0
        %v2095 = vmin.f32 %v2063, 6.0
        %v2096 = vmin.f32 %v2064, 6.0
        %v2097 = vmin.f32 %v2065, 6.0
        %v2098 = vmul.f32 %v2066, 0.16666667
        %v2099 = vmul.f32 %v2067, 0.16666667
        %v2100 = vmul.f32 %v2068, 0.16666667
        %v2101 = vmul.f32 %v2069, 0.16666667
        %v2102 = vmul.f32 %v2070, 0.16666667
        %v2103 = vmul.f32 %v2071, 0.16666667
        %v2104 = vmul.f32 %v2072, 0.16666667
        %v2105 = vmul.f32 %v2073, 0.16666667
        %v2106 = vmul.f32 %v2074, 0.16666667
        %v2107 = vmul.f32 %v2075, 0.16666667
        %v2108 = vmul.f32 %v2076, 0.16666667
        %v2109 = vmul.f32 %v2077, 0.16666667
        %v2110 = vmul.f32 %v2078, 0.16666667
        %v2111 = vmul.f32 %v2079, 0.16666667
        %v2112 = vmul.f32 %v2080, 0.16666667
        %v2113 = vmul.f32 %v2081, 0.16666667
        %v2114 = vmul.f32 %v2082, 0.16666667
        %v2115 = vmul.f32 %v2083, 0.16666667
        %v2116 = vmul.f32 %v2084, 0.16666667
        %v2117 = vmul.f32 %v2085, 0.16666667
        %v2118 = vmul.f32 %v2086, 0.16666667
        %v2119 = vmul.f32 %v2087, 0.16666667
        %v2120 = vmul.f32 %v2088, 0.16666667
        %v2121 = vmul.f32 %v2089, 0.16666667
        %v2122 = vmul.f32 %v2090, 0.16666667
        %v2123 = vmul.f32 %v2091, 0.16666667
        %v2124 = vmul.f32 %v2092, 0.16666667
        %v2125 = vmul.f32 %v2093, 0.16666667
        %v2126 = vmul.f32 %v2094, 0.16666667
        %v2127 = vmul.f32 %v2095, 0.16666667
        %v2128 = vmul.f32 %v2096, 0.16666667
        %v2129 = vmul.f32 %v2097, 0.16666667
        %v2130 = vmul.f32 %v1970, %v2098
        %v2131 = vmul.f32 %v1971, %v2099
        %v2132 = vmul.f32 %v1972, %v2100
        %v2133 = vmul.f32 %v1973, %v2101
        %v2134 = vmul.f32 %v1974, %v2102
        %v2135 = vmul.f32 %v1975, %v2103
        %v2136 = vmul.f32 %v1976, %v2104
        %v2137 = vmul.f32 %v1977, %v2105
        %v2138 = vmul.f32 %v1978, %v2106
        %v2139 = vmul.f32 %v1979, %v2107
        %v2140 = vmul.f32 %v1980, %v2108
        %v2141 = vmul.f32 %v1981, %v2109
        %v2142 = vmul.f32 %v1982, %v2110
        %v2143 = vmul.f32 %v1983, %v2111
        %v2144 = vmul.f32 %v1984, %v2112
        %v2145 = vmul.f32 %v1985, %v2113
        %v2146 = vmul.f32 %v1986, %v2114
        %v2147 = vmul.f32 %v1987, %v2115
        %v2148 = vmul.f32 %v1988, %v2116
        %v2149 = vmul.f32 %v1989, %v2117
        %v2150 = vmul.f32 %v1990, %v2118
        %v2151 = vmul.f32 %v1991, %v2119
        %v2152 = vmul.f32 %v1992, %v2120
        %v2153 = vmul.f32 %v1993, %v2121
        %v2154 = vmul.f32 %v1994, %v2122
        %v2155 = vmul.f32 %v1995, %v2123
        %v2156 = vmul.f32 %v1996, %v2124
        %v2157 = vmul.f32 %v1997, %v2125
        %v2158 = vmul.f32 %v1998, %v2126
        %v2159 = vmul.f32 %v1999, %v2127
        %v2160 = vmul.f32 %v2000, %v2128
        %v2161 = vmul.f32 %v2001, %v2129
        %v2162 = vld [vmem:[%s5] sm:$0xff]
        %v2163 = vld [vmem:[%s5 + $0x8] sm:$0xff]
        %v2164 = vld [vmem:[%s5 + $0x10] sm:$0xff]
        %v2165 = vld [vmem:[%s5 + $0x18] sm:$0xff]
        %v2166 = vld [vmem:[%s6] sm:$0x1]
        %v2168 = vlaneseq
        %v2169 = vshrl.u32 %v2168, 7
        %v2170 = vsub.s32 0, %v2169
        %v2171 = vrot.slane %v2166, %v2170
        %v2174 = vsel %vm962, %v2130, 0
        %v2177 = vsel %vm962, %v2131, 0
        %v2180 = vsel %vm962, %v2132, 0
        %v2183 = vsel %vm962, %v2133, 0
        %v2186 = vsel %vm962, %v2134, 0
        %v2189 = vsel %vm962, %v2135, 0
        %v2192 = vsel %vm962, %v2136, 0
        %v2195 = vsel %vm962, %v2137, 0
        %v2198 = vsel %vm962, %v2138, 0
        %v2201 = vsel %vm962, %v2139, 0
        %v2204 = vsel %vm962, %v2140, 0
        %v2207 = vsel %vm962, %v2141, 0
        %v2210 = vsel %vm962, %v2142, 0
        %v2213 = vsel %vm962, %v2143, 0
        %v2216 = vsel %vm962, %v2144, 0
        %v2219 = vsel %vm962, %v2145, 0
        %v2222 = vsel %vm962, %v2146, 0
        %v2225 = vsel %vm962, %v2147, 0
        %v2228 = vsel %vm962, %v2148, 0
        %v2231 = vsel %vm962, %v2149, 0
        %v2234 = vsel %vm962, %v2150, 0
        %v2237 = vsel %vm962, %v2151, 0
        %v2240 = vsel %vm962, %v2152, 0
        %v2243 = vsel %vm962, %v2153, 0
        %v2246 = vsel %vm962, %v2154, 0
        %v2249 = vsel %vm962, %v2155, 0
        %v2252 = vsel %vm962, %v2156, 0
        %v2255 = vsel %vm962, %v2157, 0
        %v2258 = vsel %vm962, %v2158, 0
        %v2261 = vsel %vm962, %v2159, 0
        %v2264 = vsel %vm962, %v2160, 0
        %v2267 = vsel %vm962, %v2161, 0
        %2269 = vmatprep.subr.mxu0 0.0
        %2270 = vmatpush1.msra.mxu0 0.0
        %2271 = vmatprep.subr.mxu0 0.0
        %2272 = vmatpush1.msra.mxu0 0.0
        %2273 = vmatprep.subr.mxu0 0.0
        %2274 = vmatpush1.msra.mxu0 0.0
        %2275 = vmatprep.subr.mxu0 0.0
        %2276 = vmatpush1.msra.mxu0 0.0
        %2277 = vmatprep.subr.mxu0 0.0
        %2278 = vmatpush1.msra.mxu0 0.0
        %2279 = vmatprep.subr.mxu0 0.0
        %2280 = vmatpush1.msra.mxu0 0.0
        %2281 = vmatprep.subr.mxu0 0.0
        %2282 = vmatpush1.msra.mxu0 0.0
        %2283 = vmatprep.subr.mxu0 0.0
        %2284 = vmatpush1.msra.mxu0 0.0
        %2285 = vmatprep.subr.mxu0 0.0
        %2286 = vmatpush1.msra.mxu0 0.0
        %2287 = vmatprep.subr.mxu0 0.0
        %2288 = vmatpush1.msra.mxu0 0.0
        %2289 = vmatprep.subr.mxu0 0.0
        %2290 = vmatpush1.msra.mxu0 0.0
        %2291 = vmatprep.subr.mxu0 0.0
        %2292 = vmatpush1.msra.mxu0 0.0
        %2293 = vmatprep.subr.mxu0 0.0
        %2294 = vmatpush1.msra.mxu0 %v2165
        %2295 = vmatprep.subr.mxu0 0.0
        %2296 = vmatpush1.msra.mxu0 %v2164
        %2297 = vmatprep.subr.mxu0 0.0
        %2298 = vmatpush1.msra.mxu0 %v2163
        %2299 = vmatprep.subr.mxu0 0.0
        %2300 = vmatpush1.msra.mxu0 %v2162
        %2301 = vmatprep.subr.mxu0 0.0
        %2302 = vmatpush2.msra.mxu0 0.0
        %2303 = vmatprep.subr.mxu0 0.0
        %2304 = vmatpush2.msra.mxu0 0.0
        %2305 = vmatprep.subr.mxu0 0.0
        %2306 = vmatpush2.msra.mxu0 0.0
        %2307 = vmatprep.subr.mxu0 0.0
        %2308 = vmatpush2.msra.mxu0 0.0
        %2309 = vmatprep.subr.mxu0 0.0
        %2310 = vmatpush2.msra.mxu0 0.0
        %2311 = vmatprep.subr.mxu0 0.0
        %2312 = vmatpush2.msra.mxu0 0.0
        %2313 = vmatprep.subr.mxu0 0.0
        %2314 = vmatpush2.msra.mxu0 0.0
        %2315 = vmatprep.subr.mxu0 0.0
        %2316 = vmatpush2.msra.mxu0 0.0
        %2317 = vmatprep.subr.mxu0 0.0
        %2318 = vmatpush2.msra.mxu0 0.0
        %2319 = vmatprep.subr.mxu0 0.0
        %2320 = vmatpush2.msra.mxu0 0.0
        %2321 = vmatprep.subr.mxu0 0.0
        %2322 = vmatpush2.msra.mxu0 0.0
        %2323 = vmatprep.subr.mxu0 0.0
        %2324 = vmatpush2.msra.mxu0 0.0
        %2325 = vmatprep.subr.mxu0 0.0
        %2326 = vmatpush2.msra.mxu0 0.0
        %2327 = vmatprep.subr.mxu0 0.0
        %2328 = vmatpush2.msra.mxu0 0.0
        %2329 = vmatprep.subr.mxu0 0.0
        %2330 = vmatpush2.msra.mxu0 0.0
        %2331 = vmatprep.subr.mxu0 0.0
        %2332 = vmatpush2.msra.mxu0 0.0
        %2333 = vmatprep.mubr.f32.mxu0 0.0
        %2334 = vmatmul.mubr.f32.gmra.mxu0 %v2174
        %v2335 = vpop.f32.mrf.mxu0
        %v2336 = vadd.f32 %v2171, %v2335
        %v2337 = vpop.f32.mrf.mxu0
        %2338 = vmatprep.mubr.f32.mxu0 0.0
        %2339 = vmatmul.mubr.f32.gmra.mxu0 %v2177
        %v2340 = vpop.f32.mrf.mxu0
        %v2341 = vadd.f32 %v2171, %v2340
        %v2342 = vpop.f32.mrf.mxu0
        %2343 = vmatprep.mubr.f32.mxu0 0.0
        %2344 = vmatmul.mubr.f32.gmra.mxu0 %v2180
        %v2345 = vpop.f32.mrf.mxu0
        %v2346 = vadd.f32 %v2171, %v2345
        %v2347 = vpop.f32.mrf.mxu0
        %2348 = vmatprep.mubr.f32.mxu0 0.0
        %2349 = vmatmul.mubr.f32.gmra.mxu0 %v2183
        %v2350 = vpop.f32.mrf.mxu0
        %v2351 = vadd.f32 %v2171, %v2350
        %v2352 = vpop.f32.mrf.mxu0
        %2353 = vmatprep.mubr.f32.mxu0 0.0
        %2354 = vmatmul.mubr.f32.gmra.mxu0 %v2186
        %v2355 = vpop.f32.mrf.mxu0
        %v2356 = vadd.f32 %v2171, %v2355
        %v2357 = vpop.f32.mrf.mxu0
        %2358 = vmatprep.mubr.f32.mxu0 0.0
        %2359 = vmatmul.mubr.f32.gmra.mxu0 %v2189
        %v2360 = vpop.f32.mrf.mxu0
        %v2361 = vadd.f32 %v2171, %v2360
        %v2362 = vpop.f32.mrf.mxu0
        %2363 = vmatprep.mubr.f32.mxu0 0.0
        %2364 = vmatmul.mubr.f32.gmra.mxu0 %v2192
        %v2365 = vpop.f32.mrf.mxu0
        %v2366 = vadd.f32 %v2171, %v2365
        %v2367 = vpop.f32.mrf.mxu0
        %2368 = vmatprep.mubr.f32.mxu0 0.0
        %2369 = vmatmul.mubr.f32.gmra.mxu0 %v2195
        %v2370 = vpop.f32.mrf.mxu0
        %v2371 = vadd.f32 %v2171, %v2370
        %v2372 = vpop.f32.mrf.mxu0
        %2373 = vmatprep.mubr.f32.mxu0 0.0
        %2374 = vmatmul.mubr.f32.gmra.mxu0 %v2198
        %v2375 = vpop.f32.mrf.mxu0
        %v2376 = vadd.f32 %v2171, %v2375
        %v2377 = vpop.f32.mrf.mxu0
        %2378 = vmatprep.mubr.f32.mxu0 0.0
        %2379 = vmatmul.mubr.f32.gmra.mxu0 %v2201
        %v2380 = vpop.f32.mrf.mxu0
        %v2381 = vadd.f32 %v2171, %v2380
        %v2382 = vpop.f32.mrf.mxu0
        %2383 = vmatprep.mubr.f32.mxu0 0.0
        %2384 = vmatmul.mubr.f32.gmra.mxu0 %v2204
        %v2385 = vpop.f32.mrf.mxu0
        %v2386 = vadd.f32 %v2171, %v2385
        %v2387 = vpop.f32.mrf.mxu0
        %2388 = vmatprep.mubr.f32.mxu0 0.0
        %2389 = vmatmul.mubr.f32.gmra.mxu0 %v2207
        %v2390 = vpop.f32.mrf.mxu0
        %v2391 = vadd.f32 %v2171, %v2390
        %v2392 = vpop.f32.mrf.mxu0
        %2393 = vmatprep.mubr.f32.mxu0 0.0
        %2394 = vmatmul.mubr.f32.gmra.mxu0 %v2210
        %v2395 = vpop.f32.mrf.mxu0
        %v2396 = vadd.f32 %v2171, %v2395
        %v2397 = vpop.f32.mrf.mxu0
        %2398 = vmatprep.mubr.f32.mxu0 0.0
        %2399 = vmatmul.mubr.f32.gmra.mxu0 %v2213
        %v2400 = vpop.f32.mrf.mxu0
        %v2401 = vadd.f32 %v2171, %v2400
        %v2402 = vpop.f32.mrf.mxu0
        %2403 = vmatprep.mubr.f32.mxu0 0.0
        %2404 = vmatmul.mubr.f32.gmra.mxu0 %v2216
        %v2405 = vpop.f32.mrf.mxu0
        %v2406 = vadd.f32 %v2171, %v2405
        %v2407 = vpop.f32.mrf.mxu0
        %2408 = vmatprep.mubr.f32.mxu0 0.0
        %2409 = vmatmul.mubr.f32.gmra.mxu0 %v2219
        %v2410 = vpop.f32.mrf.mxu0
        %v2411 = vadd.f32 %v2171, %v2410
        %v2412 = vpop.f32.mrf.mxu0
        %2413 = vmatprep.mubr.f32.mxu0 0.0
        %2414 = vmatmul.mubr.f32.gmra.mxu0 %v2222
        %v2415 = vpop.f32.mrf.mxu0
        %v2416 = vadd.f32 %v2171, %v2415
        %v2417 = vpop.f32.mrf.mxu0
        %2418 = vmatprep.mubr.f32.mxu0 0.0
        %2419 = vmatmul.mubr.f32.gmra.mxu0 %v2225
        %v2420 = vpop.f32.mrf.mxu0
        %v2421 = vadd.f32 %v2171, %v2420
        %v2422 = vpop.f32.mrf.mxu0
        %2423 = vmatprep.mubr.f32.mxu0 0.0
        %2424 = vmatmul.mubr.f32.gmra.mxu0 %v2228
        %v2425 = vpop.f32.mrf.mxu0
        %v2426 = vadd.f32 %v2171, %v2425
        %v2427 = vpop.f32.mrf.mxu0
        %2428 = vmatprep.mubr.f32.mxu0 0.0
        %2429 = vmatmul.mubr.f32.gmra.mxu0 %v2231
        %v2430 = vpop.f32.mrf.mxu0
        %v2431 = vadd.f32 %v2171, %v2430
        %v2432 = vpop.f32.mrf.mxu0
        %2433 = vmatprep.mubr.f32.mxu0 0.0
        %2434 = vmatmul.mubr.f32.gmra.mxu0 %v2234
        %v2435 = vpop.f32.mrf.mxu0
        %v2436 = vadd.f32 %v2171, %v2435
        %v2437 = vpop.f32.mrf.mxu0
        %2438 = vmatprep.mubr.f32.mxu0 0.0
        %2439 = vmatmul.mubr.f32.gmra.mxu0 %v2237
        %v2440 = vpop.f32.mrf.mxu0
        %v2441 = vadd.f32 %v2171, %v2440
        %v2442 = vpop.f32.mrf.mxu0
        %2443 = vmatprep.mubr.f32.mxu0 0.0
        %2444 = vmatmul.mubr.f32.gmra.mxu0 %v2240
        %v2445 = vpop.f32.mrf.mxu0
        %v2446 = vadd.f32 %v2171, %v2445
        %v2447 = vpop.f32.mrf.mxu0
        %2448 = vmatprep.mubr.f32.mxu0 0.0
        %2449 = vmatmul.mubr.f32.gmra.mxu0 %v2243
        %v2450 = vpop.f32.mrf.mxu0
        %v2451 = vadd.f32 %v2171, %v2450
        %v2452 = vpop.f32.mrf.mxu0
        %2453 = vmatprep.mubr.f32.mxu0 0.0
        %2454 = vmatmul.mubr.f32.gmra.mxu0 %v2246
        %v2455 = vpop.f32.mrf.mxu0
        %v2456 = vadd.f32 %v2171, %v2455
        %v2457 = vpop.f32.mrf.mxu0
        %2458 = vmatprep.mubr.f32.mxu0 0.0
        %2459 = vmatmul.mubr.f32.gmra.mxu0 %v2249
        %v2460 = vpop.f32.mrf.mxu0
        %v2461 = vadd.f32 %v2171, %v2460
        %v2462 = vpop.f32.mrf.mxu0
        %2463 = vmatprep.mubr.f32.mxu0 0.0
        %2464 = vmatmul.mubr.f32.gmra.mxu0 %v2252
        %v2465 = vpop.f32.mrf.mxu0
        %v2466 = vadd.f32 %v2171, %v2465
        %v2467 = vpop.f32.mrf.mxu0
        %2468 = vmatprep.mubr.f32.mxu0 0.0
        %2469 = vmatmul.mubr.f32.gmra.mxu0 %v2255
        %v2470 = vpop.f32.mrf.mxu0
        %v2471 = vadd.f32 %v2171, %v2470
        %v2472 = vpop.f32.mrf.mxu0
        %2473 = vmatprep.mubr.f32.mxu0 0.0
        %2474 = vmatmul.mubr.f32.gmra.mxu0 %v2258
        %v2475 = vpop.f32.mrf.mxu0
        %v2476 = vadd.f32 %v2171, %v2475
        %v2477 = vpop.f32.mrf.mxu0
        %2478 = vmatprep.mubr.f32.mxu0 0.0
        %2479 = vmatmul.mubr.f32.gmra.mxu0 %v2261
        %v2480 = vpop.f32.mrf.mxu0
        %v2481 = vadd.f32 %v2171, %v2480
        %v2482 = vpop.f32.mrf.mxu0
        %2483 = vmatprep.mubr.f32.mxu0 0.0
        %2484 = vmatmul.mubr.f32.gmra.mxu0 %v2264
        %v2485 = vpop.f32.mrf.mxu0
        %v2486 = vadd.f32 %v2171, %v2485
        %v2487 = vpop.f32.mrf.mxu0
        %2488 = vmatprep.mubr.f32.mxu0 0.0
        %2489 = vmatmul.mubr.f32.gmra.mxu0 %v2267
        %v2490 = vpop.f32.mrf.mxu0
        %v2491 = vadd.f32 %v2171, %v2490
        %v2492 = vpop.f32.mrf.mxu0
        %2493 = vdwg.mxu0
        %2494 = vmatprep.subr.mxu0 0.0
        %2495 = vmatpush1.msra.mxu0 %v2411
        %2496 = vmatprep.subr.mxu0 0.0
        %2497 = vmatpush1.msra.mxu0 %v2406
        %2498 = vmatprep.subr.mxu0 0.0
        %2499 = vmatpush1.msra.mxu0 %v2401
        %2500 = vmatprep.subr.mxu0 0.0
        %2501 = vmatpush1.msra.mxu0 %v2396
        %2502 = vmatprep.subr.mxu0 0.0
        %2503 = vmatpush1.msra.mxu0 %v2391
        %2504 = vmatprep.subr.mxu0 0.0
        %2505 = vmatpush1.msra.mxu0 %v2386
        %2506 = vmatprep.subr.mxu0 0.0
        %2507 = vmatpush1.msra.mxu0 %v2381
        %2508 = vmatprep.subr.mxu0 0.0
        %2509 = vmatpush1.msra.mxu0 %v2376
        %2510 = vmatprep.subr.mxu0 0.0
        %2511 = vmatpush1.msra.mxu0 %v2371
        %2512 = vmatprep.subr.mxu0 0.0
        %2513 = vmatpush1.msra.mxu0 %v2366
        %2514 = vmatprep.subr.mxu0 0.0
        %2515 = vmatpush1.msra.mxu0 %v2361
        %2516 = vmatprep.subr.mxu0 0.0
        %2517 = vmatpush1.msra.mxu0 %v2356
        %2518 = vmatprep.subr.mxu0 0.0
        %2519 = vmatpush1.msra.mxu0 %v2351
        %2520 = vmatprep.subr.mxu0 0.0
        %2521 = vmatpush1.msra.mxu0 %v2346
        %2522 = vmatprep.subr.mxu0 0.0
        %2523 = vmatpush1.msra.mxu0 %v2341
        %2524 = vmatprep.subr.mxu0 0.0
        %2525 = vmatpush1.msra.mxu0 %v2336
        %2526 = vmatprep.subr.mxu0 0.0
        %2527 = vmatpush2.msra.mxu0 %v2491
        %2528 = vmatprep.subr.mxu0 0.0
        %2529 = vmatpush2.msra.mxu0 %v2486
        %2530 = vmatprep.subr.mxu0 0.0
        %2531 = vmatpush2.msra.mxu0 %v2481
        %2532 = vmatprep.subr.mxu0 0.0
        %2533 = vmatpush2.msra.mxu0 %v2476
        %2534 = vmatprep.subr.mxu0 0.0
        %2535 = vmatpush2.msra.mxu0 %v2471
        %2536 = vmatprep.subr.mxu0 0.0
        %2537 = vmatpush2.msra.mxu0 %v2466
        %2538 = vmatprep.subr.mxu0 0.0
        %2539 = vmatpush2.msra.mxu0 %v2461
        %2540 = vmatprep.subr.mxu0 0.0
        %2541 = vmatpush2.msra.mxu0 %v2456
        %2542 = vmatprep.subr.mxu0 0.0
        %2543 = vmatpush2.msra.mxu0 %v2451
        %2544 = vmatprep.subr.mxu0 0.0
        %2545 = vmatpush2.msra.mxu0 %v2446
        %2546 = vmatprep.subr.mxu0 0.0
        %2547 = vmatpush2.msra.mxu0 %v2441
        %2548 = vmatprep.subr.mxu0 0.0
        %2549 = vmatpush2.msra.mxu0 %v2436
        %2550 = vmatprep.subr.mxu0 0.0
        %2551 = vmatpush2.msra.mxu0 %v2431
        %2552 = vmatprep.subr.mxu0 0.0
        %2553 = vmatpush2.msra.mxu0 %v2426
        %2554 = vmatprep.subr.mxu0 0.0
        %2555 = vmatpush2.msra.mxu0 %v2421
        %2556 = vmatprep.subr.mxu0 0.0
        %2557 = vmatpush2.msra.mxu0 %v2416
        %2558 = vmatprep.mubr.f32.mxu0 0.00390625
        %2559 = vmatmul.mubr.f32.gmra.mxu0 0.00390625
        %v2560 = vpop.f32.mrf.mxu0
        %v2561 = vadd.f32 0.0, %v2560
        %v2562 = vpop.f32.mrf.mxu0
        %2563 = vdwg.mxu0
        %v2564 = vld [vmem:[%s7] sm:$0xff]
        %v2565 = vld [vmem:[%s7 + $0x8] sm:$0xff]
        %v2566 = vld [vmem:[%s7 + $0x10] sm:$0xff]
        %v2567 = vld [vmem:[%s8] sm:$0x1]
        %vm2568 = vcmask 195584
        %v2570 = vsel %vm2568, %v2561, 0
        %2572 = vmatprep.subr.mxu0 0.0
        %2573 = vmatpush1.msra.mxu0 0.0
        %2574 = vmatprep.subr.mxu0 0.0
        %2575 = vmatpush1.msra.mxu0 0.0
        %2576 = vmatprep.subr.mxu0 0.0
        %2577 = vmatpush1.msra.mxu0 0.0
        %2578 = vmatprep.subr.mxu0 0.0
        %2579 = vmatpush1.msra.mxu0 0.0
        %2580 = vmatprep.subr.mxu0 0.0
        %2581 = vmatpush1.msra.mxu0 0.0
        %2582 = vmatprep.subr.mxu0 0.0
        %2583 = vmatpush1.msra.mxu0 0.0
        %2584 = vmatprep.subr.mxu0 0.0
        %2585 = vmatpush1.msra.mxu0 0.0
        %2586 = vmatprep.subr.mxu0 0.0
        %2587 = vmatpush1.msra.mxu0 0.0
        %2588 = vmatprep.subr.mxu0 0.0
        %2589 = vmatpush1.msra.mxu0 0.0
        %2590 = vmatprep.subr.mxu0 0.0
        %2591 = vmatpush1.msra.mxu0 0.0
        %2592 = vmatprep.subr.mxu0 0.0
        %2593 = vmatpush1.msra.mxu0 0.0
        %2594 = vmatprep.subr.mxu0 0.0
        %2595 = vmatpush1.msra.mxu0 0.0
        %2596 = vmatprep.subr.mxu0 0.0
        %2597 = vmatpush1.msra.mxu0 0.0
        %2598 = vmatprep.subr.mxu0 0.0
        %2599 = vmatpush1.msra.mxu0 %v2566
        %2600 = vmatprep.subr.mxu0 0.0
        %2601 = vmatpush1.msra.mxu0 %v2565
        %2602 = vmatprep.subr.mxu0 0.0
        %2603 = vmatpush1.msra.mxu0 %v2564
        %2604 = vmatprep.subr.mxu0 0.0
        %2605 = vmatpush2.msra.mxu0 0.0
        %2606 = vmatprep.subr.mxu0 0.0
        %2607 = vmatpush2.msra.mxu0 0.0
        %2608 = vmatprep.subr.mxu0 0.0
        %2609 = vmatpush2.msra.mxu0 0.0
        %2610 = vmatprep.subr.mxu0 0.0
        %2611 = vmatpush2.msra.mxu0 0.0
        %2612 = vmatprep.subr.mxu0 0.0
        %2613 = vmatpush2.msra.mxu0 0.0
        %2614 = vmatprep.subr.mxu0 0.0
        %2615 = vmatpush2.msra.mxu0 0.0
        %2616 = vmatprep.subr.mxu0 0.0
        %2617 = vmatpush2.msra.mxu0 0.0
        %2618 = vmatprep.subr.mxu0 0.0
        %2619 = vmatpush2.msra.mxu0 0.0
        %2620 = vmatprep.subr.mxu0 0.0
        %2621 = vmatpush2.msra.mxu0 0.0
        %2622 = vmatprep.subr.mxu0 0.0
        %2623 = vmatpush2.msra.mxu0 0.0
        %2624 = vmatprep.subr.mxu0 0.0
        %2625 = vmatpush2.msra.mxu0 0.0
        %2626 = vmatprep.subr.mxu0 0.0
        %2627 = vmatpush2.msra.mxu0 0.0
        %2628 = vmatprep.subr.mxu0 0.0
        %2629 = vmatpush2.msra.mxu0 0.0
        %2630 = vmatprep.subr.mxu0 0.0
        %2631 = vmatpush2.msra.mxu0 0.0
        %2632 = vmatprep.subr.mxu0 0.0
        %2633 = vmatpush2.msra.mxu0 0.0
        %2634 = vmatprep.subr.mxu0 0.0
        %2635 = vmatpush2.msra.mxu0 0.0
        %2636 = vmatprep.mubr.f32.mxu0 0.0
        %2637 = vmatmul.mubr.f32.gmra.mxu0 %v2570
        %v2638 = vpop.f32.mrf.mxu0
        %v2639 = vadd.f32 %v2567, %v2638
        %v2640 = vpop.f32.mrf.mxu0
        %2641 = vdwg.mxu0
        %v2642 = vmax.f32 %v2639, 0.0
        %v2643 = vld [vmem:[%s9] sm:$0x3f]
        %v2644 = vld [vmem:[%s10] sm:$0x1]
        %vm2645 = vcmask 48128
        %v2647 = vsel %vm2645, %v2642, 0
        %vm2649 = vcmask 1045504
        %v2651 = vsel %vm2649, %v2643, 0
        %2653 = vmatprep.subr.mxu0 0.0
        %2654 = vmatpush1.msra.mxu0 0.0
        %2655 = vmatprep.subr.mxu0 0.0
        %2656 = vmatpush1.msra.mxu0 0.0
        %2657 = vmatprep.subr.mxu0 0.0
        %2658 = vmatpush1.msra.mxu0 0.0
        %2659 = vmatprep.subr.mxu0 0.0
        %2660 = vmatpush1.msra.mxu0 0.0
        %2661 = vmatprep.subr.mxu0 0.0
        %2662 = vmatpush1.msra.mxu0 0.0
        %2663 = vmatprep.subr.mxu0 0.0
        %2664 = vmatpush1.msra.mxu0 0.0
        %2665 = vmatprep.subr.mxu0 0.0
        %2666 = vmatpush1.msra.mxu0 0.0
        %2667 = vmatprep.subr.mxu0 0.0
        %2668 = vmatpush1.msra.mxu0 0.0
        %2669 = vmatprep.subr.mxu0 0.0
        %2670 = vmatpush1.msra.mxu0 0.0
        %2671 = vmatprep.subr.mxu0 0.0
        %2672 = vmatpush1.msra.mxu0 0.0
        %2673 = vmatprep.subr.mxu0 0.0
        %2674 = vmatpush1.msra.mxu0 0.0
        %2675 = vmatprep.subr.mxu0 0.0
        %2676 = vmatpush1.msra.mxu0 0.0
        %2677 = vmatprep.subr.mxu0 0.0
        %2678 = vmatpush1.msra.mxu0 0.0
        %2679 = vmatprep.subr.mxu0 0.0
        %2680 = vmatpush1.msra.mxu0 0.0
        %2681 = vmatprep.subr.mxu0 0.0
        %2682 = vmatpush1.msra.mxu0 0.0
        %2683 = vmatprep.subr.mxu0 0.0
        %2684 = vmatpush1.msra.mxu0 %v2651
        %2685 = vmatprep.subr.mxu0 0.0
        %2686 = vmatpush2.msra.mxu0 0.0
        %2687 = vmatprep.subr.mxu0 0.0
        %2688 = vmatpush2.msra.mxu0 0.0
        %2689 = vmatprep.subr.mxu0 0.0
        %2690 = vmatpush2.msra.mxu0 0.0
        %2691 = vmatprep.subr.mxu0 0.0
        %2692 = vmatpush2.msra.mxu0 0.0
        %2693 = vmatprep.subr.mxu0 0.0
        %2694 = vmatpush2.msra.mxu0 0.0
        %2695 = vmatprep.subr.mxu0 0.0
        %2696 = vmatpush2.msra.mxu0 0.0
        %2697 = vmatprep.subr.mxu0 0.0
        %2698 = vmatpush2.msra.mxu0 0.0
        %2699 = vmatprep.subr.mxu0 0.0
        %2700 = vmatpush2.msra.mxu0 0.0
        %2701 = vmatprep.subr.mxu0 0.0
        %2702 = vmatpush2.msra.mxu0 0.0
        %2703 = vmatprep.subr.mxu0 0.0
        %2704 = vmatpush2.msra.mxu0 0.0
        %2705 = vmatprep.subr.mxu0 0.0
        %2706 = vmatpush2.msra.mxu0 0.0
        %2707 = vmatprep.subr.mxu0 0.0
        %2708 = vmatpush2.msra.mxu0 0.0
        %2709 = vmatprep.subr.mxu0 0.0
        %2710 = vmatpush2.msra.mxu0 0.0
        %2711 = vmatprep.subr.mxu0 0.0
        %2712 = vmatpush2.msra.mxu0 0.0
        %2713 = vmatprep.subr.mxu0 0.0
        %2714 = vmatpush2.msra.mxu0 0.0
        %2715 = vmatprep.subr.mxu0 0.0
        %2716 = vmatpush2.msra.mxu0 0.0
        %2717 = vmatprep.mubr.f32.mxu0 0.0
        %2718 = vmatmul.mubr.f32.gmra.mxu0 %v2647
        %v2719 = vpop.f32.mrf.mxu0
        %v2720 = vadd.f32 %v2644, %v2719
        %v2721 = vpop.f32.mrf.mxu0
        %2722 = vdwg.mxu0
        %v2723 = vadd.f32 %v2720, 3.0
        %v2724 = vmax.f32 %v2723, 0.0
        %v2725 = vmin.f32 %v2724, 6.0
        %v2726 = vmul.f32 %v2725, 0.16666667
        %v2727 = vlaneseq
        %v2728 = vshrl.u32 %v2727, 7
        %v2729 = vsub.s32 0, %v2728
        %v2730 = vrot.slane %v2726, %v2729
        %v2731 = vmul.f32 %v2336, %v2730
        %v2732 = vmul.f32 %v2341, %v2730
        %v2733 = vmul.f32 %v2346, %v2730
        %v2734 = vmul.f32 %v2351, %v2730
        %v2735 = vmul.f32 %v2356, %v2730
        %v2736 = vmul.f32 %v2361, %v2730
        %v2737 = vmul.f32 %v2366, %v2730
        %v2738 = vmul.f32 %v2371, %v2730
        %v2739 = vmul.f32 %v2376, %v2730
        %v2740 = vmul.f32 %v2381, %v2730
        %v2741 = vmul.f32 %v2386, %v2730
        %v2742 = vmul.f32 %v2391, %v2730
        %v2743 = vmul.f32 %v2396, %v2730
        %v2744 = vmul.f32 %v2401, %v2730
        %v2745 = vmul.f32 %v2406, %v2730
        %v2746 = vmul.f32 %v2411, %v2730
        %v2747 = vmul.f32 %v2416, %v2730
        %v2748 = vmul.f32 %v2421, %v2730
        %v2749 = vmul.f32 %v2426, %v2730
        %v2750 = vmul.f32 %v2431, %v2730
        %v2751 = vmul.f32 %v2436, %v2730
        %v2752 = vmul.f32 %v2441, %v2730
        %v2753 = vmul.f32 %v2446, %v2730
        %v2754 = vmul.f32 %v2451, %v2730
        %v2755 = vmul.f32 %v2456, %v2730
        %v2756 = vmul.f32 %v2461, %v2730
        %v2757 = vmul.f32 %v2466, %v2730
        %v2758 = vmul.f32 %v2471, %v2730
        %v2759 = vmul.f32 %v2476, %v2730
        %v2760 = vmul.f32 %v2481, %v2730
        %v2761 = vmul.f32 %v2486, %v2730
        %v2762 = vmul.f32 %v2491, %v2730
        %v2763 = vld [vmem:[%s11] sm:$0xff]
        %v2764 = vld [vmem:[%s11 + $0x8] sm:$0xff]
        %v2765 = vld [vmem:[%s12] sm:$0x1]
        %v2767 = vlaneseq
        %v2768 = vshrl.u32 %v2767, 7
        %v2769 = vsub.s32 0, %v2768
        %v2770 = vrot.slane %v2765, %v2769
        %2772 = vmatprep.subr.mxu0 0.0
        %2773 = vmatpush1.msra.mxu0 0.0
        %2774 = vmatprep.subr.mxu0 0.0
        %2775 = vmatpush1.msra.mxu0 0.0
        %2776 = vmatprep.subr.mxu0 0.0
        %2777 = vmatpush1.msra.mxu0 0.0
        %2778 = vmatprep.subr.mxu0 0.0
        %2779 = vmatpush1.msra.mxu0 0.0
        %2780 = vmatprep.subr.mxu0 0.0
        %2781 = vmatpush1.msra.mxu0 0.0
        %2782 = vmatprep.subr.mxu0 0.0
        %2783 = vmatpush1.msra.mxu0 0.0
        %2784 = vmatprep.subr.mxu0 0.0
        %2785 = vmatpush1.msra.mxu0 0.0
        %2786 = vmatprep.subr.mxu0 0.0
        %2787 = vmatpush1.msra.mxu0 0.0
        %2788 = vmatprep.subr.mxu0 0.0
        %2789 = vmatpush1.msra.mxu0 0.0
        %2790 = vmatprep.subr.mxu0 0.0
        %2791 = vmatpush1.msra.mxu0 0.0
        %2792 = vmatprep.subr.mxu0 0.0
        %2793 = vmatpush1.msra.mxu0 0.0
        %2794 = vmatprep.subr.mxu0 0.0
        %2795 = vmatpush1.msra.mxu0 0.0
        %2796 = vmatprep.subr.mxu0 0.0
        %2797 = vmatpush1.msra.mxu0 0.0
        %2798 = vmatprep.subr.mxu0 0.0
        %2799 = vmatpush1.msra.mxu0 0.0
        %2800 = vmatprep.subr.mxu0 0.0
        %2801 = vmatpush1.msra.mxu0 %v2764
        %2802 = vmatprep.subr.mxu0 0.0
        %2803 = vmatpush1.msra.mxu0 %v2763
        %2804 = vmatprep.subr.mxu0 0.0
        %2805 = vmatpush2.msra.mxu0 0.0
        %2806 = vmatprep.subr.mxu0 0.0
        %2807 = vmatpush2.msra.mxu0 0.0
        %2808 = vmatprep.subr.mxu0 0.0
        %2809 = vmatpush2.msra.mxu0 0.0
        %2810 = vmatprep.subr.mxu0 0.0
        %2811 = vmatpush2.msra.mxu0 0.0
        %2812 = vmatprep.subr.mxu0 0.0
        %2813 = vmatpush2.msra.mxu0 0.0
        %2814 = vmatprep.subr.mxu0 0.0
        %2815 = vmatpush2.msra.mxu0 0.0
        %2816 = vmatprep.subr.mxu0 0.0
        %2817 = vmatpush2.msra.mxu0 0.0
        %2818 = vmatprep.subr.mxu0 0.0
        %2819 = vmatpush2.msra.mxu0 0.0
        %2820 = vmatprep.subr.mxu0 0.0
        %2821 = vmatpush2.msra.mxu0 0.0
        %2822 = vmatprep.subr.mxu0 0.0
        %2823 = vmatpush2.msra.mxu0 0.0
        %2824 = vmatprep.subr.mxu0 0.0
        %2825 = vmatpush2.msra.mxu0 0.0
        %2826 = vmatprep.subr.mxu0 0.0
        %2827 = vmatpush2.msra.mxu0 0.0
        %2828 = vmatprep.subr.mxu0 0.0
        %2829 = vmatpush2.msra.mxu0 0.0
        %2830 = vmatprep.subr.mxu0 0.0
        %2831 = vmatpush2.msra.mxu0 0.0
        %2832 = vmatprep.subr.mxu0 0.0
        %2833 = vmatpush2.msra.mxu0 0.0
        %2834 = vmatprep.subr.mxu0 0.0
        %2835 = vmatpush2.msra.mxu0 0.0
        %2836 = vmatprep.mubr.f32.mxu0 0.0
        %2837 = vmatmul.mubr.f32.gmra.mxu0 %v482
        %v2838 = vpop.f32.mrf.mxu0
        %v2839 = vadd.f32 %v2770, %v2838
        %v2840 = vpop.f32.mrf.mxu0
        %2841 = vmatprep.mubr.f32.mxu0 0.0
        %2842 = vmatmul.mubr.f32.gmra.mxu0 %v485
        %v2843 = vpop.f32.mrf.mxu0
        %v2844 = vadd.f32 %v2770, %v2843
        %v2845 = vpop.f32.mrf.mxu0
        %2846 = vmatprep.mubr.f32.mxu0 0.0
        %2847 = vmatmul.mubr.f32.gmra.mxu0 %v488
        %v2848 = vpop.f32.mrf.mxu0
        %v2849 = vadd.f32 %v2770, %v2848
        %v2850 = vpop.f32.mrf.mxu0
        %2851 = vmatprep.mubr.f32.mxu0 0.0
        %2852 = vmatmul.mubr.f32.gmra.mxu0 %v491
        %v2853 = vpop.f32.mrf.mxu0
        %v2854 = vadd.f32 %v2770, %v2853
        %v2855 = vpop.f32.mrf.mxu0
        %2856 = vmatprep.mubr.f32.mxu0 0.0
        %2857 = vmatmul.mubr.f32.gmra.mxu0 %v494
        %v2858 = vpop.f32.mrf.mxu0
        %v2859 = vadd.f32 %v2770, %v2858
        %v2860 = vpop.f32.mrf.mxu0
        %2861 = vmatprep.mubr.f32.mxu0 0.0
        %2862 = vmatmul.mubr.f32.gmra.mxu0 %v497
        %v2863 = vpop.f32.mrf.mxu0
        %v2864 = vadd.f32 %v2770, %v2863
        %v2865 = vpop.f32.mrf.mxu0
        %2866 = vmatprep.mubr.f32.mxu0 0.0
        %2867 = vmatmul.mubr.f32.gmra.mxu0 %v500
        %v2868 = vpop.f32.mrf.mxu0
        %v2869 = vadd.f32 %v2770, %v2868
        %v2870 = vpop.f32.mrf.mxu0
        %2871 = vmatprep.mubr.f32.mxu0 0.0
        %2872 = vmatmul.mubr.f32.gmra.mxu0 %v503
        %v2873 = vpop.f32.mrf.mxu0
        %v2874 = vadd.f32 %v2770, %v2873
        %v2875 = vpop.f32.mrf.mxu0
        %2876 = vmatprep.mubr.f32.mxu0 0.0
        %2877 = vmatmul.mubr.f32.gmra.mxu0 %v506
        %v2878 = vpop.f32.mrf.mxu0
        %v2879 = vadd.f32 %v2770, %v2878
        %v2880 = vpop.f32.mrf.mxu0
        %2881 = vmatprep.mubr.f32.mxu0 0.0
        %2882 = vmatmul.mubr.f32.gmra.mxu0 %v509
        %v2883 = vpop.f32.mrf.mxu0
        %v2884 = vadd.f32 %v2770, %v2883
        %v2885 = vpop.f32.mrf.mxu0
        %2886 = vmatprep.mubr.f32.mxu0 0.0
        %2887 = vmatmul.mubr.f32.gmra.mxu0 %v512
        %v2888 = vpop.f32.mrf.mxu0
        %v2889 = vadd.f32 %v2770, %v2888
        %v2890 = vpop.f32.mrf.mxu0
        %2891 = vmatprep.mubr.f32.mxu0 0.0
        %2892 = vmatmul.mubr.f32.gmra.mxu0 %v515
        %v2893 = vpop.f32.mrf.mxu0
        %v2894 = vadd.f32 %v2770, %v2893
        %v2895 = vpop.f32.mrf.mxu0
        %2896 = vmatprep.mubr.f32.mxu0 0.0
        %2897 = vmatmul.mubr.f32.gmra.mxu0 %v518
        %v2898 = vpop.f32.mrf.mxu0
        %v2899 = vadd.f32 %v2770, %v2898
        %v2900 = vpop.f32.mrf.mxu0
        %2901 = vmatprep.mubr.f32.mxu0 0.0
        %2902 = vmatmul.mubr.f32.gmra.mxu0 %v521
        %v2903 = vpop.f32.mrf.mxu0
        %v2904 = vadd.f32 %v2770, %v2903
        %v2905 = vpop.f32.mrf.mxu0
        %2906 = vmatprep.mubr.f32.mxu0 0.0
        %2907 = vmatmul.mubr.f32.gmra.mxu0 %v524
        %v2908 = vpop.f32.mrf.mxu0
        %v2909 = vadd.f32 %v2770, %v2908
        %v2910 = vpop.f32.mrf.mxu0
        %2911 = vmatprep.mubr.f32.mxu0 0.0
        %2912 = vmatmul.mubr.f32.gmra.mxu0 %v527
        %v2913 = vpop.f32.mrf.mxu0
        %v2914 = vadd.f32 %v2770, %v2913
        %v2915 = vpop.f32.mrf.mxu0
        %2916 = vmatprep.mubr.f32.mxu0 0.0
        %2917 = vmatmul.mubr.f32.gmra.mxu0 %v530
        %v2918 = vpop.f32.mrf.mxu0
        %v2919 = vadd.f32 %v2770, %v2918
        %v2920 = vpop.f32.mrf.mxu0
        %2921 = vmatprep.mubr.f32.mxu0 0.0
        %2922 = vmatmul.mubr.f32.gmra.mxu0 %v533
        %v2923 = vpop.f32.mrf.mxu0
        %v2924 = vadd.f32 %v2770, %v2923
        %v2925 = vpop.f32.mrf.mxu0
        %2926 = vmatprep.mubr.f32.mxu0 0.0
        %2927 = vmatmul.mubr.f32.gmra.mxu0 %v536
        %v2928 = vpop.f32.mrf.mxu0
        %v2929 = vadd.f32 %v2770, %v2928
        %v2930 = vpop.f32.mrf.mxu0
        %2931 = vmatprep.mubr.f32.mxu0 0.0
        %2932 = vmatmul.mubr.f32.gmra.mxu0 %v539
        %v2933 = vpop.f32.mrf.mxu0
        %v2934 = vadd.f32 %v2770, %v2933
        %v2935 = vpop.f32.mrf.mxu0
        %2936 = vmatprep.mubr.f32.mxu0 0.0
        %2937 = vmatmul.mubr.f32.gmra.mxu0 %v542
        %v2938 = vpop.f32.mrf.mxu0
        %v2939 = vadd.f32 %v2770, %v2938
        %v2940 = vpop.f32.mrf.mxu0
        %2941 = vmatprep.mubr.f32.mxu0 0.0
        %2942 = vmatmul.mubr.f32.gmra.mxu0 %v545
        %v2943 = vpop.f32.mrf.mxu0
        %v2944 = vadd.f32 %v2770, %v2943
        %v2945 = vpop.f32.mrf.mxu0
        %2946 = vmatprep.mubr.f32.mxu0 0.0
        %2947 = vmatmul.mubr.f32.gmra.mxu0 %v548
        %v2948 = vpop.f32.mrf.mxu0
        %v2949 = vadd.f32 %v2770, %v2948
        %v2950 = vpop.f32.mrf.mxu0
        %2951 = vmatprep.mubr.f32.mxu0 0.0
        %2952 = vmatmul.mubr.f32.gmra.mxu0 %v551
        %v2953 = vpop.f32.mrf.mxu0
        %v2954 = vadd.f32 %v2770, %v2953
        %v2955 = vpop.f32.mrf.mxu0
        %2956 = vmatprep.mubr.f32.mxu0 0.0
        %2957 = vmatmul.mubr.f32.gmra.mxu0 %v554
        %v2958 = vpop.f32.mrf.mxu0
        %v2959 = vadd.f32 %v2770, %v2958
        %v2960 = vpop.f32.mrf.mxu0
        %2961 = vmatprep.mubr.f32.mxu0 0.0
        %2962 = vmatmul.mubr.f32.gmra.mxu0 %v557
        %v2963 = vpop.f32.mrf.mxu0
        %v2964 = vadd.f32 %v2770, %v2963
        %v2965 = vpop.f32.mrf.mxu0
        %2966 = vmatprep.mubr.f32.mxu0 0.0
        %2967 = vmatmul.mubr.f32.gmra.mxu0 %v560
        %v2968 = vpop.f32.mrf.mxu0
        %v2969 = vadd.f32 %v2770, %v2968
        %v2970 = vpop.f32.mrf.mxu0
        %2971 = vmatprep.mubr.f32.mxu0 0.0
        %2972 = vmatmul.mubr.f32.gmra.mxu0 %v563
        %v2973 = vpop.f32.mrf.mxu0
        %v2974 = vadd.f32 %v2770, %v2973
        %v2975 = vpop.f32.mrf.mxu0
        %2976 = vmatprep.mubr.f32.mxu0 0.0
        %2977 = vmatmul.mubr.f32.gmra.mxu0 %v566
        %v2978 = vpop.f32.mrf.mxu0
        %v2979 = vadd.f32 %v2770, %v2978
        %v2980 = vpop.f32.mrf.mxu0
        %2981 = vmatprep.mubr.f32.mxu0 0.0
        %2982 = vmatmul.mubr.f32.gmra.mxu0 %v569
        %v2983 = vpop.f32.mrf.mxu0
        %v2984 = vadd.f32 %v2770, %v2983
        %v2985 = vpop.f32.mrf.mxu0
        %2986 = vmatprep.mubr.f32.mxu0 0.0
        %2987 = vmatmul.mubr.f32.gmra.mxu0 %v572
        %v2988 = vpop.f32.mrf.mxu0
        %v2989 = vadd.f32 %v2770, %v2988
        %v2990 = vpop.f32.mrf.mxu0
        %2991 = vmatprep.mubr.f32.mxu0 0.0
        %2992 = vmatmul.mubr.f32.gmra.mxu0 %v575
        %v2993 = vpop.f32.mrf.mxu0
        %v2994 = vadd.f32 %v2770, %v2993
        %v2995 = vpop.f32.mrf.mxu0
        %2996 = vdwg.mxu0
        %v2997 = vadd.f32 %v2731, %v2839
        %v2998 = vadd.f32 %v2732, %v2844
        %v2999 = vadd.f32 %v2733, %v2849
        %v3000 = vadd.f32 %v2734, %v2854
        %v3001 = vadd.f32 %v2735, %v2859
        %v3002 = vadd.f32 %v2736, %v2864
        %v3003 = vadd.f32 %v2737, %v2869
        %v3004 = vadd.f32 %v2738, %v2874
        %v3005 = vadd.f32 %v2739, %v2879
        %v3006 = vadd.f32 %v2740, %v2884
        %v3007 = vadd.f32 %v2741, %v2889
        %v3008 = vadd.f32 %v2742, %v2894
        %v3009 = vadd.f32 %v2743, %v2899
        %v3010 = vadd.f32 %v2744, %v2904
        %v3011 = vadd.f32 %v2745, %v2909
        %v3012 = vadd.f32 %v2746, %v2914
        %v3013 = vadd.f32 %v2747, %v2919
        %v3014 = vadd.f32 %v2748, %v2924
        %v3015 = vadd.f32 %v2749, %v2929
        %v3016 = vadd.f32 %v2750, %v2934
        %v3017 = vadd.f32 %v2751, %v2939
        %v3018 = vadd.f32 %v2752, %v2944
        %v3019 = vadd.f32 %v2753, %v2949
        %v3020 = vadd.f32 %v2754, %v2954
        %v3021 = vadd.f32 %v2755, %v2959
        %v3022 = vadd.f32 %v2756, %v2964
        %v3023 = vadd.f32 %v2757, %v2969
        %v3024 = vadd.f32 %v2758, %v2974
        %v3025 = vadd.f32 %v2759, %v2979
        %v3026 = vadd.f32 %v2760, %v2984
        %v3027 = vadd.f32 %v2761, %v2989
        %v3028 = vadd.f32 %v2762, %v2994
        %3029 = vst.msk [vmem:[%s433] sm:$0xff] %vm2568, %v2997
        %3030 = vst.msk [vmem:[%s433 + $0x8] sm:$0xff] %vm2568, %v2998
        %3031 = vst.msk [vmem:[%s433 + $0x10] sm:$0xff] %vm2568, %v2999
        %3032 = vst.msk [vmem:[%s433 + $0x18] sm:$0xff] %vm2568, %v3000
        %3033 = vst.msk [vmem:[%s433 + $0x20] sm:$0xff] %vm2568, %v3001
        %3034 = vst.msk [vmem:[%s433 + $0x28] sm:$0xff] %vm2568, %v3002
        %3035 = vst.msk [vmem:[%s433 + $0x30] sm:$0xff] %vm2568, %v3003
        %3036 = vst.msk [vmem:[%s433 + $0x38] sm:$0xff] %vm2568, %v3004
        %3037 = vst.msk [vmem:[%s433 + $0x40] sm:$0xff] %vm2568, %v3005
        %3038 = vst.msk [vmem:[%s433 + $0x48] sm:$0xff] %vm2568, %v3006
        %3039 = vst.msk [vmem:[%s433 + $0x50] sm:$0xff] %vm2568, %v3007
        %3040 = vst.msk [vmem:[%s433 + $0x58] sm:$0xff] %vm2568, %v3008
        %3041 = vst.msk [vmem:[%s433 + $0x60] sm:$0xff] %vm2568, %v3009
        %3042 = vst.msk [vmem:[%s433 + $0x68] sm:$0xff] %vm2568, %v3010
        %3043 = vst.msk [vmem:[%s433 + $0x70] sm:$0xff] %vm2568, %v3011
        %3044 = vst.msk [vmem:[%s433 + $0x78] sm:$0xff] %vm2568, %v3012
        %3045 = vst.msk [vmem:[%s433 + $0x80] sm:$0xff] %vm2568, %v3013
        %3046 = vst.msk [vmem:[%s433 + $0x88] sm:$0xff] %vm2568, %v3014
        %3047 = vst.msk [vmem:[%s433 + $0x90] sm:$0xff] %vm2568, %v3015
        %3048 = vst.msk [vmem:[%s433 + $0x98] sm:$0xff] %vm2568, %v3016
        %3049 = vst.msk [vmem:[%s433 + $0xa0] sm:$0xff] %vm2568, %v3017
        %3050 = vst.msk [vmem:[%s433 + $0xa8] sm:$0xff] %vm2568, %v3018
        %3051 = vst.msk [vmem:[%s433 + $0xb0] sm:$0xff] %vm2568, %v3019
        %3052 = vst.msk [vmem:[%s433 + $0xb8] sm:$0xff] %vm2568, %v3020
        %3053 = vst.msk [vmem:[%s433 + $0xc0] sm:$0xff] %vm2568, %v3021
        %3054 = vst.msk [vmem:[%s433 + $0xc8] sm:$0xff] %vm2568, %v3022
        %3055 = vst.msk [vmem:[%s433 + $0xd0] sm:$0xff] %vm2568, %v3023
        %3056 = vst.msk [vmem:[%s433 + $0xd8] sm:$0xff] %vm2568, %v3024
        %3057 = vst.msk [vmem:[%s433 + $0xe0] sm:$0xff] %vm2568, %v3025
        %3058 = vst.msk [vmem:[%s433 + $0xe8] sm:$0xff] %vm2568, %v3026
        %3059 = vst.msk [vmem:[%s433 + $0xf0] sm:$0xff] %vm2568, %v3027
        %3060 = vst.msk [vmem:[%s433 + $0xf8] sm:$0xff] %vm2568, %v3028
        %s3061 = sand.u32 %s313, 1
        %s3062 = scalar_lea.sflag [#allocation4], %s3061
        %s3063 = sand.u32 %s313, 1
        %s3064 = smul.addr %s3063, 256
        %s3065 = scalar_lea.vmem [#allocation3], %s3064
        // Predicated region
        $region73: #{block_forward.1} parent=71 // pred_check
          %p3066 = pneg %p323
        $region74: #{block_forward.1} parent=71 // pred_check_branch
          %3068 = sbr.rel (%p3066) target = $region76
        $region75: #{block_forward.1} parent=71 // pred_region
          %s3070 = ssub.s32 4096, 4096
          %3071 = vsyncadd %s3062, %s3070
          %s3072 = smul.addr %s27, 32
          %s3073 = smul.addr %s3072, 128
          %s3074 = scalar_lea.hbm %s13, %s3073
          %s3075 = sshll.u32 %s3065, 4
          %s3076 = int_to_ptr.vmem [resolvable:$true] %s3075
          %3081 = dma.vmem_to_hbm [thread:$0]  %s3076, 4096, %s3074, %s3062, 128, 128, 8
        $region76: #{block_forward.1} parent=71 // pred_fallthru
          _
      $region72: #{block_forward.1} parent=5 // pred_fallthru
        _
      %p3082 = scmp.le.s32.totalorder 2, %s22
      // Predicated region
      $region77: #{block_forward.1} parent=5 // pred_check
        %p3083 = pneg %p3082
      $region78: #{block_forward.1} parent=5 // pred_check_branch
        %3085 = sbr.rel (%p3083) target = $region80
      $region79: #{block_forward.1} parent=5 // pred_region
        %s3086 = ssub.s32 %s22, 2
        // Predicated region
        $region81: #{block_forward.1} parent=79 // pred_check
          %p3087 = pneg %p329
        $region82: #{block_forward.1} parent=79 // pred_check_branch
          %3089 = sbr.rel (%p3087) target = $region84
        $region83: #{block_forward.1} parent=79 // pred_region
          %s3090 = sand.u32 %s314, 1
          %s3091 = scalar_lea.sflag [#allocation4], %s3090
          %s3092 = sand.u32 %s314, 1
          %s3093 = smul.addr %s3092, 256
          %s3094 = scalar_lea.vmem [#allocation3], %s3093
          %3095 = dma.done %s3091, 4096
        $region84: #{block_forward.1} parent=79 // pred_fallthru
          _
      $region80: #{block_forward.1} parent=5 // pred_fallthru
        _
    $region6: #{block_forward.1} parent=1 // loop_footer
      %s26 = sadd.s32 1, %s22
    $region7: #{block_forward.1} parent=1 // loop_footer_branch
      %21 = sbr.rel target = $region3
    $region8: #{block_forward.1} parent=1 // loop_exit
      _
    %3096 = vsyncpa [#allocation4], 1
    %s3097 = scalar_lea.sflag [#allocation4], 1
    %3098 = vsyncpa %s3097, 1

</llo_original>
